<compile_context>
chip_gen: v6e
topology: v6e:2x2x1
jax: 0.10.0
libtpu: 0.0.40
codegen_flags: <defaults>
</compile_context>

<pallas_src>
import functools

import jax
import jax.numpy as jnp
from jax.experimental import pallas as pl
from jax.experimental.pallas import tpu as pltpu

BN_EPS = 1e-5
LANE = 128
MIB = 2 ** 20


def _round_up(x, m):
    return (x + m - 1) // m * m


def _tpu_vmem_capacity():
    try:
        return int(pltpu.get_tpu_info().vmem_capacity_bytes)
    except Exception:
        return 64 * MIB          # conservative (v7x-class) fallback


_VMEM_CAPACITY = _tpu_vmem_capacity()
if _VMEM_CAPACITY <= 64 * MIB:          # v7x-class: 64 MiB VMEM per TC
    RESIDENT_BUDGET = 18 * MIB
    VMEM_LIMIT_CAP = 40 * MIB
else:                                   # v5e / v6e: 128 MiB VMEM
    RESIDENT_BUDGET = 56 * MIB
    VMEM_LIMIT_CAP = 96 * MIB


def _pick_tm(m_pad, tm_cap):
    """Largest multiple of 16 that divides m_pad and is <= tm_cap (>= 16).

    m_pad is always a multiple of 16, so 16 is a guaranteed divisor."""
    tm = min(tm_cap, m_pad)
    tm -= tm % 16
    tm = max(tm, 16)
    while tm > 16 and m_pad % tm:
        tm -= 16
    return tm


def _full_spec(shape):
    return pl.BlockSpec(shape, lambda: (0,) * len(shape))


# ----------------------------------------------------------------------------
# Pallas kernels
# ----------------------------------------------------------------------------
def conv_bn_relu_resident_kernel(p_ref, w_ref, g_ref, b_ref, o_ref,
                                 y_buf, s_buf, sq_buf, scale_buf, shift_buf,
                                 *, inv_m):
    """Conv-as-matmul + training-mode BN + ReLU with y resident in VMEM.

    grid = (2, num_m_tiles).  Pass 0: (tm, Kp) @ (Kp, Cp) matmul per M tile,
    y kept in the y_buf scratch, channel sum / sum-of-squares accumulated in
    scratch.  Pass 1: finalize BN affine once, then normalize + ReLU each tile
    straight out of the scratch into the (compute-dtype) output.

    Conv bias is omitted: a per-channel constant is cancelled exactly by the
    BatchNorm mean subtraction.  Padded channels (zero weight columns,
    gamma = beta = 0) stay exactly zero.  Zero-padded M rows contribute zero
    to the sums, so inv_m uses the true row count.
    """
    pa = pl.program_id(0)
    i = pl.program_id(1)

    @pl.when(pa == 0)
    def _matmul_and_stats():
        y = jnp.dot(p_ref[...], w_ref[...], preferred_element_type=jnp.float32)
        y_buf[i] = y
        s = jnp.sum(y, axis=0, keepdims=True)
        sq = jnp.sum(y * y, axis=0, keepdims=True)

        @pl.when(i == 0)
        def _():
            s_buf[...] = s
            sq_buf[...] = sq

        @pl.when(i != 0)
        def _():
            s_buf[...] += s
            sq_buf[...] += sq

    @pl.when(jnp.logical_and(pa == 1, i == 0))
    def _finalize_affine():
        # NOTE: single-pass E[y^2]-E[y]^2 in f32; fine for BN-normalized nets,
        # switch to a mean-shifted accumulation if |mean| >> std in your data.
        mean = s_buf[...] * inv_m
        var = jnp.maximum(sq_buf[...] * inv_m - mean * mean, 0.0)
        inv_std = jax.lax.rsqrt(var + BN_EPS)
        scale = g_ref[...] * inv_std
        scale_buf[...] = scale
        shift_buf[...] = b_ref[...] - mean * scale

    @pl.when(pa == 1)
    def _normalize():
        o_ref[...] = jnp.maximum(
            y_buf[i] * scale_buf[...] + shift_buf[...], 0.0
        ).astype(o_ref.dtype)


def conv_stats_kernel(p_ref, w_ref, y_ref, stat_ref):
    """Tiled conv matmul (fallback path).  y is emitted in the compute dtype;
    BN sum / sum-of-squares accumulate in the resident (2,1,Cp) output."""
    i = pl.program_id(0)
    y = jnp.dot(p_ref[...], w_ref[...], preferred_element_type=jnp.float32)
    y_ref[...] = y.astype(y_ref.dtype)
    s = jnp.sum(y, axis=0, keepdims=True)
    sq = jnp.sum(y * y, axis=0, keepdims=True)

    @pl.when(i == 0)
    def _():
        stat_ref[0] = s
        stat_ref[1] = sq

    @pl.when(i != 0)
    def _():
        stat_ref[0] += s
        stat_ref[1] += sq


def bn_relu_kernel(y_ref, scale_ref, shift_ref, o_ref):
    """Elementwise normalize + affine + ReLU over M tiles (fully parallel)."""
    y = y_ref[...].astype(jnp.float32)
    o_ref[...] = jnp.maximum(
        y * scale_ref[...] + shift_ref[...], 0.0).astype(o_ref.dtype)


def head_kernel(x_ref, w1_ref, b1_ref, w2_ref, b2_ref, o_ref):
    """fc1 -> fc2 -> sigmoid.  fc2 (zsize -> 1) is a VPU multiply+reduce to
    avoid a 1-lane MXU dispatch; zsize is zero-padded to 128 lanes."""
    h = jnp.dot(x_ref[...], w1_ref[...], preferred_element_type=jnp.float32)
    h = h + b1_ref[...]
    y = jnp.sum(h * w2_ref[...], axis=-1, keepdims=True) + b2_ref[...]
    o_ref[...] = jax.nn.sigmoid(y)


# ----------------------------------------------------------------------------
# pallas_call wrappers
# ----------------------------------------------------------------------------
def conv_bn_relu_resident(patches, w_mat, gamma_p, beta_p, m_valid, out_dtype,
                          tm_cap=256):
    m_pad, kp = patches.shape
    cp = w_mat.shape[1]
    isz = patches.dtype.itemsize
    osz = jnp.dtype(out_dtype).itemsize
    tm = _pick_tm(m_pad, tm_cap)
    num_tiles = m_pad // tm
    last = num_tiles - 1

    ws = (m_pad * cp * 4                # resident f32 y scratch
          + 2 * tm * kp * isz           # double-buffered patch tiles
          + 2 * kp * cp * isz           # weight (budgeted 2x, fetched once)
          + 2 * tm * cp * osz           # double-buffered output tiles
          + 8 * cp * 4)                 # stats / affine scratch, gamma, beta
    vmem = int(min(max(ws + ws // 2 + 2 * MIB, 16 * MIB), VMEM_LIMIT_CAP))
    cost = pl.CostEstimate(
        flops=2 * m_pad * kp * cp + 8 * m_pad * cp,
        transcendentals=cp,
        bytes_accessed=(m_pad * kp * isz + kp * cp * isz
                        + m_pad * cp * osz + 2 * cp * 4))

    kernel = functools.partial(conv_bn_relu_resident_kernel,
                               inv_m=1.0 / float(m_valid))
    return pl.pallas_call(
        kernel,
        grid=(2, num_tiles),
        out_shape=jax.ShapeDtypeStruct((m_pad, cp), out_dtype),
        in_specs=[
            # pass 0 walks the M tiles; pass 1 pins the index to the last tile
            # already in VMEM so no redundant patch DMAs are issued.
            pl.BlockSpec((tm, kp),
                         lambda p, i, last=last: (i * (1 - p) + last * p, 0)),
            pl.BlockSpec((kp, cp), lambda p, i: (0, 0)),
            pl.BlockSpec((1, cp), lambda p, i: (0, 0)),
            pl.BlockSpec((1, cp), lambda p, i: (0, 0)),
        ],
        # output blocks are only visited (and written) during pass 1.
        out_specs=pl.BlockSpec((tm, cp), lambda p, i: (i * p, 0)),
        scratch_shapes=[
            pltpu.VMEM((num_tiles, tm, cp), jnp.float32),   # y
            pltpu.VMEM((1, cp), jnp.float32),               # sum
            pltpu.VMEM((1, cp), jnp.float32),               # sum of squares
            pltpu.VMEM((1, cp), jnp.float32),               # scale
            pltpu.VMEM((1, cp), jnp.float32),               # shift
        ],
        compiler_params=pltpu.CompilerParams(
            dimension_semantics=("arbitrary", "arbitrary"),
            vmem_limit_bytes=vmem),
        cost_estimate=cost,
    )(patches, w_mat, gamma_p, beta_p)


def conv_bn_relu_tiled(patches, w_mat, gamma_p, beta_p, m_valid, out_dtype,
                       tm_cap=1024):
    """Fallback for layers whose y does not fit the resident VMEM budget:
    gridded matmul emitting compute-dtype y + scratch-accumulated stats, a
    tiny XLA affine fold, then a gridded normalize+ReLU with a larger tile."""
    m_pad, kp = patches.shape
    cp = w_mat.shape[1]
    isz = patches.dtype.itemsize
    ydt = patches.dtype                 # intermediate y in compute dtype
    ysz = jnp.dtype(ydt).itemsize
    osz = jnp.dtype(out_dtype).itemsize
    tile_budget = max(RESIDENT_BUDGET // 2, 8 * MIB)

    def blk_bytes(t):
        return (2 * t * kp * isz + 2 * kp * cp * isz + 2 * t * cp * ysz
                + 6 * cp * 4)

    tm = _pick_tm(m_pad, tm_cap)
    while tm > 16 and blk_bytes(tm) > tile_budget:
        tm = _pick_tm(m_pad, tm - 16)
    num_tiles = m_pad // tm
    vmem = int(min(max(2 * blk_bytes(tm), 16 * MIB), VMEM_LIMIT_CAP))

    cost_a = pl.CostEstimate(
        flops=2 * m_pad * kp * cp + 4 * m_pad * cp, transcendentals=0,
        bytes_accessed=m_pad * kp * isz + kp * cp * isz + m_pad * cp * ysz)
    y, stats = pl.pallas_call(
        conv_stats_kernel,
        grid=(num_tiles,),
        out_shape=(jax.ShapeDtypeStruct((m_pad, cp), ydt),
                   jax.ShapeDtypeStruct((2, 1, cp), jnp.float32)),
        in_specs=[pl.BlockSpec((tm, kp), lambda i: (i, 0)),
                  pl.BlockSpec((kp, cp), lambda i: (0, 0))],
        out_specs=(pl.BlockSpec((tm, cp), lambda i: (i, 0)),
                   pl.BlockSpec((2, 1, cp), lambda i: (0, 0, 0))),
        compiler_params=pltpu.CompilerParams(
            # stats accumulate across M -> sequential.  TODO(synk): on v7x add
            # a leading CORE_PARALLEL axis with per-core partials.
            dimension_semantics=("arbitrary",), vmem_limit_bytes=vmem),
        cost_estimate=cost_a,
    )(patches, w_mat)

    # tiny per-channel affine fold (negligible XLA work)
    inv_m = 1.0 / float(m_valid)
    mean = stats[0, 0] * inv_m
    var = jnp.maximum(stats[1, 0] * inv_m - mean * mean, 0.0)
    inv_std = jax.lax.rsqrt(var + BN_EPS)
    scale = (gamma_p[0] * inv_std)[None, :]
    shift = (beta_p[0] - mean * gamma_p[0] * inv_std)[None, :]

    # normalize + ReLU: tile decoupled from the matmul tile (no resident
    # weight constraint), so use up to 4x larger TM.
    tm_bn = _pick_tm(m_pad, max(4 * tm, tm))
    while tm_bn > 16 and (2 * tm_bn * cp * (ysz + osz) + 4 * cp * 4) > tile_budget:
        tm_bn = _pick_tm(m_pad, tm_bn - 16)
    nt_bn = m_pad // tm_bn
    cost_b = pl.CostEstimate(flops=3 * m_pad * cp, transcendentals=0,
                             bytes_accessed=m_pad * cp * (ysz + osz))
    return pl.pallas_call(
        bn_relu_kernel,
        grid=(nt_bn,),
        out_shape=jax.ShapeDtypeStruct((m_pad, cp), out_dtype),
        in_specs=[pl.BlockSpec((tm_bn, cp), lambda i: (i, 0)),
                  pl.BlockSpec((1, cp), lambda i: (0, 0)),
                  pl.BlockSpec((1, cp), lambda i: (0, 0))],
        out_specs=pl.BlockSpec((tm_bn, cp), lambda i: (i, 0)),
        compiler_params=pltpu.CompilerParams(
            dimension_semantics=("parallel",), vmem_limit_bytes=vmem),
        cost_estimate=cost_b,
    )(y, scale, shift)


def head(x_flat, w1_p, b1_p, w2_p, b2_p):
    n, f = x_flat.shape
    zp = w1_p.shape[1]
    cost = pl.CostEstimate(
        flops=2 * n * f * zp + 4 * n * zp,
        transcendentals=n,
        bytes_accessed=(n * f * x_flat.dtype.itemsize
                        + f * zp * w1_p.dtype.itemsize + 2 * zp * 4 + n * 4))
    return pl.pallas_call(
        head_kernel,
        out_shape=jax.ShapeDtypeStruct((n, 1), jnp.float32),
        in_specs=[_full_spec((n, f)), _full_spec((f, zp)), _full_spec((1, zp)),
                  _full_spec((1, zp)), _full_spec((1, 1))],
        out_specs=_full_spec((n, 1)),
        cost_estimate=cost,
    )(x_flat, w1_p, b1_p, w2_p, b2_p)


# ----------------------------------------------------------------------------
# Glue: im2col, parameter construction / prep, full forward
# ----------------------------------------------------------------------------
def im2col(x_nhwc, c_take, c_pad, compute_dtype, k=4, stride=2, pad=1):
    """Extract conv patches (flatten order kh, kw, Cin).  The previous layer's
    channel un-pad and this layer's zero-pad to cin_p are folded into the same
    spatial-padding pass (one fused XLA op, no standalone slice/pad passes).
    # TODO(synk): build the patches in-kernel from the padded NHWC activation
    # (halo DMA / strided loads) to avoid materializing the ~4x patch matrix
    # in HBM at all -- the remaining dominant HBM cost of the conv layers.
    """
    n, h, w, _ = x_nhwc.shape
    ho = (h + 2 * pad - k) // stride + 1
    wo = (w + 2 * pad - k) // stride + 1
    x = x_nhwc[..., :c_take].astype(compute_dtype)
    xp = jnp.pad(x, ((0, 0), (pad, pad), (pad, pad), (0, c_pad - c_take)))
    cols = []
    for i in range(k):
        for j in range(k):
            cols.append(xp[:, i:i + stride * ho:stride,
                           j:j + stride * wo:stride, :])
    patches = jnp.stack(cols, axis=3)          # (N, Ho, Wo, k*k, Cin_p)
    return patches.reshape(n * ho * wo, k * k * c_pad), ho, wo


def make_params(key, zsize, layer_count, channels, filter_base):
    """Deterministic synthetic params, PyTorch-native layouts."""
    params = {"conv": [], "fc": None}
    d = filter_base
    mul = 1
    inputs = channels
    keys = jax.random.split(key, layer_count + 2)
    for i in range(layer_count):
        cout = d * mul
        # weight_init(mean=0.0, std=0.02) semantics for convs; bias zero.
        w = 0.02 * jax.random.normal(keys[i], (cout, inputs, 4, 4), jnp.float32)
        b = jnp.zeros((cout,), jnp.float32)
        gamma = jnp.ones((cout,), jnp.float32)   # BatchNorm2d default affine
        beta = jnp.zeros((cout,), jnp.float32)
        params["conv"].append((w, b, gamma, beta))
        inputs = cout
        mul *= 2
    d_max = inputs
    w1 = 0.05 * jax.random.normal(keys[-2], (zsize, d_max * 4 * 4), jnp.float32)
    b1 = 0.05 * jax.random.normal(keys[-2], (zsize,), jnp.float32)
    w2 = 0.05 * jax.random.normal(keys[-1], (1, zsize), jnp.float32)
    b2 = 0.05 * jax.random.normal(keys[-1], (1,), jnp.float32)
    params["fc"] = (w1, b1, w2, b2)
    params["d_max"] = d_max
    return params


def prep_params(params, layer_count, compute_dtype):
    """One-time kernel-ready relayout / padding of the PyTorch-layout params."""
    conv_k = []
    meta = []
    for i in range(layer_count):
        w, _b, gamma, beta = params["conv"][i]
        cout, cin = int(w.shape[0]), int(w.shape[1])
        cin_p = _round_up(cin, 8)       # => K = 16*cin_p is a multiple of 128
        cout_p = _round_up(cout, LANE)  # lane-dense (unmasked) output stores
        wp = jnp.zeros((cout_p, cin_p, 4, 4), jnp.float32)
        wp = wp.at[:cout, :cin].set(w)
        # (Cout, Cin, kh, kw) -> (kh, kw, Cin, Cout) -> (K, Cout); hoisted here
        w_mat = jnp.transpose(wp, (2, 3, 1, 0)).reshape(16 * cin_p, cout_p)
        w_mat = w_mat.astype(compute_dtype)
        g = jnp.zeros((1, cout_p), jnp.float32).at[0, :cout].set(gamma)
        bt = jnp.zeros((1, cout_p), jnp.float32).at[0, :cout].set(beta)
        conv_k.append((w_mat, g, bt))
        meta.append((cin, cin_p, cout, cout_p))

    # Head: fold BOTH the PyTorch NCHW .view() flatten order AND the last conv
    # layer's channel lane-padding into the fc1 weight, so the head consumes
    # the channel-padded NHWC-flattened feature map directly (no per-forward
    # activation transpose/slice).  Padded channels are exactly zero anyway.
    w1, b1, w2, b2 = params["fc"]
    z = int(w1.shape[0])
    d_max = params["d_max"]
    cout_p_last = meta[-1][3]
    zp = _round_up(z, LANE)
    w1_hwc = w1.reshape(z, d_max, 4, 4).transpose(0, 2, 3, 1)      # (z,4,4,C)
    w1_hwc = jnp.pad(w1_hwc, ((0, 0), (0, 0), (0, 0),
                              (0, cout_p_last - d_max)))
    w1_hwc = w1_hwc.reshape(z, 16 * cout_p_last)
    w1_p = jnp.zeros((16 * cout_p_last, zp), jnp.float32)
    w1_p = w1_p.at[:, :z].set(w1_hwc.T).astype(compute_dtype)
    b1_p = jnp.zeros((1, zp), jnp.float32).at[0, :z].set(b1)
    w2_p = jnp.zeros((1, zp), jnp.float32).at[0, :z].set(w2[0])
    b2_p = b2.reshape(1, 1).astype(jnp.float32)
    head_k = (w1_p, b1_p, w2_p, b2_p)
    return conv_k, head_k, tuple(meta)


@functools.partial(jax.jit, static_argnames=("meta", "layer_count",
                                             "compute_dtype", "force_tiled",
                                             "tm_resident", "tm_tiled"))
def discriminator_forward(x_nchw, conv_k, head_k, *, meta, layer_count,
                          compute_dtype=jnp.bfloat16, force_tiled=False,
                          tm_resident=256, tm_tiled=1024):
    compute_dtype = jnp.dtype(compute_dtype)
    x = jnp.transpose(x_nchw, (0, 2, 3, 1))          # NCHW -> NHWC
    n = x.shape[0]
    for i in range(layer_count):
        w_mat, gamma_p, beta_p = conv_k[i]
        cin, cin_p, cout, cout_p = meta[i]
        patches, ho, wo = im2col(x, cin, cin_p, compute_dtype)
        m, kp = patches.shape
        m_pad = _round_up(m, 16)
        if m_pad != m:
            patches = jnp.pad(patches, ((0, m_pad - m), (0, 0)))
        isz = patches.dtype.itemsize
        osz = compute_dtype.itemsize
        tm_r = _pick_tm(m_pad, tm_resident)
        resident_ws = (m_pad * cout_p * 4 + 2 * tm_r * kp * isz
                       + 2 * kp * cout_p * isz + 2 * tm_r * cout_p * osz
                       + 8 * cout_p * 4 + MIB)
        if (not force_tiled) and resident_ws <= RESIDENT_BUDGET:
            y = conv_bn_relu_resident(patches, w_mat, gamma_p, beta_p, m,
                                      compute_dtype, tm_cap=tm_resident)
        else:
            y = conv_bn_relu_tiled(patches, w_mat, gamma_p, beta_p, m,
                                   compute_dtype, tm_cap=tm_tiled)
        if m_pad != m:
            y = y[:m]
        # Stay channel-padded between layers: the un-pad is folded into the
        # next im2col (and into the padded fc1 weight for the head); padded
        # channels are exactly zero (zero weights, gamma = beta = 0).
        x = y.reshape(n, ho, wo, cout_p)
    x_flat = x.reshape(n, -1)          # channel-padded NHWC flatten, bf16
    w1_p, b1_p, w2_p, b2_p = head_k
    return head(x_flat, w1_p, b1_p, w2_p, b2_p)    # (N, 1)


# pure-JAX reference (mirrors the PyTorch discriminator forward)
def reference_forward(x_nchw, params, layer_count=3):
    x = x_nchw.astype(jnp.float32)
    for i in range(layer_count):
        w, b, gamma, beta = params["conv"][i]
        x = jax.lax.conv_general_dilated(
            x, w, (2, 2), ((1, 1), (1, 1)),
            dimension_numbers=("NCHW", "OIHW", "NCHW"))
        x = x + b[None, :, None, None]
        mean = x.mean(axis=(0, 2, 3), keepdims=True)
        var = jnp.square(x - mean).mean(axis=(0, 2, 3), keepdims=True)
        x = (x - mean) * jax.lax.rsqrt(var + BN_EPS)
        x = x * gamma[None, :, None, None] + beta[None, :, None, None]
        x = jnp.maximum(x, 0.0)
    xf = x.reshape(x.shape[0], -1)
    w1, b1, w2, b2 = params["fc"]
    h = xf @ w1.T + b1
    y = h @ w2.T + b2
    return jax.nn.sigmoid(y)


if __name__ == "__main__":
    # small config: zsize=32, layer_count=3, channels=3, filter_base=16
    # => spatial must be 4 * 2^3 = 32 so the final feature map is 4x4.
    zsize, layer_count, channels, filter_base = 32, 3, 3, 16
    batch = 2
    spatial = 4 * (2 ** layer_count)

    key = jax.random.PRNGKey(0)
    kx, kprm = jax.random.split(key)
    x = jax.random.normal(kx, (batch, channels, spatial, spatial), jnp.float32)
    params = make_params(kprm, zsize, layer_count, channels, filter_base)

    ref = reference_forward(x, params, layer_count=layer_count)

    # 1) f32 MXU operands, y-resident single-call conv path.
    ck32, hk32, meta = prep_params(params, layer_count, jnp.float32)
    out_f32 = discriminator_forward(x, ck32, hk32, meta=meta,
                                    layer_count=layer_count,
                                    compute_dtype=jnp.float32)
    out_f32 = jax.block_until_ready(out_f32)
    assert out_f32.shape == (batch, 1)
    assert jnp.allclose(out_f32, ref, atol=1e-4, rtol=1e-4), (out_f32, ref)

    # 2) f32, forced two-pass tiled fallback with small tiles (exercises the
    #    gridded stat accumulation + decoupled bn_relu tiling).
    out_tiled = discriminator_forward(x, ck32, hk32, meta=meta,
                                      layer_count=layer_count,
                                      compute_dtype=jnp.float32,
                                      force_tiled=True, tm_tiled=64)
    out_tiled = jax.block_until_ready(out_tiled)
    assert jnp.allclose(out_tiled, ref, atol=1e-4, rtol=1e-4), (out_tiled, ref)

    # 3) bf16 compute dtype (recommended on v5e/v6e/v7x): bf16 MXU operands
    #    and bf16 inter-layer activations, f32 accumulation and BN math.
    ckbf, hkbf, meta_bf = prep_params(params, layer_count, jnp.bfloat16)
    out_bf16 = discriminator_forward(x, ckbf, hkbf, meta=meta_bf,
                                     layer_count=layer_count,
                                     compute_dtype=jnp.bfloat16)
    out_bf16 = jax.block_until_ready(out_bf16)
    assert jnp.allclose(out_bf16, ref, atol=3e-2, rtol=0.0), (out_bf16, ref)

    print("KERNEL_OK")
</pallas_src>

<mosaic_0001>
module attributes {stable_mosaic.version = 11 : i64} {
  func.func @conv_bn_relu_resident_kernel(%arg0: i32, %arg1: i32, %arg2: memref<256x128xf32, #tpu.memory_space<vmem>>, %arg3: memref<128x128xf32, #tpu.memory_space<vmem>>, %arg4: memref<1x128xf32, #tpu.memory_space<vmem>>, %arg5: memref<1x128xf32, #tpu.memory_space<vmem>>, %arg6: memref<256x128xf32, #tpu.memory_space<vmem>>, %arg7: memref<2x256x128xf32, #tpu.memory_space<vmem>>, %arg8: memref<1x128xf32, #tpu.memory_space<vmem>>, %arg9: memref<1x128xf32, #tpu.memory_space<vmem>>, %arg10: memref<1x128xf32, #tpu.memory_space<vmem>>, %arg11: memref<1x128xf32, #tpu.memory_space<vmem>>) attributes {dimension_semantics = [#tpu.dimension_semantics<arbitrary>, #tpu.dimension_semantics<arbitrary>], iteration_bounds = array<i64: 2, 2>, scalar_prefetch = 0 : i64, scratch_operands = 5 : i64, tpu.core_type = #tpu.core_type<tc>, window_params = [{transform_indices = @transform_0, window_bounds = array<i64: 256, 128>}, {pipeline_mode = #tpu.pipeline_mode<synchronous>, transform_indices = @transform_1, window_bounds = array<i64: 128, 128>}, {pipeline_mode = #tpu.pipeline_mode<synchronous>, transform_indices = @transform_2, window_bounds = array<i64: 1, 128>}, {pipeline_mode = #tpu.pipeline_mode<synchronous>, transform_indices = @transform_3, window_bounds = array<i64: 1, 128>}, {transform_indices = @transform_4, window_bounds = array<i64: 256, 128>}]} {
    %c0_i32 = arith.constant 0 : i32
    %0 = arith.cmpi eq, %arg0, %c0_i32 : i32
    %1 = arith.extui %0 : i1 to i32
    %c0_i32_0 = arith.constant 0 : i32
    %2 = arith.cmpi ne, %1, %c0_i32_0 : i32
    scf.if %2 {
      %c0 = arith.constant 0 : index
      %c0_5 = arith.constant 0 : index
      %11 = vector.load %arg2[%c0, %c0_5] : memref<256x128xf32, #tpu.memory_space<vmem>>, vector<256x128xf32>
      %c0_6 = arith.constant 0 : index
      %c0_7 = arith.constant 0 : index
      %12 = vector.load %arg3[%c0_6, %c0_7] : memref<128x128xf32, #tpu.memory_space<vmem>>, vector<128x128xf32>
      %cst = arith.constant dense<0.000000e+00> : vector<256x128xf32>
      %13 = tpu.matmul %11, %12, %cst {dimension_numbers = #tpu.dot_dimension_numbers<[1], [0], [0], [1], [0, 0, 1, 1], [], []>} : vector<256x128xf32>, vector<128x128xf32>, vector<256x128xf32> -> vector<256x128xf32>
      %14 = arith.index_cast %arg1 : i32 to index
      %c0_8 = arith.constant 0 : index
      %c0_9 = arith.constant 0 : index
      %15 = vector.load %arg7[%14, %c0_8, %c0_9] : memref<2x256x128xf32, #tpu.memory_space<vmem>>, vector<1x256x128xf32>
      %16 = vector.shape_cast %15 : vector<1x256x128xf32> to vector<256x128xf32>
      %17 = vector.shape_cast %13 : vector<256x128xf32> to vector<1x256x128xf32>
      tpu.vector_store %arg7[%14, %c0_8, %c0_9], %17 {strides = array<i32>} : memref<2x256x128xf32, #tpu.memory_space<vmem>>, vector<1x256x128xf32>,
      %cst_10 = arith.constant dense<0.000000e+00> : vector<128xf32>
      %18 = vector.multi_reduction <add>, %13, %cst_10 [0] : vector<256x128xf32> to vector<128xf32>
      %19 = vector.shape_cast %18 : vector<128xf32> to vector<1x128xf32>
      %20 = arith.mulf %13, %13 : vector<256x128xf32>
      %cst_11 = arith.constant dense<0.000000e+00> : vector<128xf32>
      %21 = vector.multi_reduction <add>, %20, %cst_11 [0] : vector<256x128xf32> to vector<128xf32>
      %22 = vector.shape_cast %21 : vector<128xf32> to vector<1x128xf32>
      %c0_i32_12 = arith.constant 0 : i32
      %23 = arith.cmpi eq, %arg1, %c0_i32_12 : i32
      %24 = arith.extui %23 : i1 to i32
      %c0_i32_13 = arith.constant 0 : i32
      %25 = arith.cmpi ne, %24, %c0_i32_13 : i32
      scf.if %25 {
        %c0_16 = arith.constant 0 : index
        %c0_17 = arith.constant 0 : index
        %29 = vector.load %arg8[%c0_16, %c0_17] : memref<1x128xf32, #tpu.memory_space<vmem>>, vector<1x128xf32>
        tpu.vector_store %arg8[%c0_16, %c0_17], %19 {strides = array<i32>} : memref<1x128xf32, #tpu.memory_space<vmem>>, vector<1x128xf32>,
        %c0_18 = arith.constant 0 : index
        %c0_19 = arith.constant 0 : index
        %30 = vector.load %arg9[%c0_18, %c0_19] : memref<1x128xf32, #tpu.memory_space<vmem>>, vector<1x128xf32>
        tpu.vector_store %arg9[%c0_18, %c0_19], %22 {strides = array<i32>} : memref<1x128xf32, #tpu.memory_space<vmem>>, vector<1x128xf32>,
      } else {
      }
      %c0_i32_14 = arith.constant 0 : i32
      %26 = arith.cmpi ne, %arg1, %c0_i32_14 : i32
      %27 = arith.extui %26 : i1 to i32
      %c0_i32_15 = arith.constant 0 : i32
      %28 = arith.cmpi ne, %27, %c0_i32_15 : i32
      scf.if %28 {
        %c0_16 = arith.constant 0 : index
        %c0_17 = arith.constant 0 : index
        %29 = vector.load %arg8[%c0_16, %c0_17] : memref<1x128xf32, #tpu.memory_space<vmem>>, vector<1x128xf32>
        %30 = arith.addf %29, %19 : vector<1x128xf32>
        %c0_18 = arith.constant 0 : index
        %c0_19 = arith.constant 0 : index
        %31 = vector.load %arg8[%c0_18, %c0_19] : memref<1x128xf32, #tpu.memory_space<vmem>>, vector<1x128xf32>
        tpu.vector_store %arg8[%c0_18, %c0_19], %30 {strides = array<i32>} : memref<1x128xf32, #tpu.memory_space<vmem>>, vector<1x128xf32>,
        %c0_20 = arith.constant 0 : index
        %c0_21 = arith.constant 0 : index
        %32 = vector.load %arg9[%c0_20, %c0_21] : memref<1x128xf32, #tpu.memory_space<vmem>>, vector<1x128xf32>
        %33 = arith.addf %32, %22 : vector<1x128xf32>
        %c0_22 = arith.constant 0 : index
        %c0_23 = arith.constant 0 : index
        %34 = vector.load %arg9[%c0_22, %c0_23] : memref<1x128xf32, #tpu.memory_space<vmem>>, vector<1x128xf32>
        tpu.vector_store %arg9[%c0_22, %c0_23], %33 {strides = array<i32>} : memref<1x128xf32, #tpu.memory_space<vmem>>, vector<1x128xf32>,
      } else {
      }
    } else {
    }
    %c1_i32 = arith.constant 1 : i32
    %3 = arith.cmpi eq, %arg0, %c1_i32 : i32
    %c0_i32_1 = arith.constant 0 : i32
    %4 = arith.cmpi eq, %arg1, %c0_i32_1 : i32
    %5 = arith.andi %3, %4 : i1
    %6 = arith.extui %5 : i1 to i32
    %c0_i32_2 = arith.constant 0 : i32
    %7 = arith.cmpi ne, %6, %c0_i32_2 : i32
    scf.if %7 {
      %c0 = arith.constant 0 : index
      %c0_5 = arith.constant 0 : index
      %11 = vector.load %arg8[%c0, %c0_5] : memref<1x128xf32, #tpu.memory_space<vmem>>, vector<1x128xf32>
      %cst = arith.constant 0.001953125 : f32
      %12 = vector.broadcast %cst : f32 to vector<1x128xf32>
      %13 = arith.mulf %11, %12 : vector<1x128xf32>
      %c0_6 = arith.constant 0 : index
      %c0_7 = arith.constant 0 : index
      %14 = vector.load %arg9[%c0_6, %c0_7] : memref<1x128xf32, #tpu.memory_space<vmem>>, vector<1x128xf32>
      %cst_8 = arith.constant 0.001953125 : f32
      %15 = vector.broadcast %cst_8 : f32 to vector<1x128xf32>
      %16 = arith.mulf %14, %15 : vector<1x128xf32>
      %17 = arith.mulf %13, %13 : vector<1x128xf32>
      %18 = arith.subf %16, %17 : vector<1x128xf32>
      %cst_9 = arith.constant 0.000000e+00 : f32
      %19 = vector.broadcast %cst_9 : f32 to vector<1x128xf32>
      %20 = arith.maximumf %18, %19 : vector<1x128xf32>
      %cst_10 = arith.constant 9.99999974E-6 : f32
      %21 = vector.broadcast %cst_10 : f32 to vector<1x128xf32>
      %22 = arith.addf %20, %21 : vector<1x128xf32>
      %23 = math.rsqrt %22 : vector<1x128xf32>
      %c0_11 = arith.constant 0 : index
      %c0_12 = arith.constant 0 : index
      %24 = vector.load %arg4[%c0_11, %c0_12] : memref<1x128xf32, #tpu.memory_space<vmem>>, vector<1x128xf32>
      %25 = arith.mulf %24, %23 : vector<1x128xf32>
      %c0_13 = arith.constant 0 : index
      %c0_14 = arith.constant 0 : index
      %26 = vector.load %arg10[%c0_13, %c0_14] : memref<1x128xf32, #tpu.memory_space<vmem>>, vector<1x128xf32>
      tpu.vector_store %arg10[%c0_13, %c0_14], %25 {strides = array<i32>} : memref<1x128xf32, #tpu.memory_space<vmem>>, vector<1x128xf32>,
      %c0_15 = arith.constant 0 : index
      %c0_16 = arith.constant 0 : index
      %27 = vector.load %arg5[%c0_15, %c0_16] : memref<1x128xf32, #tpu.memory_space<vmem>>, vector<1x128xf32>
      %28 = arith.mulf %13, %25 : vector<1x128xf32>
      %29 = arith.subf %27, %28 : vector<1x128xf32>
      %c0_17 = arith.constant 0 : index
      %c0_18 = arith.constant 0 : index
      %30 = vector.load %arg11[%c0_17, %c0_18] : memref<1x128xf32, #tpu.memory_space<vmem>>, vector<1x128xf32>
      tpu.vector_store %arg11[%c0_17, %c0_18], %29 {strides = array<i32>} : memref<1x128xf32, #tpu.memory_space<vmem>>, vector<1x128xf32>,
    } else {
    }
    %c1_i32_3 = arith.constant 1 : i32
    %8 = arith.cmpi eq, %arg0, %c1_i32_3 : i32
    %9 = arith.extui %8 : i1 to i32
    %c0_i32_4 = arith.constant 0 : i32
    %10 = arith.cmpi ne, %9, %c0_i32_4 : i32
    scf.if %10 {
      %11 = arith.index_cast %arg1 : i32 to index
      %c0 = arith.constant 0 : index
      %c0_5 = arith.constant 0 : index
      %12 = vector.load %arg7[%11, %c0, %c0_5] : memref<2x256x128xf32, #tpu.memory_space<vmem>>, vector<1x256x128xf32>
      %13 = vector.shape_cast %12 : vector<1x256x128xf32> to vector<256x128xf32>
      %c0_6 = arith.constant 0 : index
      %c0_7 = arith.constant 0 : index
      %14 = vector.load %arg10[%c0_6, %c0_7] : memref<1x128xf32, #tpu.memory_space<vmem>>, vector<1x128xf32>
      %15 = vector.broadcast %14 : vector<1x128xf32> to vector<256x128xf32>
      %16 = arith.mulf %13, %15 : vector<256x128xf32>
      %c0_8 = arith.constant 0 : index
      %c0_9 = arith.constant 0 : index
      %17 = vector.load %arg11[%c0_8, %c0_9] : memref<1x128xf32, #tpu.memory_space<vmem>>, vector<1x128xf32>
      %18 = vector.broadcast %17 : vector<1x128xf32> to vector<256x128xf32>
      %19 = arith.addf %16, %18 : vector<256x128xf32>
      %cst = arith.constant 0.000000e+00 : f32
      %20 = vector.broadcast %cst : f32 to vector<256x128xf32>
      %21 = arith.maximumf %19, %20 : vector<256x128xf32>
      %c0_10 = arith.constant 0 : index
      %c0_11 = arith.constant 0 : index
      %22 = vector.load %arg6[%c0_10, %c0_11] : memref<256x128xf32, #tpu.memory_space<vmem>>, vector<256x128xf32>
      tpu.vector_store %arg6[%c0_10, %c0_11], %21 {strides = array<i32>} : memref<256x128xf32, #tpu.memory_space<vmem>>, vector<256x128xf32>,
    } else {
    }
    return
  }
  func.func @transform_0(%arg0: i32, %arg1: i32) -> (i32, i32) {
    %c1_i32 = arith.constant 1 : i32
    %0 = arith.subi %c1_i32, %arg0 : i32
    %1 = arith.muli %arg1, %0 : i32
    %c1_i32_0 = arith.constant 1 : i32
    %2 = arith.muli %c1_i32_0, %arg0 : i32
    %3 = arith.addi %1, %2 : i32
    %c0_i32 = arith.constant 0 : i32
    %c0_i32_1 = arith.constant 0 : i32
    return %3, %c0_i32 : i32, i32
  }
  func.func @transform_1(%arg0: i32, %arg1: i32) -> (i32, i32) {
    %c0_i32 = arith.constant 0 : i32
    %c0_i32_0 = arith.constant 0 : i32
    %c0_i32_1 = arith.constant 0 : i32
    return %c0_i32, %c0_i32_0 : i32, i32
  }
  func.func @transform_2(%arg0: i32, %arg1: i32) -> (i32, i32) {
    %c0_i32 = arith.constant 0 : i32
    %c0_i32_0 = arith.constant 0 : i32
    %c0_i32_1 = arith.constant 0 : i32
    return %c0_i32, %c0_i32_0 : i32, i32
  }
  func.func @transform_3(%arg0: i32, %arg1: i32) -> (i32, i32) {
    %c0_i32 = arith.constant 0 : i32
    %c0_i32_0 = arith.constant 0 : i32
    %c0_i32_1 = arith.constant 0 : i32
    return %c0_i32, %c0_i32_0 : i32, i32
  }
  func.func @transform_4(%arg0: i32, %arg1: i32) -> (i32, i32) {
    %0 = arith.muli %arg1, %arg0 : i32
    %c0_i32 = arith.constant 0 : i32
    %c0_i32_0 = arith.constant 0 : i32
    return %0, %c0_i32 : i32, i32
  }
}

module attributes {stable_mosaic.version = 11 : i64} {
  func.func @conv_bn_relu_resident_kernel(%arg0: i32, %arg1: i32, %arg2: memref<128x256xf32, #tpu.memory_space<vmem>>, %arg3: memref<256x128xf32, #tpu.memory_space<vmem>>, %arg4: memref<1x128xf32, #tpu.memory_space<vmem>>, %arg5: memref<1x128xf32, #tpu.memory_space<vmem>>, %arg6: memref<128x128xf32, #tpu.memory_space<vmem>>, %arg7: memref<1x128x128xf32, #tpu.memory_space<vmem>>, %arg8: memref<1x128xf32, #tpu.memory_space<vmem>>, %arg9: memref<1x128xf32, #tpu.memory_space<vmem>>, %arg10: memref<1x128xf32, #tpu.memory_space<vmem>>, %arg11: memref<1x128xf32, #tpu.memory_space<vmem>>) attributes {dimension_semantics = [#tpu.dimension_semantics<arbitrary>, #tpu.dimension_semantics<arbitrary>], iteration_bounds = array<i64: 2, 1>, scalar_prefetch = 0 : i64, scratch_operands = 5 : i64, tpu.core_type = #tpu.core_type<tc>, window_params = [{transform_indices = @transform_0, window_bounds = array<i64: 128, 256>}, {pipeline_mode = #tpu.pipeline_mode<synchronous>, transform_indices = @transform_1, window_bounds = array<i64: 256, 128>}, {pipeline_mode = #tpu.pipeline_mode<synchronous>, transform_indices = @transform_2, window_bounds = array<i64: 1, 128>}, {pipeline_mode = #tpu.pipeline_mode<synchronous>, transform_indices = @transform_3, window_bounds = array<i64: 1, 128>}, {transform_indices = @transform_4, window_bounds = array<i64: 128, 128>}]} {
    %c0_i32 = arith.constant 0 : i32
    %0 = arith.cmpi eq, %arg0, %c0_i32 : i32
    %1 = arith.extui %0 : i1 to i32
    %c0_i32_0 = arith.constant 0 : i32
    %2 = arith.cmpi ne, %1, %c0_i32_0 : i32
    scf.if %2 {
      %c0 = arith.constant 0 : index
      %c0_5 = arith.constant 0 : index
      %11 = vector.load %arg2[%c0, %c0_5] : memref<128x256xf32, #tpu.memory_space<vmem>>, vector<128x256xf32>
      %c0_6 = arith.constant 0 : index
      %c0_7 = arith.constant 0 : index
      %12 = vector.load %arg3[%c0_6, %c0_7] : memref<256x128xf32, #tpu.memory_space<vmem>>, vector<256x128xf32>
      %cst = arith.constant dense<0.000000e+00> : vector<128x128xf32>
      %13 = tpu.matmul %11, %12, %cst {dimension_numbers = #tpu.dot_dimension_numbers<[1], [0], [0], [1], [0, 0, 1, 1], [], []>} : vector<128x256xf32>, vector<256x128xf32>, vector<128x128xf32> -> vector<128x128xf32>
      %14 = arith.index_cast %arg1 : i32 to index
      %c0_8 = arith.constant 0 : index
      %c0_9 = arith.constant 0 : index
      %15 = vector.load %arg7[%14, %c0_8, %c0_9] : memref<1x128x128xf32, #tpu.memory_space<vmem>>, vector<1x128x128xf32>
      %16 = vector.shape_cast %15 : vector<1x128x128xf32> to vector<128x128xf32>
      %17 = vector.shape_cast %13 : vector<128x128xf32> to vector<1x128x128xf32>
      tpu.vector_store %arg7[%14, %c0_8, %c0_9], %17 {strides = array<i32>} : memref<1x128x128xf32, #tpu.memory_space<vmem>>, vector<1x128x128xf32>,
      %cst_10 = arith.constant dense<0.000000e+00> : vector<128xf32>
      %18 = vector.multi_reduction <add>, %13, %cst_10 [0] : vector<128x128xf32> to vector<128xf32>
      %19 = vector.shape_cast %18 : vector<128xf32> to vector<1x128xf32>
      %20 = arith.mulf %13, %13 : vector<128x128xf32>
      %cst_11 = arith.constant dense<0.000000e+00> : vector<128xf32>
      %21 = vector.multi_reduction <add>, %20, %cst_11 [0] : vector<128x128xf32> to vector<128xf32>
      %22 = vector.shape_cast %21 : vector<128xf32> to vector<1x128xf32>
      %c0_i32_12 = arith.constant 0 : i32
      %23 = arith.cmpi eq, %arg1, %c0_i32_12 : i32
      %24 = arith.extui %23 : i1 to i32
      %c0_i32_13 = arith.constant 0 : i32
      %25 = arith.cmpi ne, %24, %c0_i32_13 : i32
      scf.if %25 {
        %c0_16 = arith.constant 0 : index
        %c0_17 = arith.constant 0 : index
        %29 = vector.load %arg8[%c0_16, %c0_17] : memref<1x128xf32, #tpu.memory_space<vmem>>, vector<1x128xf32>
        tpu.vector_store %arg8[%c0_16, %c0_17], %19 {strides = array<i32>} : memref<1x128xf32, #tpu.memory_space<vmem>>, vector<1x128xf32>,
        %c0_18 = arith.constant 0 : index
        %c0_19 = arith.constant 0 : index
        %30 = vector.load %arg9[%c0_18, %c0_19] : memref<1x128xf32, #tpu.memory_space<vmem>>, vector<1x128xf32>
        tpu.vector_store %arg9[%c0_18, %c0_19], %22 {strides = array<i32>} : memref<1x128xf32, #tpu.memory_space<vmem>>, vector<1x128xf32>,
      } else {
      }
      %c0_i32_14 = arith.constant 0 : i32
      %26 = arith.cmpi ne, %arg1, %c0_i32_14 : i32
      %27 = arith.extui %26 : i1 to i32
      %c0_i32_15 = arith.constant 0 : i32
      %28 = arith.cmpi ne, %27, %c0_i32_15 : i32
      scf.if %28 {
        %c0_16 = arith.constant 0 : index
        %c0_17 = arith.constant 0 : index
        %29 = vector.load %arg8[%c0_16, %c0_17] : memref<1x128xf32, #tpu.memory_space<vmem>>, vector<1x128xf32>
        %30 = arith.addf %29, %19 : vector<1x128xf32>
        %c0_18 = arith.constant 0 : index
        %c0_19 = arith.constant 0 : index
        %31 = vector.load %arg8[%c0_18, %c0_19] : memref<1x128xf32, #tpu.memory_space<vmem>>, vector<1x128xf32>
        tpu.vector_store %arg8[%c0_18, %c0_19], %30 {strides = array<i32>} : memref<1x128xf32, #tpu.memory_space<vmem>>, vector<1x128xf32>,
        %c0_20 = arith.constant 0 : index
        %c0_21 = arith.constant 0 : index
        %32 = vector.load %arg9[%c0_20, %c0_21] : memref<1x128xf32, #tpu.memory_space<vmem>>, vector<1x128xf32>
        %33 = arith.addf %32, %22 : vector<1x128xf32>
        %c0_22 = arith.constant 0 : index
        %c0_23 = arith.constant 0 : index
        %34 = vector.load %arg9[%c0_22, %c0_23] : memref<1x128xf32, #tpu.memory_space<vmem>>, vector<1x128xf32>
        tpu.vector_store %arg9[%c0_22, %c0_23], %33 {strides = array<i32>} : memref<1x128xf32, #tpu.memory_space<vmem>>, vector<1x128xf32>,
      } else {
      }
    } else {
    }
    %c1_i32 = arith.constant 1 : i32
    %3 = arith.cmpi eq, %arg0, %c1_i32 : i32
    %c0_i32_1 = arith.constant 0 : i32
    %4 = arith.cmpi eq, %arg1, %c0_i32_1 : i32
    %5 = arith.andi %3, %4 : i1
    %6 = arith.extui %5 : i1 to i32
    %c0_i32_2 = arith.constant 0 : i32
    %7 = arith.cmpi ne, %6, %c0_i32_2 : i32
    scf.if %7 {
      %c0 = arith.constant 0 : index
      %c0_5 = arith.constant 0 : index
      %11 = vector.load %arg8[%c0, %c0_5] : memref<1x128xf32, #tpu.memory_space<vmem>>, vector<1x128xf32>
      %cst = arith.constant 7.812500e-03 : f32
      %12 = vector.broadcast %cst : f32 to vector<1x128xf32>
      %13 = arith.mulf %11, %12 : vector<1x128xf32>
      %c0_6 = arith.constant 0 : index
      %c0_7 = arith.constant 0 : index
      %14 = vector.load %arg9[%c0_6, %c0_7] : memref<1x128xf32, #tpu.memory_space<vmem>>, vector<1x128xf32>
      %cst_8 = arith.constant 7.812500e-03 : f32
      %15 = vector.broadcast %cst_8 : f32 to vector<1x128xf32>
      %16 = arith.mulf %14, %15 : vector<1x128xf32>
      %17 = arith.mulf %13, %13 : vector<1x128xf32>
      %18 = arith.subf %16, %17 : vector<1x128xf32>
      %cst_9 = arith.constant 0.000000e+00 : f32
      %19 = vector.broadcast %cst_9 : f32 to vector<1x128xf32>
      %20 = arith.maximumf %18, %19 : vector<1x128xf32>
      %cst_10 = arith.constant 9.99999974E-6 : f32
      %21 = vector.broadcast %cst_10 : f32 to vector<1x128xf32>
      %22 = arith.addf %20, %21 : vector<1x128xf32>
      %23 = math.rsqrt %22 : vector<1x128xf32>
      %c0_11 = arith.constant 0 : index
      %c0_12 = arith.constant 0 : index
      %24 = vector.load %arg4[%c0_11, %c0_12] : memref<1x128xf32, #tpu.memory_space<vmem>>, vector<1x128xf32>
      %25 = arith.mulf %24, %23 : vector<1x128xf32>
      %c0_13 = arith.constant 0 : index
      %c0_14 = arith.constant 0 : index
      %26 = vector.load %arg10[%c0_13, %c0_14] : memref<1x128xf32, #tpu.memory_space<vmem>>, vector<1x128xf32>
      tpu.vector_store %arg10[%c0_13, %c0_14], %25 {strides = array<i32>} : memref<1x128xf32, #tpu.memory_space<vmem>>, vector<1x128xf32>,
      %c0_15 = arith.constant 0 : index
      %c0_16 = arith.constant 0 : index
      %27 = vector.load %arg5[%c0_15, %c0_16] : memref<1x128xf32, #tpu.memory_space<vmem>>, vector<1x128xf32>
      %28 = arith.mulf %13, %25 : vector<1x128xf32>
      %29 = arith.subf %27, %28 : vector<1x128xf32>
      %c0_17 = arith.constant 0 : index
      %c0_18 = arith.constant 0 : index
      %30 = vector.load %arg11[%c0_17, %c0_18] : memref<1x128xf32, #tpu.memory_space<vmem>>, vector<1x128xf32>
      tpu.vector_store %arg11[%c0_17, %c0_18], %29 {strides = array<i32>} : memref<1x128xf32, #tpu.memory_space<vmem>>, vector<1x128xf32>,
    } else {
    }
    %c1_i32_3 = arith.constant 1 : i32
    %8 = arith.cmpi eq, %arg0, %c1_i32_3 : i32
    %9 = arith.extui %8 : i1 to i32
    %c0_i32_4 = arith.constant 0 : i32
    %10 = arith.cmpi ne, %9, %c0_i32_4 : i32
    scf.if %10 {
      %11 = arith.index_cast %arg1 : i32 to index
      %c0 = arith.constant 0 : index
      %c0_5 = arith.constant 0 : index
      %12 = vector.load %arg7[%11, %c0, %c0_5] : memref<1x128x128xf32, #tpu.memory_space<vmem>>, vector<1x128x128xf32>
      %13 = vector.shape_cast %12 : vector<1x128x128xf32> to vector<128x128xf32>
      %c0_6 = arith.constant 0 : index
      %c0_7 = arith.constant 0 : index
      %14 = vector.load %arg10[%c0_6, %c0_7] : memref<1x128xf32, #tpu.memory_space<vmem>>, vector<1x128xf32>
      %15 = vector.broadcast %14 : vector<1x128xf32> to vector<128x128xf32>
      %16 = arith.mulf %13, %15 : vector<128x128xf32>
      %c0_8 = arith.constant 0 : index
      %c0_9 = arith.constant 0 : index
      %17 = vector.load %arg11[%c0_8, %c0_9] : memref<1x128xf32, #tpu.memory_space<vmem>>, vector<1x128xf32>
      %18 = vector.broadcast %17 : vector<1x128xf32> to vector<128x128xf32>
      %19 = arith.addf %16, %18 : vector<128x128xf32>
      %cst = arith.constant 0.000000e+00 : f32
      %20 = vector.broadcast %cst : f32 to vector<128x128xf32>
      %21 = arith.maximumf %19, %20 : vector<128x128xf32>
      %c0_10 = arith.constant 0 : index
      %c0_11 = arith.constant 0 : index
      %22 = vector.load %arg6[%c0_10, %c0_11] : memref<128x128xf32, #tpu.memory_space<vmem>>, vector<128x128xf32>
      tpu.vector_store %arg6[%c0_10, %c0_11], %21 {strides = array<i32>} : memref<128x128xf32, #tpu.memory_space<vmem>>, vector<128x128xf32>,
    } else {
    }
    return
  }
  func.func @transform_0(%arg0: i32, %arg1: i32) -> (i32, i32) {
    %c1_i32 = arith.constant 1 : i32
    %0 = arith.subi %c1_i32, %arg0 : i32
    %1 = arith.muli %arg1, %0 : i32
    %c0_i32 = arith.constant 0 : i32
    %2 = arith.muli %c0_i32, %arg0 : i32
    %3 = arith.addi %1, %2 : i32
    %c0_i32_0 = arith.constant 0 : i32
    %c0_i32_1 = arith.constant 0 : i32
    return %3, %c0_i32_0 : i32, i32
  }
  func.func @transform_1(%arg0: i32, %arg1: i32) -> (i32, i32) {
    %c0_i32 = arith.constant 0 : i32
    %c0_i32_0 = arith.constant 0 : i32
    %c0_i32_1 = arith.constant 0 : i32
    return %c0_i32, %c0_i32_0 : i32, i32
  }
  func.func @transform_2(%arg0: i32, %arg1: i32) -> (i32, i32) {
    %c0_i32 = arith.constant 0 : i32
    %c0_i32_0 = arith.constant 0 : i32
    %c0_i32_1 = arith.constant 0 : i32
    return %c0_i32, %c0_i32_0 : i32, i32
  }
  func.func @transform_3(%arg0: i32, %arg1: i32) -> (i32, i32) {
    %c0_i32 = arith.constant 0 : i32
    %c0_i32_0 = arith.constant 0 : i32
    %c0_i32_1 = arith.constant 0 : i32
    return %c0_i32, %c0_i32_0 : i32, i32
  }
  func.func @transform_4(%arg0: i32, %arg1: i32) -> (i32, i32) {
    %0 = arith.muli %arg1, %arg0 : i32
    %c0_i32 = arith.constant 0 : i32
    %c0_i32_0 = arith.constant 0 : i32
    return %0, %c0_i32 : i32, i32
  }
}

module attributes {stable_mosaic.version = 11 : i64} {
  func.func @conv_bn_relu_resident_kernel(%arg0: i32, %arg1: i32, %arg2: memref<32x512xf32, #tpu.memory_space<vmem>>, %arg3: memref<512x128xf32, #tpu.memory_space<vmem>>, %arg4: memref<1x128xf32, #tpu.memory_space<vmem>>, %arg5: memref<1x128xf32, #tpu.memory_space<vmem>>, %arg6: memref<32x128xf32, #tpu.memory_space<vmem>>, %arg7: memref<1x32x128xf32, #tpu.memory_space<vmem>>, %arg8: memref<1x128xf32, #tpu.memory_space<vmem>>, %arg9: memref<1x128xf32, #tpu.memory_space<vmem>>, %arg10: memref<1x128xf32, #tpu.memory_space<vmem>>, %arg11: memref<1x128xf32, #tpu.memory_space<vmem>>) attributes {dimension_semantics = [#tpu.dimension_semantics<arbitrary>, #tpu.dimension_semantics<arbitrary>], iteration_bounds = array<i64: 2, 1>, scalar_prefetch = 0 : i64, scratch_operands = 5 : i64, tpu.core_type = #tpu.core_type<tc>, window_params = [{transform_indices = @transform_0, window_bounds = array<i64: 32, 512>}, {pipeline_mode = #tpu.pipeline_mode<synchronous>, transform_indices = @transform_1, window_bounds = array<i64: 512, 128>}, {pipeline_mode = #tpu.pipeline_mode<synchronous>, transform_indices = @transform_2, window_bounds = array<i64: 1, 128>}, {pipeline_mode = #tpu.pipeline_mode<synchronous>, transform_indices = @transform_3, window_bounds = array<i64: 1, 128>}, {transform_indices = @transform_4, window_bounds = array<i64: 32, 128>}]} {
    %c0_i32 = arith.constant 0 : i32
    %0 = arith.cmpi eq, %arg0, %c0_i32 : i32
    %1 = arith.extui %0 : i1 to i32
    %c0_i32_0 = arith.constant 0 : i32
    %2 = arith.cmpi ne, %1, %c0_i32_0 : i32
    scf.if %2 {
      %c0 = arith.constant 0 : index
      %c0_5 = arith.constant 0 : index
      %11 = vector.load %arg2[%c0, %c0_5] : memref<32x512xf32, #tpu.memory_space<vmem>>, vector<32x512xf32>
      %c0_6 = arith.constant 0 : index
      %c0_7 = arith.constant 0 : index
      %12 = vector.load %arg3[%c0_6, %c0_7] : memref<512x128xf32, #tpu.memory_space<vmem>>, vector<512x128xf32>
      %cst = arith.constant dense<0.000000e+00> : vector<32x128xf32>
      %13 = tpu.matmul %11, %12, %cst {dimension_numbers = #tpu.dot_dimension_numbers<[1], [0], [0], [1], [0, 0, 1, 1], [], []>} : vector<32x512xf32>, vector<512x128xf32>, vector<32x128xf32> -> vector<32x128xf32>
      %14 = arith.index_cast %arg1 : i32 to index
      %c0_8 = arith.constant 0 : index
      %c0_9 = arith.constant 0 : index
      %15 = vector.load %arg7[%14, %c0_8, %c0_9] : memref<1x32x128xf32, #tpu.memory_space<vmem>>, vector<1x32x128xf32>
      %16 = vector.shape_cast %15 : vector<1x32x128xf32> to vector<32x128xf32>
      %17 = vector.shape_cast %13 : vector<32x128xf32> to vector<1x32x128xf32>
      tpu.vector_store %arg7[%14, %c0_8, %c0_9], %17 {strides = array<i32>} : memref<1x32x128xf32, #tpu.memory_space<vmem>>, vector<1x32x128xf32>,
      %cst_10 = arith.constant dense<0.000000e+00> : vector<128xf32>
      %18 = vector.multi_reduction <add>, %13, %cst_10 [0] : vector<32x128xf32> to vector<128xf32>
      %19 = vector.shape_cast %18 : vector<128xf32> to vector<1x128xf32>
      %20 = arith.mulf %13, %13 : vector<32x128xf32>
      %cst_11 = arith.constant dense<0.000000e+00> : vector<128xf32>
      %21 = vector.multi_reduction <add>, %20, %cst_11 [0] : vector<32x128xf32> to vector<128xf32>
      %22 = vector.shape_cast %21 : vector<128xf32> to vector<1x128xf32>
      %c0_i32_12 = arith.constant 0 : i32
      %23 = arith.cmpi eq, %arg1, %c0_i32_12 : i32
      %24 = arith.extui %23 : i1 to i32
      %c0_i32_13 = arith.constant 0 : i32
      %25 = arith.cmpi ne, %24, %c0_i32_13 : i32
      scf.if %25 {
        %c0_16 = arith.constant 0 : index
        %c0_17 = arith.constant 0 : index
        %29 = vector.load %arg8[%c0_16, %c0_17] : memref<1x128xf32, #tpu.memory_space<vmem>>, vector<1x128xf32>
        tpu.vector_store %arg8[%c0_16, %c0_17], %19 {strides = array<i32>} : memref<1x128xf32, #tpu.memory_space<vmem>>, vector<1x128xf32>,
        %c0_18 = arith.constant 0 : index
        %c0_19 = arith.constant 0 : index
        %30 = vector.load %arg9[%c0_18, %c0_19] : memref<1x128xf32, #tpu.memory_space<vmem>>, vector<1x128xf32>
        tpu.vector_store %arg9[%c0_18, %c0_19], %22 {strides = array<i32>} : memref<1x128xf32, #tpu.memory_space<vmem>>, vector<1x128xf32>,
      } else {
      }
      %c0_i32_14 = arith.constant 0 : i32
      %26 = arith.cmpi ne, %arg1, %c0_i32_14 : i32
      %27 = arith.extui %26 : i1 to i32
      %c0_i32_15 = arith.constant 0 : i32
      %28 = arith.cmpi ne, %27, %c0_i32_15 : i32
      scf.if %28 {
        %c0_16 = arith.constant 0 : index
        %c0_17 = arith.constant 0 : index
        %29 = vector.load %arg8[%c0_16, %c0_17] : memref<1x128xf32, #tpu.memory_space<vmem>>, vector<1x128xf32>
        %30 = arith.addf %29, %19 : vector<1x128xf32>
        %c0_18 = arith.constant 0 : index
        %c0_19 = arith.constant 0 : index
        %31 = vector.load %arg8[%c0_18, %c0_19] : memref<1x128xf32, #tpu.memory_space<vmem>>, vector<1x128xf32>
        tpu.vector_store %arg8[%c0_18, %c0_19], %30 {strides = array<i32>} : memref<1x128xf32, #tpu.memory_space<vmem>>, vector<1x128xf32>,
        %c0_20 = arith.constant 0 : index
        %c0_21 = arith.constant 0 : index
        %32 = vector.load %arg9[%c0_20, %c0_21] : memref<1x128xf32, #tpu.memory_space<vmem>>, vector<1x128xf32>
        %33 = arith.addf %32, %22 : vector<1x128xf32>
        %c0_22 = arith.constant 0 : index
        %c0_23 = arith.constant 0 : index
        %34 = vector.load %arg9[%c0_22, %c0_23] : memref<1x128xf32, #tpu.memory_space<vmem>>, vector<1x128xf32>
        tpu.vector_store %arg9[%c0_22, %c0_23], %33 {strides = array<i32>} : memref<1x128xf32, #tpu.memory_space<vmem>>, vector<1x128xf32>,
      } else {
      }
    } else {
    }
    %c1_i32 = arith.constant 1 : i32
    %3 = arith.cmpi eq, %arg0, %c1_i32 : i32
    %c0_i32_1 = arith.constant 0 : i32
    %4 = arith.cmpi eq, %arg1, %c0_i32_1 : i32
    %5 = arith.andi %3, %4 : i1
    %6 = arith.extui %5 : i1 to i32
    %c0_i32_2 = arith.constant 0 : i32
    %7 = arith.cmpi ne, %6, %c0_i32_2 : i32
    scf.if %7 {
      %c0 = arith.constant 0 : index
      %c0_5 = arith.constant 0 : index
      %11 = vector.load %arg8[%c0, %c0_5] : memref<1x128xf32, #tpu.memory_space<vmem>>, vector<1x128xf32>
      %cst = arith.constant 3.125000e-02 : f32
      %12 = vector.broadcast %cst : f32 to vector<1x128xf32>
      %13 = arith.mulf %11, %12 : vector<1x128xf32>
      %c0_6 = arith.constant 0 : index
      %c0_7 = arith.constant 0 : index
      %14 = vector.load %arg9[%c0_6, %c0_7] : memref<1x128xf32, #tpu.memory_space<vmem>>, vector<1x128xf32>
      %cst_8 = arith.constant 3.125000e-02 : f32
      %15 = vector.broadcast %cst_8 : f32 to vector<1x128xf32>
      %16 = arith.mulf %14, %15 : vector<1x128xf32>
      %17 = arith.mulf %13, %13 : vector<1x128xf32>
      %18 = arith.subf %16, %17 : vector<1x128xf32>
      %cst_9 = arith.constant 0.000000e+00 : f32
      %19 = vector.broadcast %cst_9 : f32 to vector<1x128xf32>
      %20 = arith.maximumf %18, %19 : vector<1x128xf32>
      %cst_10 = arith.constant 9.99999974E-6 : f32
      %21 = vector.broadcast %cst_10 : f32 to vector<1x128xf32>
      %22 = arith.addf %20, %21 : vector<1x128xf32>
      %23 = math.rsqrt %22 : vector<1x128xf32>
      %c0_11 = arith.constant 0 : index
      %c0_12 = arith.constant 0 : index
      %24 = vector.load %arg4[%c0_11, %c0_12] : memref<1x128xf32, #tpu.memory_space<vmem>>, vector<1x128xf32>
      %25 = arith.mulf %24, %23 : vector<1x128xf32>
      %c0_13 = arith.constant 0 : index
      %c0_14 = arith.constant 0 : index
      %26 = vector.load %arg10[%c0_13, %c0_14] : memref<1x128xf32, #tpu.memory_space<vmem>>, vector<1x128xf32>
      tpu.vector_store %arg10[%c0_13, %c0_14], %25 {strides = array<i32>} : memref<1x128xf32, #tpu.memory_space<vmem>>, vector<1x128xf32>,
      %c0_15 = arith.constant 0 : index
      %c0_16 = arith.constant 0 : index
      %27 = vector.load %arg5[%c0_15, %c0_16] : memref<1x128xf32, #tpu.memory_space<vmem>>, vector<1x128xf32>
      %28 = arith.mulf %13, %25 : vector<1x128xf32>
      %29 = arith.subf %27, %28 : vector<1x128xf32>
      %c0_17 = arith.constant 0 : index
      %c0_18 = arith.constant 0 : index
      %30 = vector.load %arg11[%c0_17, %c0_18] : memref<1x128xf32, #tpu.memory_space<vmem>>, vector<1x128xf32>
      tpu.vector_store %arg11[%c0_17, %c0_18], %29 {strides = array<i32>} : memref<1x128xf32, #tpu.memory_space<vmem>>, vector<1x128xf32>,
    } else {
    }
    %c1_i32_3 = arith.constant 1 : i32
    %8 = arith.cmpi eq, %arg0, %c1_i32_3 : i32
    %9 = arith.extui %8 : i1 to i32
    %c0_i32_4 = arith.constant 0 : i32
    %10 = arith.cmpi ne, %9, %c0_i32_4 : i32
    scf.if %10 {
      %11 = arith.index_cast %arg1 : i32 to index
      %c0 = arith.constant 0 : index
      %c0_5 = arith.constant 0 : index
      %12 = vector.load %arg7[%11, %c0, %c0_5] : memref<1x32x128xf32, #tpu.memory_space<vmem>>, vector<1x32x128xf32>
      %13 = vector.shape_cast %12 : vector<1x32x128xf32> to vector<32x128xf32>
      %c0_6 = arith.constant 0 : index
      %c0_7 = arith.constant 0 : index
      %14 = vector.load %arg10[%c0_6, %c0_7] : memref<1x128xf32, #tpu.memory_space<vmem>>, vector<1x128xf32>
      %15 = vector.broadcast %14 : vector<1x128xf32> to vector<32x128xf32>
      %16 = arith.mulf %13, %15 : vector<32x128xf32>
      %c0_8 = arith.constant 0 : index
      %c0_9 = arith.constant 0 : index
      %17 = vector.load %arg11[%c0_8, %c0_9] : memref<1x128xf32, #tpu.memory_space<vmem>>, vector<1x128xf32>
      %18 = vector.broadcast %17 : vector<1x128xf32> to vector<32x128xf32>
      %19 = arith.addf %16, %18 : vector<32x128xf32>
      %cst = arith.constant 0.000000e+00 : f32
      %20 = vector.broadcast %cst : f32 to vector<32x128xf32>
      %21 = arith.maximumf %19, %20 : vector<32x128xf32>
      %c0_10 = arith.constant 0 : index
      %c0_11 = arith.constant 0 : index
      %22 = vector.load %arg6[%c0_10, %c0_11] : memref<32x128xf32, #tpu.memory_space<vmem>>, vector<32x128xf32>
      tpu.vector_store %arg6[%c0_10, %c0_11], %21 {strides = array<i32>} : memref<32x128xf32, #tpu.memory_space<vmem>>, vector<32x128xf32>,
    } else {
    }
    return
  }
  func.func @transform_0(%arg0: i32, %arg1: i32) -> (i32, i32) {
    %c1_i32 = arith.constant 1 : i32
    %0 = arith.subi %c1_i32, %arg0 : i32
    %1 = arith.muli %arg1, %0 : i32
    %c0_i32 = arith.constant 0 : i32
    %2 = arith.muli %c0_i32, %arg0 : i32
    %3 = arith.addi %1, %2 : i32
    %c0_i32_0 = arith.constant 0 : i32
    %c0_i32_1 = arith.constant 0 : i32
    return %3, %c0_i32_0 : i32, i32
  }
  func.func @transform_1(%arg0: i32, %arg1: i32) -> (i32, i32) {
    %c0_i32 = arith.constant 0 : i32
    %c0_i32_0 = arith.constant 0 : i32
    %c0_i32_1 = arith.constant 0 : i32
    return %c0_i32, %c0_i32_0 : i32, i32
  }
  func.func @transform_2(%arg0: i32, %arg1: i32) -> (i32, i32) {
    %c0_i32 = arith.constant 0 : i32
    %c0_i32_0 = arith.constant 0 : i32
    %c0_i32_1 = arith.constant 0 : i32
    return %c0_i32, %c0_i32_0 : i32, i32
  }
  func.func @transform_3(%arg0: i32, %arg1: i32) -> (i32, i32) {
    %c0_i32 = arith.constant 0 : i32
    %c0_i32_0 = arith.constant 0 : i32
    %c0_i32_1 = arith.constant 0 : i32
    return %c0_i32, %c0_i32_0 : i32, i32
  }
  func.func @transform_4(%arg0: i32, %arg1: i32) -> (i32, i32) {
    %0 = arith.muli %arg1, %arg0 : i32
    %c0_i32 = arith.constant 0 : i32
    %c0_i32_0 = arith.constant 0 : i32
    return %0, %c0_i32 : i32, i32
  }
}

module attributes {stable_mosaic.version = 11 : i64} {
  func.func @head_kernel(%arg0: memref<2x2048xf32, #tpu.memory_space<vmem>>, %arg1: memref<2048x128xf32, #tpu.memory_space<vmem>>, %arg2: memref<1x128xf32, #tpu.memory_space<vmem>>, %arg3: memref<1x128xf32, #tpu.memory_space<vmem>>, %arg4: memref<1x1xf32, #tpu.memory_space<vmem>>, %arg5: memref<2x1xf32, #tpu.memory_space<vmem>>) attributes {dimension_semantics = [], scalar_prefetch = 0 : i64, scratch_operands = 0 : i64, tpu.core_type = #tpu.core_type<tc>} {
    %c0 = arith.constant 0 : index
    %c0_0 = arith.constant 0 : index
    %0 = vector.load %arg0[%c0, %c0_0] : memref<2x2048xf32, #tpu.memory_space<vmem>>, vector<2x2048xf32>
    %c0_1 = arith.constant 0 : index
    %c0_2 = arith.constant 0 : index
    %1 = vector.load %arg1[%c0_1, %c0_2] : memref<2048x128xf32, #tpu.memory_space<vmem>>, vector<2048x128xf32>
    %cst = arith.constant dense<0.000000e+00> : vector<2x128xf32>
    %2 = tpu.matmul %0, %1, %cst {dimension_numbers = #tpu.dot_dimension_numbers<[1], [0], [0], [1], [0, 0, 1, 1], [], []>} : vector<2x2048xf32>, vector<2048x128xf32>, vector<2x128xf32> -> vector<2x128xf32>
    %c0_3 = arith.constant 0 : index
    %c0_4 = arith.constant 0 : index
    %3 = vector.load %arg2[%c0_3, %c0_4] : memref<1x128xf32, #tpu.memory_space<vmem>>, vector<1x128xf32>
    %4 = vector.broadcast %3 : vector<1x128xf32> to vector<2x128xf32>
    %5 = arith.addf %2, %4 : vector<2x128xf32>
    %c0_5 = arith.constant 0 : index
    %c0_6 = arith.constant 0 : index
    %6 = vector.load %arg3[%c0_5, %c0_6] : memref<1x128xf32, #tpu.memory_space<vmem>>, vector<1x128xf32>
    %7 = vector.broadcast %6 : vector<1x128xf32> to vector<2x128xf32>
    %8 = arith.mulf %5, %7 : vector<2x128xf32>
    %cst_7 = arith.constant dense<0.000000e+00> : vector<2xf32>
    %9 = vector.multi_reduction <add>, %8, %cst_7 [1] : vector<2x128xf32> to vector<2xf32>
    %10 = vector.shape_cast %9 : vector<2xf32> to vector<2x1xf32>
    %c0_8 = arith.constant 0 : index
    %c0_9 = arith.constant 0 : index
    %11 = vector.load %arg4[%c0_8, %c0_9] : memref<1x1xf32, #tpu.memory_space<vmem>>, vector<1x1xf32>
    %12 = vector.broadcast %11 : vector<1x1xf32> to vector<2x1xf32>
    %13 = arith.addf %10, %12 : vector<2x1xf32>
    %14 = arith.negf %13 : vector<2x1xf32>
    %15 = math.exp %14 : vector<2x1xf32>
    %cst_10 = arith.constant 1.000000e+00 : f32
    %16 = vector.broadcast %cst_10 : f32 to vector<2x1xf32>
    %17 = arith.addf %16, %15 : vector<2x1xf32>
    %18 = arith.divf %16, %17 : vector<2x1xf32>
    %c0_11 = arith.constant 0 : index
    %c0_12 = arith.constant 0 : index
    %19 = vector.load %arg5[%c0_11, %c0_12] : memref<2x1xf32, #tpu.memory_space<vmem>>, vector<2x1xf32>
    tpu.vector_store %arg5[%c0_11, %c0_12], %18 {strides = array<i32>} : memref<2x1xf32, #tpu.memory_space<vmem>>, vector<2x1xf32>,
    return
  }
}

</mosaic_0001>

<llo_original>
// kernel: discriminator_forward.4
$region0: #{discriminator_forward.4}
  #allocation0 [shape = 'u32[]', space=smem, size = 0x4, offset = 0x4, fixed_abs, tag = 'smem constant byte address 0x4 - core index']
  #allocation1 [shape = 'u32[144,128]{1,0:T(1,128)}', space=vmem, size = 0x12000, scoped, tag = 'internal scratch']
  #allocation2 [shape = 'f32[2,256,128]{2,1,0:T(8,128)}', space=vmem, size = 0x40000, scoped, tag = 'scratch operand']
  #allocation3 [shape = 'f32[1,128]{1,0:T(1,128)}', space=vmem, size = 0x200, scoped, tag = 'scratch operand']
  #allocation4 [shape = 'f32[1,128]{1,0:T(1,128)}', space=vmem, size = 0x200, scoped, tag = 'scratch operand']
  #allocation5 [shape = 'f32[1,128]{1,0:T(1,128)}', space=vmem, size = 0x200, scoped, tag = 'scratch operand']
  #allocation6 [shape = 'f32[1,128]{1,0:T(1,128)}', space=vmem, size = 0x200, scoped, tag = 'scratch operand']
  %s0 = inlined_call_operand.vmem [shape: f32[512,128], index: 0, kind: input, shape index: {}]
  %s1 = inlined_call_operand.vmem [shape: f32[128,128], index: 1, kind: input, shape index: {}]
  %s2 = inlined_call_operand.vmem [shape: f32[1,128], index: 2, kind: input, shape index: {}]
  %s3 = inlined_call_operand.vmem [shape: f32[1,128], index: 3, kind: input, shape index: {}]
  %s4 = inlined_call_operand.vmem [shape: f32[512,128], index: 4, kind: output, shape index: {}]
  %s5 = sld [smem:[#allocation0]]
  $region69: #{discriminator_forward.4} parent=0
    _
  %s7 = ssub.s32 1, %s5
  %s8 = scalar_select 0, %s7, %s5
  loop: start=0, step=1, limit=6
  $region2: #{discriminator_forward.4} parent=0 // loop_pre_header
    _
  $region3: #{discriminator_forward.4} parent=0 // loop_header
    %s10 = sphi 0, %s14
    %p11 = scmp.ge.s32.totalorder %s10, 6
    %s17 = sphi 0, %s29
    %s18 = sphi 0, %s25
    %s19 = sphi 0, %s17
    %s20 = sphi 0, %s18
    %s21 = sphi 0, %s19
    %s22 = sphi 0, %s20
    %s38 = sphi 0, %s40
    %s41 = sphi 0, %s38
    %s42 = sphi 0, %s41
    %s58 = sphi 0, %s42
    %s62 = sphi 0, %s62
    %s64 = sphi 0, %s62
    %s65 = sphi 0, %s64
    %s79 = sphi 0, %s65
    %s83 = sphi 0, %s83
    %s85 = sphi 0, %s83
    %s86 = sphi 0, %s85
    %s100 = sphi 0, %s86
    %s104 = sphi 0, %s104
    %s106 = sphi 0, %s104
    %s107 = sphi 0, %s106
    %s121 = sphi 0, %s107
    %s129 = sphi 0, %s131
    %s132 = sphi 0, %s129
    %s133 = sphi 0, %s132
    %s149 = sphi 0, %s133
  $region4: #{discriminator_forward.4} parent=0 // loop_header_branch
    %13 = sbr.rel (%p11) target = $region8
  $region5: #{discriminator_forward.4} parent=0 // loop_body
    %s15 = ssub.s32 %s10, 1
    %s16 = ssub.s32 %s10, 2
    %s23 = sadd.s32 1, %s18
    %p24 = scmp.ge.s32.totalorder %s23, 2
    %s25 = scalar_select %p24, 0, %s23
    %s26 = sadd.s32 1, %s17
    %s27 = scalar_select %p24, %s26, %s17
    %p28 = scmp.ge.s32.totalorder %s27, 2
    %s29 = scalar_select %p28, 0, %s27
    %s30 = ssub.s32 1, %s17
    %s31 = smul.u32 %s18, %s30
    %s32 = sadd.s32 %s31, %s17
    %s33 = ssub.s32 1, %s29
    %s34 = smul.u32 %s25, %s33
    %s35 = sadd.s32 %s34, %s29
    %s36 = ssub.s32 %s32, %s35
    %p37 = scmp.eq.s32.totalorder %s36, 0
    %s39 = sadd.s32 %s38, 1
    %s40 = scalar_select %p37, %s38, %s39
    %p43 = pneg %p37
    %p44 = scmp.eq.s32.totalorder %s10, 3
    %p45 = por %p43, %p44
    %p46 = scmp.ne.s32.totalorder %s38, %s41
    %p47 = scmp.eq.s32.totalorder %s10, 0
    %p48 = por %p46, %p47
    %p49 = scmp.ne.s32.totalorder %s38, %s41
    %p50 = scmp.eq.s32.totalorder %s15, 3
    %p51 = por %p49, %p50
    %p52 = scmp.ne.s32.totalorder %s41, %s42
    %p53 = scmp.eq.s32.totalorder %s15, 0
    %p54 = por %p52, %p53
    %p55 = scmp.ne.s32.totalorder %s41, %s42
    %p56 = scmp.eq.s32.totalorder %s16, 3
    %p57 = por %p55, %p56
    %p59 = scmp.ne.s32.totalorder %s42, %s58
    %p60 = scmp.eq.s32.totalorder %s16, 0
    %p61 = por %p59, %p60
    %s63 = sadd.s32 %s62, 1
    %p66 = scmp.eq.s32.totalorder %s10, 3
    %p67 = scmp.ne.s32.totalorder %s62, %s64
    %p68 = scmp.eq.s32.totalorder %s10, 0
    %p69 = por %p67, %p68
    %p70 = scmp.ne.s32.totalorder %s62, %s64
    %p71 = scmp.eq.s32.totalorder %s15, 3
    %p72 = por %p70, %p71
    %p73 = scmp.ne.s32.totalorder %s64, %s65
    %p74 = scmp.eq.s32.totalorder %s15, 0
    %p75 = por %p73, %p74
    %p76 = scmp.ne.s32.totalorder %s64, %s65
    %p77 = scmp.eq.s32.totalorder %s16, 3
    %p78 = por %p76, %p77
    %p80 = scmp.ne.s32.totalorder %s65, %s79
    %p81 = scmp.eq.s32.totalorder %s16, 0
    %p82 = por %p80, %p81
    %s84 = sadd.s32 %s83, 1
    %p87 = scmp.eq.s32.totalorder %s10, 3
    %p88 = scmp.ne.s32.totalorder %s83, %s85
    %p89 = scmp.eq.s32.totalorder %s10, 0
    %p90 = por %p88, %p89
    %p91 = scmp.ne.s32.totalorder %s83, %s85
    %p92 = scmp.eq.s32.totalorder %s15, 3
    %p93 = por %p91, %p92
    %p94 = scmp.ne.s32.totalorder %s85, %s86
    %p95 = scmp.eq.s32.totalorder %s15, 0
    %p96 = por %p94, %p95
    %p97 = scmp.ne.s32.totalorder %s85, %s86
    %p98 = scmp.eq.s32.totalorder %s16, 3
    %p99 = por %p97, %p98
    %p101 = scmp.ne.s32.totalorder %s86, %s100
    %p102 = scmp.eq.s32.totalorder %s16, 0
    %p103 = por %p101, %p102
    %s105 = sadd.s32 %s104, 1
    %p108 = scmp.eq.s32.totalorder %s10, 3
    %p109 = scmp.ne.s32.totalorder %s104, %s106
    %p110 = scmp.eq.s32.totalorder %s10, 0
    %p111 = por %p109, %p110
    %p112 = scmp.ne.s32.totalorder %s104, %s106
    %p113 = scmp.eq.s32.totalorder %s15, 3
    %p114 = por %p112, %p113
    %p115 = scmp.ne.s32.totalorder %s106, %s107
    %p116 = scmp.eq.s32.totalorder %s15, 0
    %p117 = por %p115, %p116
    %p118 = scmp.ne.s32.totalorder %s106, %s107
    %p119 = scmp.eq.s32.totalorder %s16, 3
    %p120 = por %p118, %p119
    %p122 = scmp.ne.s32.totalorder %s107, %s121
    %p123 = scmp.eq.s32.totalorder %s16, 0
    %p124 = por %p122, %p123
    %s125 = smul.u32 %s18, %s17
    %s126 = smul.u32 %s25, %s29
    %s127 = ssub.s32 %s125, %s126
    %p128 = scmp.eq.s32.totalorder %s127, 0
    %s130 = sadd.s32 %s129, 1
    %s131 = scalar_select %p128, %s129, %s130
    %p134 = pneg %p128
    %p135 = scmp.eq.s32.totalorder %s10, 3
    %p136 = por %p134, %p135
    %p137 = scmp.ne.s32.totalorder %s129, %s132
    %p138 = scmp.eq.s32.totalorder %s10, 0
    %p139 = por %p137, %p138
    %p140 = scmp.ne.s32.totalorder %s129, %s132
    %p141 = scmp.eq.s32.totalorder %s15, 3
    %p142 = por %p140, %p141
    %p143 = scmp.ne.s32.totalorder %s132, %s133
    %p144 = scmp.eq.s32.totalorder %s15, 0
    %p145 = por %p143, %p144
    %p146 = scmp.ne.s32.totalorder %s132, %s133
    %p147 = scmp.eq.s32.totalorder %s16, 3
    %p148 = por %p146, %p147
    %p150 = scmp.ne.s32.totalorder %s133, %s149
    %p151 = scmp.eq.s32.totalorder %s16, 0
    %p152 = por %p150, %p151
    %p153 = scmp.le.s32.totalorder 1, %s10
    %p154 = scmp.lt.s32.totalorder %s10, 5
    %p155 = pnand %p153, %p154
    %p156 = pneg %p155
    // Predicated region
    $region9: #{discriminator_forward.4} parent=5 // pred_check
      _
    $region10: #{discriminator_forward.4} parent=5 // pred_check_branch
      %158 = sbr.rel (%p155) target = $region12
    $region11: #{discriminator_forward.4} parent=5 // pred_region
      %s159 = ssub.s32 %s10, 1
      // Predicated region
      $region13: #{discriminator_forward.4} parent=11 // pred_check
        %p160 = pneg %p75
      $region14: #{discriminator_forward.4} parent=11 // pred_check_branch
        %162 = sbr.rel (%p160) target = $region16
      $region15: #{discriminator_forward.4} parent=11 // pred_region
        _
      $region16: #{discriminator_forward.4} parent=11 // pred_fallthru
        _
      // Predicated region
      $region17: #{discriminator_forward.4} parent=11 // pred_check
        %p163 = pneg %p96
      $region18: #{discriminator_forward.4} parent=11 // pred_check_branch
        %165 = sbr.rel (%p163) target = $region20
      $region19: #{discriminator_forward.4} parent=11 // pred_region
        _
      $region20: #{discriminator_forward.4} parent=11 // pred_fallthru
        _
      // Predicated region
      $region21: #{discriminator_forward.4} parent=11 // pred_check
        %p166 = pneg %p117
      $region22: #{discriminator_forward.4} parent=11 // pred_check_branch
        %168 = sbr.rel (%p166) target = $region24
      $region23: #{discriminator_forward.4} parent=11 // pred_region
        _
      $region24: #{discriminator_forward.4} parent=11 // pred_fallthru
        _
    $region12: #{discriminator_forward.4} parent=5 // pred_fallthru
      _
    %p169 = scmp.lt.s32.totalorder %s10, 4
    // Predicated region
    $region25: #{discriminator_forward.4} parent=5 // pred_check
      %p170 = pneg %p169
    $region26: #{discriminator_forward.4} parent=5 // pred_check_branch
      %172 = sbr.rel (%p170) target = $region28
    $region27: #{discriminator_forward.4} parent=5 // pred_region
      // Predicated region
      $region29: #{discriminator_forward.4} parent=27 // pred_check
        %p173 = pneg %p48
      $region30: #{discriminator_forward.4} parent=27 // pred_check_branch
        %175 = sbr.rel (%p173) target = $region32
      $region31: #{discriminator_forward.4} parent=27 // pred_region
        %s176 = ssub.s32 1, %s17
        %s177 = smul.u32 %s18, %s176
        %s178 = sadd.s32 %s177, %s17
        %s179 = smul.u32 32, %s178
        %p180 = scmp.lt.s32.totalorder %s179, 63
        %s181 = scalar_select %p180, %s179, 63
        %s182 = smul.addr %s181, 8
        %s183 = scalar_lea.vmem %s0, %s182
        %s184 = ssub.s32 1, %s17
        %s185 = smul.u32 %s18, %s184
        %s186 = sadd.s32 %s185, %s17
        %s187 = smul.u32 32, %s186
      $region32: #{discriminator_forward.4} parent=27 // pred_fallthru
        _
    $region28: #{discriminator_forward.4} parent=5 // pred_fallthru
      _
    %p188 = scmp.le.s32.totalorder 1, %s10
    %p189 = scmp.lt.s32.totalorder %s10, 5
    %p190 = pnand %p188, %p189
    %p191 = pneg %p190
    // Predicated region
    $region33: #{discriminator_forward.4} parent=5 // pred_check
      _
    $region34: #{discriminator_forward.4} parent=5 // pred_check_branch
      %193 = sbr.rel (%p190) target = $region36
    $region35: #{discriminator_forward.4} parent=5 // pred_region
      %s194 = ssub.s32 %s10, 1
      %s195 = ssub.s32 1, %s19
      %s196 = smul.u32 %s20, %s195
      %s197 = sadd.s32 %s196, %s19
      %s198 = smul.u32 32, %s197
      %p199 = scmp.lt.s32.totalorder %s198, 63
      %s200 = scalar_select %p199, %s198, 63
      %s201 = smul.addr %s200, 8
      %s202 = scalar_lea.vmem %s0, %s201
      %p203 = pneg %p54
      %p204 = pneg %p51
      %p205 = pneg %p75
      %p206 = pneg %p72
      %p207 = pneg %p96
      %p208 = pneg %p93
      %p209 = pneg %p117
      %p210 = pneg %p114
      %p211 = pneg %p145
      %p212 = pneg %p142
      %s213 = smul.u32 %s20, %s19
      %s214 = smul.u32 32, %s213
      %p215 = scmp.lt.s32.totalorder %s214, 63
      %s216 = scalar_select %p215, %s214, 63
      %s217 = smul.addr %s216, 8
      %s218 = scalar_lea.vmem %s4, %s217
      %s219 = ssub.s32 1, %s19
      %s220 = smul.u32 %s20, %s219
      %s221 = sadd.s32 %s220, %s19
      %s222 = smul.u32 32, %s221
      %p223 = scmp.lt.s32.totalorder %s222, 63
      %s224 = scalar_select %p223, %s222, 63
      %s225 = smul.addr %s224, 8
      %s226 = scalar_lea.vmem %s0, %s225
      %s227 = ssub.s32 1, %s19
      %s228 = smul.u32 %s20, %s227
      %s229 = sadd.s32 %s228, %s19
      %s230 = smul.u32 32, %s229
      %s231 = smul.u32 %s20, %s19
      %s232 = smul.u32 32, %s231
      %p233 = scmp.lt.s32.totalorder %s232, 63
      %s234 = scalar_select %p233, %s232, 63
      %s235 = smul.addr %s234, 8
      %s236 = scalar_lea.vmem %s4, %s235
      %s237 = smul.u32 %s20, %s19
      %s238 = smul.u32 32, %s237
      %p239 = scmp.eq.s32.totalorder %s19, 0
      // Predicated region
      $region37: #{discriminator_forward.4} parent=35 // pred_check
        %p240 = pneg %p239
      $region38: #{discriminator_forward.4} parent=35 // pred_check_branch
        %242 = sbr.rel (%p240) target = $region40
      $region39: #{discriminator_forward.4} parent=35 // pred_region
        %v243 = vld [vmem:[%s226] sm:$0xff]
        %v244 = vld [vmem:[%s226 + $0x8] sm:$0xff]
        %v245 = vld [vmem:[%s226 + $0x10] sm:$0xff]
        %v246 = vld [vmem:[%s226 + $0x18] sm:$0xff]
        %v247 = vld [vmem:[%s226 + $0x20] sm:$0xff]
        %v248 = vld [vmem:[%s226 + $0x28] sm:$0xff]
        %v249 = vld [vmem:[%s226 + $0x30] sm:$0xff]
        %v250 = vld [vmem:[%s226 + $0x38] sm:$0xff]
        %v251 = vld [vmem:[%s226 + $0x40] sm:$0xff]
        %v252 = vld [vmem:[%s226 + $0x48] sm:$0xff]
        %v253 = vld [vmem:[%s226 + $0x50] sm:$0xff]
        %v254 = vld [vmem:[%s226 + $0x58] sm:$0xff]
        %v255 = vld [vmem:[%s226 + $0x60] sm:$0xff]
        %v256 = vld [vmem:[%s226 + $0x68] sm:$0xff]
        %v257 = vld [vmem:[%s226 + $0x70] sm:$0xff]
        %v258 = vld [vmem:[%s226 + $0x78] sm:$0xff]
        %v259 = vld [vmem:[%s226 + $0x80] sm:$0xff]
        %v260 = vld [vmem:[%s226 + $0x88] sm:$0xff]
        %v261 = vld [vmem:[%s226 + $0x90] sm:$0xff]
        %v262 = vld [vmem:[%s226 + $0x98] sm:$0xff]
        %v263 = vld [vmem:[%s226 + $0xa0] sm:$0xff]
        %v264 = vld [vmem:[%s226 + $0xa8] sm:$0xff]
        %v265 = vld [vmem:[%s226 + $0xb0] sm:$0xff]
        %v266 = vld [vmem:[%s226 + $0xb8] sm:$0xff]
        %v267 = vld [vmem:[%s226 + $0xc0] sm:$0xff]
        %v268 = vld [vmem:[%s226 + $0xc8] sm:$0xff]
        %v269 = vld [vmem:[%s226 + $0xd0] sm:$0xff]
        %v270 = vld [vmem:[%s226 + $0xd8] sm:$0xff]
        %v271 = vld [vmem:[%s226 + $0xe0] sm:$0xff]
        %v272 = vld [vmem:[%s226 + $0xe8] sm:$0xff]
        %v273 = vld [vmem:[%s226 + $0xf0] sm:$0xff]
        %v274 = vld [vmem:[%s226 + $0xf8] sm:$0xff]
        %v275 = vld [vmem:[%s1] sm:$0xff]
        %v276 = vld [vmem:[%s1 + $0x8] sm:$0xff]
        %v277 = vld [vmem:[%s1 + $0x10] sm:$0xff]
        %v278 = vld [vmem:[%s1 + $0x18] sm:$0xff]
        %v279 = vld [vmem:[%s1 + $0x20] sm:$0xff]
        %v280 = vld [vmem:[%s1 + $0x28] sm:$0xff]
        %v281 = vld [vmem:[%s1 + $0x30] sm:$0xff]
        %v282 = vld [vmem:[%s1 + $0x38] sm:$0xff]
        %v283 = vld [vmem:[%s1 + $0x40] sm:$0xff]
        %v284 = vld [vmem:[%s1 + $0x48] sm:$0xff]
        %v285 = vld [vmem:[%s1 + $0x50] sm:$0xff]
        %v286 = vld [vmem:[%s1 + $0x58] sm:$0xff]
        %v287 = vld [vmem:[%s1 + $0x60] sm:$0xff]
        %v288 = vld [vmem:[%s1 + $0x68] sm:$0xff]
        %v289 = vld [vmem:[%s1 + $0x70] sm:$0xff]
        %v290 = vld [vmem:[%s1 + $0x78] sm:$0xff]
        %291 = vmatprep.subr.mxu0 0.0
        %292 = vmatpush1.msra.mxu0 %v290
        %293 = vmatprep.subr.mxu0 0.0
        %294 = vmatpush1.msra.mxu0 %v289
        %295 = vmatprep.subr.mxu0 0.0
        %296 = vmatpush1.msra.mxu0 %v288
        %297 = vmatprep.subr.mxu0 0.0
        %298 = vmatpush1.msra.mxu0 %v287
        %299 = vmatprep.subr.mxu0 0.0
        %300 = vmatpush1.msra.mxu0 %v286
        %301 = vmatprep.subr.mxu0 0.0
        %302 = vmatpush1.msra.mxu0 %v285
        %303 = vmatprep.subr.mxu0 0.0
        %304 = vmatpush1.msra.mxu0 %v284
        %305 = vmatprep.subr.mxu0 0.0
        %306 = vmatpush1.msra.mxu0 %v283
        %307 = vmatprep.subr.mxu0 0.0
        %308 = vmatpush1.msra.mxu0 %v282
        %309 = vmatprep.subr.mxu0 0.0
        %310 = vmatpush1.msra.mxu0 %v281
        %311 = vmatprep.subr.mxu0 0.0
        %312 = vmatpush1.msra.mxu0 %v280
        %313 = vmatprep.subr.mxu0 0.0
        %314 = vmatpush1.msra.mxu0 %v279
        %315 = vmatprep.subr.mxu0 0.0
        %316 = vmatpush1.msra.mxu0 %v278
        %317 = vmatprep.subr.mxu0 0.0
        %318 = vmatpush1.msra.mxu0 %v277
        %319 = vmatprep.subr.mxu0 0.0
        %320 = vmatpush1.msra.mxu0 %v276
        %321 = vmatprep.subr.mxu0 0.0
        %322 = vmatpush1.msra.mxu0 %v275
        %323 = vmatprep.subr.mxu0 0.0
        %324 = vmatpush2.msra.mxu0 0.0
        %325 = vmatprep.subr.mxu0 0.0
        %326 = vmatpush2.msra.mxu0 0.0
        %327 = vmatprep.subr.mxu0 0.0
        %328 = vmatpush2.msra.mxu0 0.0
        %329 = vmatprep.subr.mxu0 0.0
        %330 = vmatpush2.msra.mxu0 0.0
        %331 = vmatprep.subr.mxu0 0.0
        %332 = vmatpush2.msra.mxu0 0.0
        %333 = vmatprep.subr.mxu0 0.0
        %334 = vmatpush2.msra.mxu0 0.0
        %335 = vmatprep.subr.mxu0 0.0
        %336 = vmatpush2.msra.mxu0 0.0
        %337 = vmatprep.subr.mxu0 0.0
        %338 = vmatpush2.msra.mxu0 0.0
        %339 = vmatprep.subr.mxu0 0.0
        %340 = vmatpush2.msra.mxu0 0.0
        %341 = vmatprep.subr.mxu0 0.0
        %342 = vmatpush2.msra.mxu0 0.0
        %343 = vmatprep.subr.mxu0 0.0
        %344 = vmatpush2.msra.mxu0 0.0
        %345 = vmatprep.subr.mxu0 0.0
        %346 = vmatpush2.msra.mxu0 0.0
        %347 = vmatprep.subr.mxu0 0.0
        %348 = vmatpush2.msra.mxu0 0.0
        %349 = vmatprep.subr.mxu0 0.0
        %350 = vmatpush2.msra.mxu0 0.0
        %351 = vmatprep.subr.mxu0 0.0
        %352 = vmatpush2.msra.mxu0 0.0
        %353 = vmatprep.subr.mxu0 0.0
        %354 = vmatpush2.msra.mxu0 0.0
        %355 = vmatprep.mubr.f32.mxu0 0.0
        %356 = vmatmul.mubr.f32.gmra.mxu0 %v243
        %v357 = vpop.f32.mrf.mxu0
        %v358 = vadd.f32 0.0, %v357
        %v359 = vpop.f32.mrf.mxu0
        %360 = vmatprep.mubr.f32.mxu0 0.0
        %361 = vmatmul.mubr.f32.gmra.mxu0 %v244
        %v362 = vpop.f32.mrf.mxu0
        %v363 = vadd.f32 0.0, %v362
        %v364 = vpop.f32.mrf.mxu0
        %365 = vmatprep.mubr.f32.mxu0 0.0
        %366 = vmatmul.mubr.f32.gmra.mxu0 %v245
        %v367 = vpop.f32.mrf.mxu0
        %v368 = vadd.f32 0.0, %v367
        %v369 = vpop.f32.mrf.mxu0
        %370 = vmatprep.mubr.f32.mxu0 0.0
        %371 = vmatmul.mubr.f32.gmra.mxu0 %v246
        %v372 = vpop.f32.mrf.mxu0
        %v373 = vadd.f32 0.0, %v372
        %v374 = vpop.f32.mrf.mxu0
        %375 = vmatprep.mubr.f32.mxu0 0.0
        %376 = vmatmul.mubr.f32.gmra.mxu0 %v247
        %v377 = vpop.f32.mrf.mxu0
        %v378 = vadd.f32 0.0, %v377
        %v379 = vpop.f32.mrf.mxu0
        %380 = vmatprep.mubr.f32.mxu0 0.0
        %381 = vmatmul.mubr.f32.gmra.mxu0 %v248
        %v382 = vpop.f32.mrf.mxu0
        %v383 = vadd.f32 0.0, %v382
        %v384 = vpop.f32.mrf.mxu0
        %385 = vmatprep.mubr.f32.mxu0 0.0
        %386 = vmatmul.mubr.f32.gmra.mxu0 %v249
        %v387 = vpop.f32.mrf.mxu0
        %v388 = vadd.f32 0.0, %v387
        %v389 = vpop.f32.mrf.mxu0
        %390 = vmatprep.mubr.f32.mxu0 0.0
        %391 = vmatmul.mubr.f32.gmra.mxu0 %v250
        %v392 = vpop.f32.mrf.mxu0
        %v393 = vadd.f32 0.0, %v392
        %v394 = vpop.f32.mrf.mxu0
        %395 = vmatprep.mubr.f32.mxu0 0.0
        %396 = vmatmul.mubr.f32.gmra.mxu0 %v251
        %v397 = vpop.f32.mrf.mxu0
        %v398 = vadd.f32 0.0, %v397
        %v399 = vpop.f32.mrf.mxu0
        %400 = vmatprep.mubr.f32.mxu0 0.0
        %401 = vmatmul.mubr.f32.gmra.mxu0 %v252
        %v402 = vpop.f32.mrf.mxu0
        %v403 = vadd.f32 0.0, %v402
        %v404 = vpop.f32.mrf.mxu0
        %405 = vmatprep.mubr.f32.mxu0 0.0
        %406 = vmatmul.mubr.f32.gmra.mxu0 %v253
        %v407 = vpop.f32.mrf.mxu0
        %v408 = vadd.f32 0.0, %v407
        %v409 = vpop.f32.mrf.mxu0
        %410 = vmatprep.mubr.f32.mxu0 0.0
        %411 = vmatmul.mubr.f32.gmra.mxu0 %v254
        %v412 = vpop.f32.mrf.mxu0
        %v413 = vadd.f32 0.0, %v412
        %v414 = vpop.f32.mrf.mxu0
        %415 = vmatprep.mubr.f32.mxu0 0.0
        %416 = vmatmul.mubr.f32.gmra.mxu0 %v255
        %v417 = vpop.f32.mrf.mxu0
        %v418 = vadd.f32 0.0, %v417
        %v419 = vpop.f32.mrf.mxu0
        %420 = vmatprep.mubr.f32.mxu0 0.0
        %421 = vmatmul.mubr.f32.gmra.mxu0 %v256
        %v422 = vpop.f32.mrf.mxu0
        %v423 = vadd.f32 0.0, %v422
        %v424 = vpop.f32.mrf.mxu0
        %425 = vmatprep.mubr.f32.mxu0 0.0
        %426 = vmatmul.mubr.f32.gmra.mxu0 %v257
        %v427 = vpop.f32.mrf.mxu0
        %v428 = vadd.f32 0.0, %v427
        %v429 = vpop.f32.mrf.mxu0
        %430 = vmatprep.mubr.f32.mxu0 0.0
        %431 = vmatmul.mubr.f32.gmra.mxu0 %v258
        %v432 = vpop.f32.mrf.mxu0
        %v433 = vadd.f32 0.0, %v432
        %v434 = vpop.f32.mrf.mxu0
        %435 = vmatprep.mubr.f32.mxu0 0.0
        %436 = vmatmul.mubr.f32.gmra.mxu0 %v259
        %v437 = vpop.f32.mrf.mxu0
        %v438 = vadd.f32 0.0, %v437
        %v439 = vpop.f32.mrf.mxu0
        %440 = vmatprep.mubr.f32.mxu0 0.0
        %441 = vmatmul.mubr.f32.gmra.mxu0 %v260
        %v442 = vpop.f32.mrf.mxu0
        %v443 = vadd.f32 0.0, %v442
        %v444 = vpop.f32.mrf.mxu0
        %445 = vmatprep.mubr.f32.mxu0 0.0
        %446 = vmatmul.mubr.f32.gmra.mxu0 %v261
        %v447 = vpop.f32.mrf.mxu0
        %v448 = vadd.f32 0.0, %v447
        %v449 = vpop.f32.mrf.mxu0
        %450 = vmatprep.mubr.f32.mxu0 0.0
        %451 = vmatmul.mubr.f32.gmra.mxu0 %v262
        %v452 = vpop.f32.mrf.mxu0
        %v453 = vadd.f32 0.0, %v452
        %v454 = vpop.f32.mrf.mxu0
        %455 = vmatprep.mubr.f32.mxu0 0.0
        %456 = vmatmul.mubr.f32.gmra.mxu0 %v263
        %v457 = vpop.f32.mrf.mxu0
        %v458 = vadd.f32 0.0, %v457
        %v459 = vpop.f32.mrf.mxu0
        %460 = vmatprep.mubr.f32.mxu0 0.0
        %461 = vmatmul.mubr.f32.gmra.mxu0 %v264
        %v462 = vpop.f32.mrf.mxu0
        %v463 = vadd.f32 0.0, %v462
        %v464 = vpop.f32.mrf.mxu0
        %465 = vmatprep.mubr.f32.mxu0 0.0
        %466 = vmatmul.mubr.f32.gmra.mxu0 %v265
        %v467 = vpop.f32.mrf.mxu0
        %v468 = vadd.f32 0.0, %v467
        %v469 = vpop.f32.mrf.mxu0
        %470 = vmatprep.mubr.f32.mxu0 0.0
        %471 = vmatmul.mubr.f32.gmra.mxu0 %v266
        %v472 = vpop.f32.mrf.mxu0
        %v473 = vadd.f32 0.0, %v472
        %v474 = vpop.f32.mrf.mxu0
        %475 = vmatprep.mubr.f32.mxu0 0.0
        %476 = vmatmul.mubr.f32.gmra.mxu0 %v267
        %v477 = vpop.f32.mrf.mxu0
        %v478 = vadd.f32 0.0, %v477
        %v479 = vpop.f32.mrf.mxu0
        %480 = vmatprep.mubr.f32.mxu0 0.0
        %481 = vmatmul.mubr.f32.gmra.mxu0 %v268
        %v482 = vpop.f32.mrf.mxu0
        %v483 = vadd.f32 0.0, %v482
        %v484 = vpop.f32.mrf.mxu0
        %485 = vmatprep.mubr.f32.mxu0 0.0
        %486 = vmatmul.mubr.f32.gmra.mxu0 %v269
        %v487 = vpop.f32.mrf.mxu0
        %v488 = vadd.f32 0.0, %v487
        %v489 = vpop.f32.mrf.mxu0
        %490 = vmatprep.mubr.f32.mxu0 0.0
        %491 = vmatmul.mubr.f32.gmra.mxu0 %v270
        %v492 = vpop.f32.mrf.mxu0
        %v493 = vadd.f32 0.0, %v492
        %v494 = vpop.f32.mrf.mxu0
        %495 = vmatprep.mubr.f32.mxu0 0.0
        %496 = vmatmul.mubr.f32.gmra.mxu0 %v271
        %v497 = vpop.f32.mrf.mxu0
        %v498 = vadd.f32 0.0, %v497
        %v499 = vpop.f32.mrf.mxu0
        %500 = vmatprep.mubr.f32.mxu0 0.0
        %501 = vmatmul.mubr.f32.gmra.mxu0 %v272
        %v502 = vpop.f32.mrf.mxu0
        %v503 = vadd.f32 0.0, %v502
        %v504 = vpop.f32.mrf.mxu0
        %505 = vmatprep.mubr.f32.mxu0 0.0
        %506 = vmatmul.mubr.f32.gmra.mxu0 %v273
        %v507 = vpop.f32.mrf.mxu0
        %v508 = vadd.f32 0.0, %v507
        %v509 = vpop.f32.mrf.mxu0
        %510 = vmatprep.mubr.f32.mxu0 0.0
        %511 = vmatmul.mubr.f32.gmra.mxu0 %v274
        %v512 = vpop.f32.mrf.mxu0
        %v513 = vadd.f32 0.0, %v512
        %v514 = vpop.f32.mrf.mxu0
        %515 = vdwg.mxu0
        %s516 = smul.u32 %s20, 256
        %s517 = scalar_lea.vmem [#allocation2], %s516
        %518 = vst [vmem:[%s517] sm:$0xff] %v358
        %519 = vst [vmem:[%s517 + $0x8] sm:$0xff] %v363
        %520 = vst [vmem:[%s517 + $0x10] sm:$0xff] %v368
        %521 = vst [vmem:[%s517 + $0x18] sm:$0xff] %v373
        %522 = vst [vmem:[%s517 + $0x20] sm:$0xff] %v378
        %523 = vst [vmem:[%s517 + $0x28] sm:$0xff] %v383
        %524 = vst [vmem:[%s517 + $0x30] sm:$0xff] %v388
        %525 = vst [vmem:[%s517 + $0x38] sm:$0xff] %v393
        %526 = vst [vmem:[%s517 + $0x40] sm:$0xff] %v398
        %527 = vst [vmem:[%s517 + $0x48] sm:$0xff] %v403
        %528 = vst [vmem:[%s517 + $0x50] sm:$0xff] %v408
        %529 = vst [vmem:[%s517 + $0x58] sm:$0xff] %v413
        %530 = vst [vmem:[%s517 + $0x60] sm:$0xff] %v418
        %531 = vst [vmem:[%s517 + $0x68] sm:$0xff] %v423
        %532 = vst [vmem:[%s517 + $0x70] sm:$0xff] %v428
        %533 = vst [vmem:[%s517 + $0x78] sm:$0xff] %v433
        %534 = vst [vmem:[%s517 + $0x80] sm:$0xff] %v438
        %535 = vst [vmem:[%s517 + $0x88] sm:$0xff] %v443
        %536 = vst [vmem:[%s517 + $0x90] sm:$0xff] %v448
        %537 = vst [vmem:[%s517 + $0x98] sm:$0xff] %v453
        %538 = vst [vmem:[%s517 + $0xa0] sm:$0xff] %v458
        %539 = vst [vmem:[%s517 + $0xa8] sm:$0xff] %v463
        %540 = vst [vmem:[%s517 + $0xb0] sm:$0xff] %v468
        %541 = vst [vmem:[%s517 + $0xb8] sm:$0xff] %v473
        %542 = vst [vmem:[%s517 + $0xc0] sm:$0xff] %v478
        %543 = vst [vmem:[%s517 + $0xc8] sm:$0xff] %v483
        %544 = vst [vmem:[%s517 + $0xd0] sm:$0xff] %v488
        %545 = vst [vmem:[%s517 + $0xd8] sm:$0xff] %v493
        %546 = vst [vmem:[%s517 + $0xe0] sm:$0xff] %v498
        %547 = vst [vmem:[%s517 + $0xe8] sm:$0xff] %v503
        %548 = vst [vmem:[%s517 + $0xf0] sm:$0xff] %v508
        %549 = vst [vmem:[%s517 + $0xf8] sm:$0xff] %v513
        %v550 = vadd.f32 %v358, %v363
        %v551 = vadd.f32 %v550, %v368
        %v552 = vadd.f32 %v551, %v373
        %v553 = vadd.f32 %v552, %v378
        %v554 = vadd.f32 %v553, %v383
        %v555 = vadd.f32 %v554, %v388
        %v556 = vadd.f32 %v555, %v393
        %v557 = vadd.f32 %v556, %v398
        %v558 = vadd.f32 %v557, %v403
        %v559 = vadd.f32 %v558, %v408
        %v560 = vadd.f32 %v559, %v413
        %v561 = vadd.f32 %v560, %v418
        %v562 = vadd.f32 %v561, %v423
        %v563 = vadd.f32 %v562, %v428
        %v564 = vadd.f32 %v563, %v433
        %v565 = vadd.f32 %v564, %v438
        %v566 = vadd.f32 %v565, %v443
        %v567 = vadd.f32 %v566, %v448
        %v568 = vadd.f32 %v567, %v453
        %v569 = vadd.f32 %v568, %v458
        %v570 = vadd.f32 %v569, %v463
        %v571 = vadd.f32 %v570, %v468
        %v572 = vadd.f32 %v571, %v473
        %v573 = vadd.f32 %v572, %v478
        %v574 = vadd.f32 %v573, %v483
        %v575 = vadd.f32 %v574, %v488
        %v576 = vadd.f32 %v575, %v493
        %v577 = vadd.f32 %v576, %v498
        %v578 = vadd.f32 %v577, %v503
        %v579 = vadd.f32 %v578, %v508
        %v580 = vadd.f32 %v579, %v513
        %v581 = vrot.slane %v580, 4
        %v582 = vadd.f32 %v580, %v581
        %v583 = vrot.slane %v582, 2
        %v584 = vadd.f32 %v582, %v583
        %v585 = vrot.slane %v584, 1
        %v586 = vadd.f32 %v584, %v585
        %v587 = vmul.f32 %v358, %v358
        %v588 = vmul.f32 %v363, %v363
        %v589 = vmul.f32 %v368, %v368
        %v590 = vmul.f32 %v373, %v373
        %v591 = vmul.f32 %v378, %v378
        %v592 = vmul.f32 %v383, %v383
        %v593 = vmul.f32 %v388, %v388
        %v594 = vmul.f32 %v393, %v393
        %v595 = vmul.f32 %v398, %v398
        %v596 = vmul.f32 %v403, %v403
        %v597 = vmul.f32 %v408, %v408
        %v598 = vmul.f32 %v413, %v413
        %v599 = vmul.f32 %v418, %v418
        %v600 = vmul.f32 %v423, %v423
        %v601 = vmul.f32 %v428, %v428
        %v602 = vmul.f32 %v433, %v433
        %v603 = vmul.f32 %v438, %v438
        %v604 = vmul.f32 %v443, %v443
        %v605 = vmul.f32 %v448, %v448
        %v606 = vmul.f32 %v453, %v453
        %v607 = vmul.f32 %v458, %v458
        %v608 = vmul.f32 %v463, %v463
        %v609 = vmul.f32 %v468, %v468
        %v610 = vmul.f32 %v473, %v473
        %v611 = vmul.f32 %v478, %v478
        %v612 = vmul.f32 %v483, %v483
        %v613 = vmul.f32 %v488, %v488
        %v614 = vmul.f32 %v493, %v493
        %v615 = vmul.f32 %v498, %v498
        %v616 = vmul.f32 %v503, %v503
        %v617 = vmul.f32 %v508, %v508
        %v618 = vmul.f32 %v513, %v513
        %v619 = vadd.f32 %v587, %v588
        %v620 = vadd.f32 %v619, %v589
        %v621 = vadd.f32 %v620, %v590
        %v622 = vadd.f32 %v621, %v591
        %v623 = vadd.f32 %v622, %v592
        %v624 = vadd.f32 %v623, %v593
        %v625 = vadd.f32 %v624, %v594
        %v626 = vadd.f32 %v625, %v595
        %v627 = vadd.f32 %v626, %v596
        %v628 = vadd.f32 %v627, %v597
        %v629 = vadd.f32 %v628, %v598
        %v630 = vadd.f32 %v629, %v599
        %v631 = vadd.f32 %v630, %v600
        %v632 = vadd.f32 %v631, %v601
        %v633 = vadd.f32 %v632, %v602
        %v634 = vadd.f32 %v633, %v603
        %v635 = vadd.f32 %v634, %v604
        %v636 = vadd.f32 %v635, %v605
        %v637 = vadd.f32 %v636, %v606
        %v638 = vadd.f32 %v637, %v607
        %v639 = vadd.f32 %v638, %v608
        %v640 = vadd.f32 %v639, %v609
        %v641 = vadd.f32 %v640, %v610
        %v642 = vadd.f32 %v641, %v611
        %v643 = vadd.f32 %v642, %v612
        %v644 = vadd.f32 %v643, %v613
        %v645 = vadd.f32 %v644, %v614
        %v646 = vadd.f32 %v645, %v615
        %v647 = vadd.f32 %v646, %v616
        %v648 = vadd.f32 %v647, %v617
        %v649 = vadd.f32 %v648, %v618
        %v650 = vrot.slane %v649, 4
        %v651 = vadd.f32 %v649, %v650
        %v652 = vrot.slane %v651, 2
        %v653 = vadd.f32 %v651, %v652
        %v654 = vrot.slane %v653, 1
        %v655 = vadd.f32 %v653, %v654
        %p656 = scmp.eq.s32.totalorder %s20, 0
        // Predicated region
        $region41: #{discriminator_forward.4} parent=39 // pred_check
          %p657 = pneg %p656
        $region42: #{discriminator_forward.4} parent=39 // pred_check_branch
          %659 = sbr.rel (%p657) target = $region44
        $region43: #{discriminator_forward.4} parent=39 // pred_region
          %660 = vst [vmem:[#allocation3] sm:$0x1] %v586
          %661 = vst [vmem:[#allocation4] sm:$0x1] %v655
        $region44: #{discriminator_forward.4} parent=39 // pred_fallthru
          _
        %p662 = scmp.ne.s32.totalorder %s20, 0
        // Predicated region
        $region45: #{discriminator_forward.4} parent=39 // pred_check
          %p663 = pneg %p662
        $region46: #{discriminator_forward.4} parent=39 // pred_check_branch
          %665 = sbr.rel (%p663) target = $region48
        $region47: #{discriminator_forward.4} parent=39 // pred_region
          %v666 = vld [vmem:[#allocation3] sm:$0x1]
          %v667 = vadd.f32 %v666, %v586
          %668 = vst [vmem:[#allocation3] sm:$0x1] %v667
          %v669 = vld [vmem:[#allocation4] sm:$0x1]
          %v670 = vadd.f32 %v669, %v655
          %671 = vst [vmem:[#allocation4] sm:$0x1] %v670
        $region48: #{discriminator_forward.4} parent=39 // pred_fallthru
          _
      $region40: #{discriminator_forward.4} parent=35 // pred_fallthru
        _
      %p672 = scmp.eq.s32.totalorder %s19, 1
      %p673 = scmp.eq.s32.totalorder %s20, 0
      %p674 = pnand %p672, %p673
      %p675 = pneg %p674
      // Predicated region
      $region49: #{discriminator_forward.4} parent=35 // pred_check
        _
      $region50: #{discriminator_forward.4} parent=35 // pred_check_branch
        %677 = sbr.rel (%p674) target = $region52
      $region51: #{discriminator_forward.4} parent=35 // pred_region
        %v678 = vld [vmem:[#allocation3] sm:$0x1]
        %v679 = vmul.f32 %v678, 0.001953125
        %v680 = vld [vmem:[#allocation4] sm:$0x1]
        %v681 = vmul.f32 %v680, 0.001953125
        %v682 = vmul.f32 %v679, %v679
        %v683 = vsub.f32 %v681, %v682
        %v684 = vmax.f32 %v683, 0.0
        %v685 = vadd.f32 %v684, 1e-05
        %v686 = vrsqrt.pop %v685
        %v687 = vld [vmem:[%s2] sm:$0x1]
        %v688 = vmul.f32 %v687, %v686
        %689 = vst [vmem:[#allocation5] sm:$0x1] %v688
        %v690 = vld [vmem:[%s3] sm:$0x1]
        %v691 = vmul.f32 %v679, %v688
        %v692 = vsub.f32 %v690, %v691
        %693 = vst [vmem:[#allocation6] sm:$0x1] %v692
      $region52: #{discriminator_forward.4} parent=35 // pred_fallthru
        _
      // Predicated region
      $region53: #{discriminator_forward.4} parent=35 // pred_check
        %p694 = pneg %p672
      $region54: #{discriminator_forward.4} parent=35 // pred_check_branch
        %696 = sbr.rel (%p694) target = $region56
      $region55: #{discriminator_forward.4} parent=35 // pred_region
        %s697 = smul.u32 %s20, 256
        %s698 = scalar_lea.vmem [#allocation2], %s697
        %v699 = vld [vmem:[%s698] sm:$0xff]
        %v700 = vld [vmem:[%s698 + $0x8] sm:$0xff]
        %v701 = vld [vmem:[%s698 + $0x10] sm:$0xff]
        %v702 = vld [vmem:[%s698 + $0x18] sm:$0xff]
        %v703 = vld [vmem:[%s698 + $0x20] sm:$0xff]
        %v704 = vld [vmem:[%s698 + $0x28] sm:$0xff]
        %v705 = vld [vmem:[%s698 + $0x30] sm:$0xff]
        %v706 = vld [vmem:[%s698 + $0x38] sm:$0xff]
        %v707 = vld [vmem:[%s698 + $0x40] sm:$0xff]
        %v708 = vld [vmem:[%s698 + $0x48] sm:$0xff]
        %v709 = vld [vmem:[%s698 + $0x50] sm:$0xff]
        %v710 = vld [vmem:[%s698 + $0x58] sm:$0xff]
        %v711 = vld [vmem:[%s698 + $0x60] sm:$0xff]
        %v712 = vld [vmem:[%s698 + $0x68] sm:$0xff]
        %v713 = vld [vmem:[%s698 + $0x70] sm:$0xff]
        %v714 = vld [vmem:[%s698 + $0x78] sm:$0xff]
        %v715 = vld [vmem:[%s698 + $0x80] sm:$0xff]
        %v716 = vld [vmem:[%s698 + $0x88] sm:$0xff]
        %v717 = vld [vmem:[%s698 + $0x90] sm:$0xff]
        %v718 = vld [vmem:[%s698 + $0x98] sm:$0xff]
        %v719 = vld [vmem:[%s698 + $0xa0] sm:$0xff]
        %v720 = vld [vmem:[%s698 + $0xa8] sm:$0xff]
        %v721 = vld [vmem:[%s698 + $0xb0] sm:$0xff]
        %v722 = vld [vmem:[%s698 + $0xb8] sm:$0xff]
        %v723 = vld [vmem:[%s698 + $0xc0] sm:$0xff]
        %v724 = vld [vmem:[%s698 + $0xc8] sm:$0xff]
        %v725 = vld [vmem:[%s698 + $0xd0] sm:$0xff]
        %v726 = vld [vmem:[%s698 + $0xd8] sm:$0xff]
        %v727 = vld [vmem:[%s698 + $0xe0] sm:$0xff]
        %v728 = vld [vmem:[%s698 + $0xe8] sm:$0xff]
        %v729 = vld [vmem:[%s698 + $0xf0] sm:$0xff]
        %v730 = vld [vmem:[%s698 + $0xf8] sm:$0xff]
        %v731 = vld [vmem:[#allocation5] sm:$0x1]
        %v733 = vlaneseq
        %v734 = vshrl.u32 %v733, 7
        %v735 = vsub.s32 0, %v734
        %v736 = vrot.slane %v731, %v735
        %v738 = vmul.f32 %v699, %v736
        %v739 = vmul.f32 %v700, %v736
        %v740 = vmul.f32 %v701, %v736
        %v741 = vmul.f32 %v702, %v736
        %v742 = vmul.f32 %v703, %v736
        %v743 = vmul.f32 %v704, %v736
        %v744 = vmul.f32 %v705, %v736
        %v745 = vmul.f32 %v706, %v736
        %v746 = vmul.f32 %v707, %v736
        %v747 = vmul.f32 %v708, %v736
        %v748 = vmul.f32 %v709, %v736
        %v749 = vmul.f32 %v710, %v736
        %v750 = vmul.f32 %v711, %v736
        %v751 = vmul.f32 %v712, %v736
        %v752 = vmul.f32 %v713, %v736
        %v753 = vmul.f32 %v714, %v736
        %v754 = vmul.f32 %v715, %v736
        %v755 = vmul.f32 %v716, %v736
        %v756 = vmul.f32 %v717, %v736
        %v757 = vmul.f32 %v718, %v736
        %v758 = vmul.f32 %v719, %v736
        %v759 = vmul.f32 %v720, %v736
        %v760 = vmul.f32 %v721, %v736
        %v761 = vmul.f32 %v722, %v736
        %v762 = vmul.f32 %v723, %v736
        %v763 = vmul.f32 %v724, %v736
        %v764 = vmul.f32 %v725, %v736
        %v765 = vmul.f32 %v726, %v736
        %v766 = vmul.f32 %v727, %v736
        %v767 = vmul.f32 %v728, %v736
        %v768 = vmul.f32 %v729, %v736
        %v769 = vmul.f32 %v730, %v736
        %v770 = vld [vmem:[#allocation6] sm:$0x1]
        %v772 = vlaneseq
        %v773 = vshrl.u32 %v772, 7
        %v774 = vsub.s32 0, %v773
        %v775 = vrot.slane %v770, %v774
        %v777 = vadd.f32 %v738, %v775
        %v778 = vadd.f32 %v739, %v775
        %v779 = vadd.f32 %v740, %v775
        %v780 = vadd.f32 %v741, %v775
        %v781 = vadd.f32 %v742, %v775
        %v782 = vadd.f32 %v743, %v775
        %v783 = vadd.f32 %v744, %v775
        %v784 = vadd.f32 %v745, %v775
        %v785 = vadd.f32 %v746, %v775
        %v786 = vadd.f32 %v747, %v775
        %v787 = vadd.f32 %v748, %v775
        %v788 = vadd.f32 %v749, %v775
        %v789 = vadd.f32 %v750, %v775
        %v790 = vadd.f32 %v751, %v775
        %v791 = vadd.f32 %v752, %v775
        %v792 = vadd.f32 %v753, %v775
        %v793 = vadd.f32 %v754, %v775
        %v794 = vadd.f32 %v755, %v775
        %v795 = vadd.f32 %v756, %v775
        %v796 = vadd.f32 %v757, %v775
        %v797 = vadd.f32 %v758, %v775
        %v798 = vadd.f32 %v759, %v775
        %v799 = vadd.f32 %v760, %v775
        %v800 = vadd.f32 %v761, %v775
        %v801 = vadd.f32 %v762, %v775
        %v802 = vadd.f32 %v763, %v775
        %v803 = vadd.f32 %v764, %v775
        %v804 = vadd.f32 %v765, %v775
        %v805 = vadd.f32 %v766, %v775
        %v806 = vadd.f32 %v767, %v775
        %v807 = vadd.f32 %v768, %v775
        %v808 = vadd.f32 %v769, %v775
        %v809 = vmax.f32 %v777, 0.0
        %v810 = vmax.f32 %v778, 0.0
        %v811 = vmax.f32 %v779, 0.0
        %v812 = vmax.f32 %v780, 0.0
        %v813 = vmax.f32 %v781, 0.0
        %v814 = vmax.f32 %v782, 0.0
        %v815 = vmax.f32 %v783, 0.0
        %v816 = vmax.f32 %v784, 0.0
        %v817 = vmax.f32 %v785, 0.0
        %v818 = vmax.f32 %v786, 0.0
        %v819 = vmax.f32 %v787, 0.0
        %v820 = vmax.f32 %v788, 0.0
        %v821 = vmax.f32 %v789, 0.0
        %v822 = vmax.f32 %v790, 0.0
        %v823 = vmax.f32 %v791, 0.0
        %v824 = vmax.f32 %v792, 0.0
        %v825 = vmax.f32 %v793, 0.0
        %v826 = vmax.f32 %v794, 0.0
        %v827 = vmax.f32 %v795, 0.0
        %v828 = vmax.f32 %v796, 0.0
        %v829 = vmax.f32 %v797, 0.0
        %v830 = vmax.f32 %v798, 0.0
        %v831 = vmax.f32 %v799, 0.0
        %v832 = vmax.f32 %v800, 0.0
        %v833 = vmax.f32 %v801, 0.0
        %v834 = vmax.f32 %v802, 0.0
        %v835 = vmax.f32 %v803, 0.0
        %v836 = vmax.f32 %v804, 0.0
        %v837 = vmax.f32 %v805, 0.0
        %v838 = vmax.f32 %v806, 0.0
        %v839 = vmax.f32 %v807, 0.0
        %v840 = vmax.f32 %v808, 0.0
        %841 = vst [vmem:[%s236] sm:$0xff] %v809
        %842 = vst [vmem:[%s236 + $0x8] sm:$0xff] %v810
        %843 = vst [vmem:[%s236 + $0x10] sm:$0xff] %v811
        %844 = vst [vmem:[%s236 + $0x18] sm:$0xff] %v812
        %845 = vst [vmem:[%s236 + $0x20] sm:$0xff] %v813
        %846 = vst [vmem:[%s236 + $0x28] sm:$0xff] %v814
        %847 = vst [vmem:[%s236 + $0x30] sm:$0xff] %v815
        %848 = vst [vmem:[%s236 + $0x38] sm:$0xff] %v816
        %849 = vst [vmem:[%s236 + $0x40] sm:$0xff] %v817
        %850 = vst [vmem:[%s236 + $0x48] sm:$0xff] %v818
        %851 = vst [vmem:[%s236 + $0x50] sm:$0xff] %v819
        %852 = vst [vmem:[%s236 + $0x58] sm:$0xff] %v820
        %853 = vst [vmem:[%s236 + $0x60] sm:$0xff] %v821
        %854 = vst [vmem:[%s236 + $0x68] sm:$0xff] %v822
        %855 = vst [vmem:[%s236 + $0x70] sm:$0xff] %v823
        %856 = vst [vmem:[%s236 + $0x78] sm:$0xff] %v824
        %857 = vst [vmem:[%s236 + $0x80] sm:$0xff] %v825
        %858 = vst [vmem:[%s236 + $0x88] sm:$0xff] %v826
        %859 = vst [vmem:[%s236 + $0x90] sm:$0xff] %v827
        %860 = vst [vmem:[%s236 + $0x98] sm:$0xff] %v828
        %861 = vst [vmem:[%s236 + $0xa0] sm:$0xff] %v829
        %862 = vst [vmem:[%s236 + $0xa8] sm:$0xff] %v830
        %863 = vst [vmem:[%s236 + $0xb0] sm:$0xff] %v831
        %864 = vst [vmem:[%s236 + $0xb8] sm:$0xff] %v832
        %865 = vst [vmem:[%s236 + $0xc0] sm:$0xff] %v833
        %866 = vst [vmem:[%s236 + $0xc8] sm:$0xff] %v834
        %867 = vst [vmem:[%s236 + $0xd0] sm:$0xff] %v835
        %868 = vst [vmem:[%s236 + $0xd8] sm:$0xff] %v836
        %869 = vst [vmem:[%s236 + $0xe0] sm:$0xff] %v837
        %870 = vst [vmem:[%s236 + $0xe8] sm:$0xff] %v838
        %871 = vst [vmem:[%s236 + $0xf0] sm:$0xff] %v839
        %872 = vst [vmem:[%s236 + $0xf8] sm:$0xff] %v840
      $region56: #{discriminator_forward.4} parent=35 // pred_fallthru
        _
      %s873 = smul.u32 %s20, %s19
      %s874 = smul.u32 32, %s873
      %p875 = scmp.lt.s32.totalorder %s874, 63
      %s876 = scalar_select %p875, %s874, 63
      %s877 = smul.addr %s876, 8
      %s878 = scalar_lea.vmem %s4, %s877
      // Predicated region
      $region57: #{discriminator_forward.4} parent=35 // pred_check
        %p879 = pneg %p142
      $region58: #{discriminator_forward.4} parent=35 // pred_check_branch
        %881 = sbr.rel (%p879) target = $region60
      $region59: #{discriminator_forward.4} parent=35 // pred_region
        %s882 = smul.u32 %s20, %s19
        %s883 = smul.u32 32, %s882
      $region60: #{discriminator_forward.4} parent=35 // pred_fallthru
        _
    $region36: #{discriminator_forward.4} parent=5 // pred_fallthru
      _
    %p884 = scmp.le.s32.totalorder 2, %s10
    // Predicated region
    $region61: #{discriminator_forward.4} parent=5 // pred_check
      %p885 = pneg %p884
    $region62: #{discriminator_forward.4} parent=5 // pred_check_branch
      %887 = sbr.rel (%p885) target = $region64
    $region63: #{discriminator_forward.4} parent=5 // pred_region
      %s888 = ssub.s32 %s10, 2
      // Predicated region
      $region65: #{discriminator_forward.4} parent=63 // pred_check
        %p889 = pneg %p148
      $region66: #{discriminator_forward.4} parent=63 // pred_check_branch
        %891 = sbr.rel (%p889) target = $region68
      $region67: #{discriminator_forward.4} parent=63 // pred_region
        %s892 = smul.u32 %s22, %s21
        %s893 = smul.u32 32, %s892
        %p894 = scmp.lt.s32.totalorder %s893, 63
        %s895 = scalar_select %p894, %s893, 63
        %s896 = smul.addr %s895, 8
        %s897 = scalar_lea.vmem %s4, %s896
      $region68: #{discriminator_forward.4} parent=63 // pred_fallthru
        _
    $region64: #{discriminator_forward.4} parent=5 // pred_fallthru
      _
  $region6: #{discriminator_forward.4} parent=0 // loop_footer
    %s14 = sadd.s32 1, %s10
  $region7: #{discriminator_forward.4} parent=0 // loop_footer_branch
    %9 = sbr.rel target = $region3
  $region8: #{discriminator_forward.4} parent=0 // loop_exit
    _

// kernel: discriminator_forward.5
$region0: #{discriminator_forward.5}
  #allocation0 [shape = 'u32[]', space=smem, size = 0x4, offset = 0x4, fixed_abs, tag = 'smem constant byte address 0x4 - core index']
  #allocation1 [shape = 'u32[144,128]{1,0:T(1,128)}', space=vmem, size = 0x12000, scoped, tag = 'internal scratch']
  #allocation2 [shape = 'f32[1,128,128]{2,1,0:T(8,128)}', space=vmem, size = 0x10000, scoped, tag = 'scratch operand']
  #allocation3 [shape = 'f32[1,128]{1,0:T(1,128)}', space=vmem, size = 0x200, scoped, tag = 'scratch operand']
  #allocation4 [shape = 'f32[1,128]{1,0:T(1,128)}', space=vmem, size = 0x200, scoped, tag = 'scratch operand']
  #allocation5 [shape = 'f32[1,128]{1,0:T(1,128)}', space=vmem, size = 0x200, scoped, tag = 'scratch operand']
  #allocation6 [shape = 'f32[1,128]{1,0:T(1,128)}', space=vmem, size = 0x200, scoped, tag = 'scratch operand']
  %s0 = inlined_call_operand.vmem [shape: f32[128,256], index: 0, kind: input, shape index: {}]
  %s1 = inlined_call_operand.vmem [shape: f32[256,128], index: 1, kind: input, shape index: {}]
  %s2 = inlined_call_operand.vmem [shape: f32[1,128], index: 2, kind: input, shape index: {}]
  %s3 = inlined_call_operand.vmem [shape: f32[1,128], index: 3, kind: input, shape index: {}]
  %s4 = inlined_call_operand.vmem [shape: f32[128,128], index: 4, kind: output, shape index: {}]
  %s5 = sld [smem:[#allocation0]]
  $region69: #{discriminator_forward.5} parent=0
    _
  %s7 = ssub.s32 1, %s5
  %s8 = scalar_select 0, %s7, %s5
  loop: start=0, step=1, limit=4
  $region2: #{discriminator_forward.5} parent=0 // loop_pre_header
    _
  $region3: #{discriminator_forward.5} parent=0 // loop_header
    %s10 = sphi 0, %s14
    %p11 = scmp.ge.s32.totalorder %s10, 4
    %s17 = sphi 0, %s29
    %s18 = sphi 0, %s25
    %s19 = sphi 0, %s17
    %s20 = sphi 0, %s18
    %s21 = sphi 0, %s19
    %s22 = sphi 0, %s20
    %s36 = sphi 0, %s38
    %s39 = sphi 0, %s36
    %s40 = sphi 0, %s39
    %s56 = sphi 0, %s40
    %s60 = sphi 0, %s60
    %s62 = sphi 0, %s60
    %s63 = sphi 0, %s62
    %s77 = sphi 0, %s63
    %s81 = sphi 0, %s81
    %s83 = sphi 0, %s81
    %s84 = sphi 0, %s83
    %s98 = sphi 0, %s84
    %s102 = sphi 0, %s102
    %s104 = sphi 0, %s102
    %s105 = sphi 0, %s104
    %s119 = sphi 0, %s105
    %s127 = sphi 0, %s129
    %s130 = sphi 0, %s127
    %s131 = sphi 0, %s130
    %s147 = sphi 0, %s131
  $region4: #{discriminator_forward.5} parent=0 // loop_header_branch
    %13 = sbr.rel (%p11) target = $region8
  $region5: #{discriminator_forward.5} parent=0 // loop_body
    %s15 = ssub.s32 %s10, 1
    %s16 = ssub.s32 %s10, 2
    %s23 = sadd.s32 1, %s18
    %p24 = scmp.ge.s32.totalorder %s23, 1
    %s25 = scalar_select %p24, 0, %s23
    %s26 = sadd.s32 1, %s17
    %s27 = scalar_select %p24, %s26, %s17
    %p28 = scmp.ge.s32.totalorder %s27, 2
    %s29 = scalar_select %p28, 0, %s27
    %s30 = ssub.s32 1, %s17
    %s31 = smul.u32 %s18, %s30
    %s32 = ssub.s32 1, %s29
    %s33 = smul.u32 %s25, %s32
    %s34 = ssub.s32 %s31, %s33
    %p35 = scmp.eq.s32.totalorder %s34, 0
    %s37 = sadd.s32 %s36, 1
    %s38 = scalar_select %p35, %s36, %s37
    %p41 = pneg %p35
    %p42 = scmp.eq.s32.totalorder %s10, 1
    %p43 = por %p41, %p42
    %p44 = scmp.ne.s32.totalorder %s36, %s39
    %p45 = scmp.eq.s32.totalorder %s10, 0
    %p46 = por %p44, %p45
    %p47 = scmp.ne.s32.totalorder %s36, %s39
    %p48 = scmp.eq.s32.totalorder %s15, 1
    %p49 = por %p47, %p48
    %p50 = scmp.ne.s32.totalorder %s39, %s40
    %p51 = scmp.eq.s32.totalorder %s15, 0
    %p52 = por %p50, %p51
    %p53 = scmp.ne.s32.totalorder %s39, %s40
    %p54 = scmp.eq.s32.totalorder %s16, 1
    %p55 = por %p53, %p54
    %p57 = scmp.ne.s32.totalorder %s40, %s56
    %p58 = scmp.eq.s32.totalorder %s16, 0
    %p59 = por %p57, %p58
    %s61 = sadd.s32 %s60, 1
    %p64 = scmp.eq.s32.totalorder %s10, 1
    %p65 = scmp.ne.s32.totalorder %s60, %s62
    %p66 = scmp.eq.s32.totalorder %s10, 0
    %p67 = por %p65, %p66
    %p68 = scmp.ne.s32.totalorder %s60, %s62
    %p69 = scmp.eq.s32.totalorder %s15, 1
    %p70 = por %p68, %p69
    %p71 = scmp.ne.s32.totalorder %s62, %s63
    %p72 = scmp.eq.s32.totalorder %s15, 0
    %p73 = por %p71, %p72
    %p74 = scmp.ne.s32.totalorder %s62, %s63
    %p75 = scmp.eq.s32.totalorder %s16, 1
    %p76 = por %p74, %p75
    %p78 = scmp.ne.s32.totalorder %s63, %s77
    %p79 = scmp.eq.s32.totalorder %s16, 0
    %p80 = por %p78, %p79
    %s82 = sadd.s32 %s81, 1
    %p85 = scmp.eq.s32.totalorder %s10, 1
    %p86 = scmp.ne.s32.totalorder %s81, %s83
    %p87 = scmp.eq.s32.totalorder %s10, 0
    %p88 = por %p86, %p87
    %p89 = scmp.ne.s32.totalorder %s81, %s83
    %p90 = scmp.eq.s32.totalorder %s15, 1
    %p91 = por %p89, %p90
    %p92 = scmp.ne.s32.totalorder %s83, %s84
    %p93 = scmp.eq.s32.totalorder %s15, 0
    %p94 = por %p92, %p93
    %p95 = scmp.ne.s32.totalorder %s83, %s84
    %p96 = scmp.eq.s32.totalorder %s16, 1
    %p97 = por %p95, %p96
    %p99 = scmp.ne.s32.totalorder %s84, %s98
    %p100 = scmp.eq.s32.totalorder %s16, 0
    %p101 = por %p99, %p100
    %s103 = sadd.s32 %s102, 1
    %p106 = scmp.eq.s32.totalorder %s10, 1
    %p107 = scmp.ne.s32.totalorder %s102, %s104
    %p108 = scmp.eq.s32.totalorder %s10, 0
    %p109 = por %p107, %p108
    %p110 = scmp.ne.s32.totalorder %s102, %s104
    %p111 = scmp.eq.s32.totalorder %s15, 1
    %p112 = por %p110, %p111
    %p113 = scmp.ne.s32.totalorder %s104, %s105
    %p114 = scmp.eq.s32.totalorder %s15, 0
    %p115 = por %p113, %p114
    %p116 = scmp.ne.s32.totalorder %s104, %s105
    %p117 = scmp.eq.s32.totalorder %s16, 1
    %p118 = por %p116, %p117
    %p120 = scmp.ne.s32.totalorder %s105, %s119
    %p121 = scmp.eq.s32.totalorder %s16, 0
    %p122 = por %p120, %p121
    %s123 = smul.u32 %s18, %s17
    %s124 = smul.u32 %s25, %s29
    %s125 = ssub.s32 %s123, %s124
    %p126 = scmp.eq.s32.totalorder %s125, 0
    %s128 = sadd.s32 %s127, 1
    %s129 = scalar_select %p126, %s127, %s128
    %p132 = pneg %p126
    %p133 = scmp.eq.s32.totalorder %s10, 1
    %p134 = por %p132, %p133
    %p135 = scmp.ne.s32.totalorder %s127, %s130
    %p136 = scmp.eq.s32.totalorder %s10, 0
    %p137 = por %p135, %p136
    %p138 = scmp.ne.s32.totalorder %s127, %s130
    %p139 = scmp.eq.s32.totalorder %s15, 1
    %p140 = por %p138, %p139
    %p141 = scmp.ne.s32.totalorder %s130, %s131
    %p142 = scmp.eq.s32.totalorder %s15, 0
    %p143 = por %p141, %p142
    %p144 = scmp.ne.s32.totalorder %s130, %s131
    %p145 = scmp.eq.s32.totalorder %s16, 1
    %p146 = por %p144, %p145
    %p148 = scmp.ne.s32.totalorder %s131, %s147
    %p149 = scmp.eq.s32.totalorder %s16, 0
    %p150 = por %p148, %p149
    %p151 = scmp.le.s32.totalorder 1, %s10
    %p152 = scmp.lt.s32.totalorder %s10, 3
    %p153 = pnand %p151, %p152
    %p154 = pneg %p153
    // Predicated region
    $region9: #{discriminator_forward.5} parent=5 // pred_check
      _
    $region10: #{discriminator_forward.5} parent=5 // pred_check_branch
      %156 = sbr.rel (%p153) target = $region12
    $region11: #{discriminator_forward.5} parent=5 // pred_region
      %s157 = ssub.s32 %s10, 1
      // Predicated region
      $region13: #{discriminator_forward.5} parent=11 // pred_check
        %p158 = pneg %p73
      $region14: #{discriminator_forward.5} parent=11 // pred_check_branch
        %160 = sbr.rel (%p158) target = $region16
      $region15: #{discriminator_forward.5} parent=11 // pred_region
        _
      $region16: #{discriminator_forward.5} parent=11 // pred_fallthru
        _
      // Predicated region
      $region17: #{discriminator_forward.5} parent=11 // pred_check
        %p161 = pneg %p94
      $region18: #{discriminator_forward.5} parent=11 // pred_check_branch
        %163 = sbr.rel (%p161) target = $region20
      $region19: #{discriminator_forward.5} parent=11 // pred_region
        _
      $region20: #{discriminator_forward.5} parent=11 // pred_fallthru
        _
      // Predicated region
      $region21: #{discriminator_forward.5} parent=11 // pred_check
        %p164 = pneg %p115
      $region22: #{discriminator_forward.5} parent=11 // pred_check_branch
        %166 = sbr.rel (%p164) target = $region24
      $region23: #{discriminator_forward.5} parent=11 // pred_region
        _
      $region24: #{discriminator_forward.5} parent=11 // pred_fallthru
        _
    $region12: #{discriminator_forward.5} parent=5 // pred_fallthru
      _
    %p167 = scmp.lt.s32.totalorder %s10, 2
    // Predicated region
    $region25: #{discriminator_forward.5} parent=5 // pred_check
      %p168 = pneg %p167
    $region26: #{discriminator_forward.5} parent=5 // pred_check_branch
      %170 = sbr.rel (%p168) target = $region28
    $region27: #{discriminator_forward.5} parent=5 // pred_region
      // Predicated region
      $region29: #{discriminator_forward.5} parent=27 // pred_check
        %p171 = pneg %p46
      $region30: #{discriminator_forward.5} parent=27 // pred_check_branch
        %173 = sbr.rel (%p171) target = $region32
      $region31: #{discriminator_forward.5} parent=27 // pred_region
        %s174 = ssub.s32 1, %s17
        %s175 = smul.u32 %s18, %s174
        %s176 = smul.u32 16, %s175
        %p177 = scmp.lt.s32.totalorder %s176, 15
        %s178 = scalar_select %p177, %s176, 15
        %s179 = smul.addr %s178, 2
        %s180 = smul.addr %s179, 8
        %s181 = scalar_lea.vmem %s0, %s180
        %s182 = ssub.s32 1, %s17
        %s183 = smul.u32 %s18, %s182
        %s184 = smul.u32 16, %s183
      $region32: #{discriminator_forward.5} parent=27 // pred_fallthru
        _
    $region28: #{discriminator_forward.5} parent=5 // pred_fallthru
      _
    %p185 = scmp.le.s32.totalorder 1, %s10
    %p186 = scmp.lt.s32.totalorder %s10, 3
    %p187 = pnand %p185, %p186
    %p188 = pneg %p187
    // Predicated region
    $region33: #{discriminator_forward.5} parent=5 // pred_check
      _
    $region34: #{discriminator_forward.5} parent=5 // pred_check_branch
      %190 = sbr.rel (%p187) target = $region36
    $region35: #{discriminator_forward.5} parent=5 // pred_region
      %s191 = ssub.s32 %s10, 1
      %s192 = ssub.s32 1, %s19
      %s193 = smul.u32 %s20, %s192
      %s194 = smul.u32 16, %s193
      %p195 = scmp.lt.s32.totalorder %s194, 15
      %s196 = scalar_select %p195, %s194, 15
      %s197 = smul.addr %s196, 2
      %s198 = smul.addr %s197, 8
      %s199 = scalar_lea.vmem %s0, %s198
      %p200 = pneg %p52
      %p201 = pneg %p49
      %p202 = pneg %p73
      %p203 = pneg %p70
      %p204 = pneg %p94
      %p205 = pneg %p91
      %p206 = pneg %p115
      %p207 = pneg %p112
      %p208 = pneg %p143
      %p209 = pneg %p140
      %s210 = smul.u32 %s20, %s19
      %s211 = smul.u32 16, %s210
      %p212 = scmp.lt.s32.totalorder %s211, 15
      %s213 = scalar_select %p212, %s211, 15
      %s214 = smul.addr %s213, 8
      %s215 = scalar_lea.vmem %s4, %s214
      %s216 = ssub.s32 1, %s19
      %s217 = smul.u32 %s20, %s216
      %s218 = smul.u32 16, %s217
      %p219 = scmp.lt.s32.totalorder %s218, 15
      %s220 = scalar_select %p219, %s218, 15
      %s221 = smul.addr %s220, 2
      %s222 = smul.addr %s221, 8
      %s223 = scalar_lea.vmem %s0, %s222
      %s224 = ssub.s32 1, %s19
      %s225 = smul.u32 %s20, %s224
      %s226 = smul.u32 16, %s225
      %s227 = smul.u32 %s20, %s19
      %s228 = smul.u32 16, %s227
      %p229 = scmp.lt.s32.totalorder %s228, 15
      %s230 = scalar_select %p229, %s228, 15
      %s231 = smul.addr %s230, 8
      %s232 = scalar_lea.vmem %s4, %s231
      %s233 = smul.u32 %s20, %s19
      %s234 = smul.u32 16, %s233
      %p235 = scmp.eq.s32.totalorder %s19, 0
      // Predicated region
      $region37: #{discriminator_forward.5} parent=35 // pred_check
        %p236 = pneg %p235
      $region38: #{discriminator_forward.5} parent=35 // pred_check_branch
        %238 = sbr.rel (%p236) target = $region40
      $region39: #{discriminator_forward.5} parent=35 // pred_region
        %v239 = vld [vmem:[%s223] sm:$0xff]
        %v240 = vld [vmem:[%s223 + $0x8] sm:$0xff]
        %v241 = vld [vmem:[%s223 + $0x10] sm:$0xff]
        %v242 = vld [vmem:[%s223 + $0x18] sm:$0xff]
        %v243 = vld [vmem:[%s223 + $0x20] sm:$0xff]
        %v244 = vld [vmem:[%s223 + $0x28] sm:$0xff]
        %v245 = vld [vmem:[%s223 + $0x30] sm:$0xff]
        %v246 = vld [vmem:[%s223 + $0x38] sm:$0xff]
        %v247 = vld [vmem:[%s223 + $0x40] sm:$0xff]
        %v248 = vld [vmem:[%s223 + $0x48] sm:$0xff]
        %v249 = vld [vmem:[%s223 + $0x50] sm:$0xff]
        %v250 = vld [vmem:[%s223 + $0x58] sm:$0xff]
        %v251 = vld [vmem:[%s223 + $0x60] sm:$0xff]
        %v252 = vld [vmem:[%s223 + $0x68] sm:$0xff]
        %v253 = vld [vmem:[%s223 + $0x70] sm:$0xff]
        %v254 = vld [vmem:[%s223 + $0x78] sm:$0xff]
        %v255 = vld [vmem:[%s223 + $0x80] sm:$0xff]
        %v256 = vld [vmem:[%s223 + $0x88] sm:$0xff]
        %v257 = vld [vmem:[%s223 + $0x90] sm:$0xff]
        %v258 = vld [vmem:[%s223 + $0x98] sm:$0xff]
        %v259 = vld [vmem:[%s223 + $0xa0] sm:$0xff]
        %v260 = vld [vmem:[%s223 + $0xa8] sm:$0xff]
        %v261 = vld [vmem:[%s223 + $0xb0] sm:$0xff]
        %v262 = vld [vmem:[%s223 + $0xb8] sm:$0xff]
        %v263 = vld [vmem:[%s223 + $0xc0] sm:$0xff]
        %v264 = vld [vmem:[%s223 + $0xc8] sm:$0xff]
        %v265 = vld [vmem:[%s223 + $0xd0] sm:$0xff]
        %v266 = vld [vmem:[%s223 + $0xd8] sm:$0xff]
        %v267 = vld [vmem:[%s223 + $0xe0] sm:$0xff]
        %v268 = vld [vmem:[%s223 + $0xe8] sm:$0xff]
        %v269 = vld [vmem:[%s223 + $0xf0] sm:$0xff]
        %v270 = vld [vmem:[%s223 + $0xf8] sm:$0xff]
        %v271 = vld [vmem:[%s1] sm:$0xff]
        %v272 = vld [vmem:[%s1 + $0x8] sm:$0xff]
        %v273 = vld [vmem:[%s1 + $0x10] sm:$0xff]
        %v274 = vld [vmem:[%s1 + $0x18] sm:$0xff]
        %v275 = vld [vmem:[%s1 + $0x20] sm:$0xff]
        %v276 = vld [vmem:[%s1 + $0x28] sm:$0xff]
        %v277 = vld [vmem:[%s1 + $0x30] sm:$0xff]
        %v278 = vld [vmem:[%s1 + $0x38] sm:$0xff]
        %v279 = vld [vmem:[%s1 + $0x40] sm:$0xff]
        %v280 = vld [vmem:[%s1 + $0x48] sm:$0xff]
        %v281 = vld [vmem:[%s1 + $0x50] sm:$0xff]
        %v282 = vld [vmem:[%s1 + $0x58] sm:$0xff]
        %v283 = vld [vmem:[%s1 + $0x60] sm:$0xff]
        %v284 = vld [vmem:[%s1 + $0x68] sm:$0xff]
        %v285 = vld [vmem:[%s1 + $0x70] sm:$0xff]
        %v286 = vld [vmem:[%s1 + $0x78] sm:$0xff]
        %v287 = vld [vmem:[%s1 + $0x80] sm:$0xff]
        %v288 = vld [vmem:[%s1 + $0x88] sm:$0xff]
        %v289 = vld [vmem:[%s1 + $0x90] sm:$0xff]
        %v290 = vld [vmem:[%s1 + $0x98] sm:$0xff]
        %v291 = vld [vmem:[%s1 + $0xa0] sm:$0xff]
        %v292 = vld [vmem:[%s1 + $0xa8] sm:$0xff]
        %v293 = vld [vmem:[%s1 + $0xb0] sm:$0xff]
        %v294 = vld [vmem:[%s1 + $0xb8] sm:$0xff]
        %v295 = vld [vmem:[%s1 + $0xc0] sm:$0xff]
        %v296 = vld [vmem:[%s1 + $0xc8] sm:$0xff]
        %v297 = vld [vmem:[%s1 + $0xd0] sm:$0xff]
        %v298 = vld [vmem:[%s1 + $0xd8] sm:$0xff]
        %v299 = vld [vmem:[%s1 + $0xe0] sm:$0xff]
        %v300 = vld [vmem:[%s1 + $0xe8] sm:$0xff]
        %v301 = vld [vmem:[%s1 + $0xf0] sm:$0xff]
        %v302 = vld [vmem:[%s1 + $0xf8] sm:$0xff]
        %303 = vmatprep.subr.mxu0 0.0
        %304 = vmatpush1.msra.mxu0 %v286
        %305 = vmatprep.subr.mxu0 0.0
        %306 = vmatpush1.msra.mxu0 %v285
        %307 = vmatprep.subr.mxu0 0.0
        %308 = vmatpush1.msra.mxu0 %v284
        %309 = vmatprep.subr.mxu0 0.0
        %310 = vmatpush1.msra.mxu0 %v283
        %311 = vmatprep.subr.mxu0 0.0
        %312 = vmatpush1.msra.mxu0 %v282
        %313 = vmatprep.subr.mxu0 0.0
        %314 = vmatpush1.msra.mxu0 %v281
        %315 = vmatprep.subr.mxu0 0.0
        %316 = vmatpush1.msra.mxu0 %v280
        %317 = vmatprep.subr.mxu0 0.0
        %318 = vmatpush1.msra.mxu0 %v279
        %319 = vmatprep.subr.mxu0 0.0
        %320 = vmatpush1.msra.mxu0 %v278
        %321 = vmatprep.subr.mxu0 0.0
        %322 = vmatpush1.msra.mxu0 %v277
        %323 = vmatprep.subr.mxu0 0.0
        %324 = vmatpush1.msra.mxu0 %v276
        %325 = vmatprep.subr.mxu0 0.0
        %326 = vmatpush1.msra.mxu0 %v275
        %327 = vmatprep.subr.mxu0 0.0
        %328 = vmatpush1.msra.mxu0 %v274
        %329 = vmatprep.subr.mxu0 0.0
        %330 = vmatpush1.msra.mxu0 %v273
        %331 = vmatprep.subr.mxu0 0.0
        %332 = vmatpush1.msra.mxu0 %v272
        %333 = vmatprep.subr.mxu0 0.0
        %334 = vmatpush1.msra.mxu0 %v271
        %335 = vmatprep.subr.mxu0 0.0
        %336 = vmatpush2.msra.mxu0 %v302
        %337 = vmatprep.subr.mxu0 0.0
        %338 = vmatpush2.msra.mxu0 %v301
        %339 = vmatprep.subr.mxu0 0.0
        %340 = vmatpush2.msra.mxu0 %v300
        %341 = vmatprep.subr.mxu0 0.0
        %342 = vmatpush2.msra.mxu0 %v299
        %343 = vmatprep.subr.mxu0 0.0
        %344 = vmatpush2.msra.mxu0 %v298
        %345 = vmatprep.subr.mxu0 0.0
        %346 = vmatpush2.msra.mxu0 %v297
        %347 = vmatprep.subr.mxu0 0.0
        %348 = vmatpush2.msra.mxu0 %v296
        %349 = vmatprep.subr.mxu0 0.0
        %350 = vmatpush2.msra.mxu0 %v295
        %351 = vmatprep.subr.mxu0 0.0
        %352 = vmatpush2.msra.mxu0 %v294
        %353 = vmatprep.subr.mxu0 0.0
        %354 = vmatpush2.msra.mxu0 %v293
        %355 = vmatprep.subr.mxu0 0.0
        %356 = vmatpush2.msra.mxu0 %v292
        %357 = vmatprep.subr.mxu0 0.0
        %358 = vmatpush2.msra.mxu0 %v291
        %359 = vmatprep.subr.mxu0 0.0
        %360 = vmatpush2.msra.mxu0 %v290
        %361 = vmatprep.subr.mxu0 0.0
        %362 = vmatpush2.msra.mxu0 %v289
        %363 = vmatprep.subr.mxu0 0.0
        %364 = vmatpush2.msra.mxu0 %v288
        %365 = vmatprep.subr.mxu0 0.0
        %366 = vmatpush2.msra.mxu0 %v287
        %367 = vmatprep.mubr.f32.mxu0 %v240
        %368 = vmatmul.mubr.f32.gmra.mxu0 %v239
        %v369 = vpop.f32.mrf.mxu0
        %v370 = vadd.f32 0.0, %v369
        %v371 = vpop.f32.mrf.mxu0
        %372 = vmatprep.mubr.f32.mxu0 %v242
        %373 = vmatmul.mubr.f32.gmra.mxu0 %v241
        %v374 = vpop.f32.mrf.mxu0
        %v375 = vadd.f32 0.0, %v374
        %v376 = vpop.f32.mrf.mxu0
        %377 = vmatprep.mubr.f32.mxu0 %v244
        %378 = vmatmul.mubr.f32.gmra.mxu0 %v243
        %v379 = vpop.f32.mrf.mxu0
        %v380 = vadd.f32 0.0, %v379
        %v381 = vpop.f32.mrf.mxu0
        %382 = vmatprep.mubr.f32.mxu0 %v246
        %383 = vmatmul.mubr.f32.gmra.mxu0 %v245
        %v384 = vpop.f32.mrf.mxu0
        %v385 = vadd.f32 0.0, %v384
        %v386 = vpop.f32.mrf.mxu0
        %387 = vmatprep.mubr.f32.mxu0 %v248
        %388 = vmatmul.mubr.f32.gmra.mxu0 %v247
        %v389 = vpop.f32.mrf.mxu0
        %v390 = vadd.f32 0.0, %v389
        %v391 = vpop.f32.mrf.mxu0
        %392 = vmatprep.mubr.f32.mxu0 %v250
        %393 = vmatmul.mubr.f32.gmra.mxu0 %v249
        %v394 = vpop.f32.mrf.mxu0
        %v395 = vadd.f32 0.0, %v394
        %v396 = vpop.f32.mrf.mxu0
        %397 = vmatprep.mubr.f32.mxu0 %v252
        %398 = vmatmul.mubr.f32.gmra.mxu0 %v251
        %v399 = vpop.f32.mrf.mxu0
        %v400 = vadd.f32 0.0, %v399
        %v401 = vpop.f32.mrf.mxu0
        %402 = vmatprep.mubr.f32.mxu0 %v254
        %403 = vmatmul.mubr.f32.gmra.mxu0 %v253
        %v404 = vpop.f32.mrf.mxu0
        %v405 = vadd.f32 0.0, %v404
        %v406 = vpop.f32.mrf.mxu0
        %407 = vmatprep.mubr.f32.mxu0 %v256
        %408 = vmatmul.mubr.f32.gmra.mxu0 %v255
        %v409 = vpop.f32.mrf.mxu0
        %v410 = vadd.f32 0.0, %v409
        %v411 = vpop.f32.mrf.mxu0
        %412 = vmatprep.mubr.f32.mxu0 %v258
        %413 = vmatmul.mubr.f32.gmra.mxu0 %v257
        %v414 = vpop.f32.mrf.mxu0
        %v415 = vadd.f32 0.0, %v414
        %v416 = vpop.f32.mrf.mxu0
        %417 = vmatprep.mubr.f32.mxu0 %v260
        %418 = vmatmul.mubr.f32.gmra.mxu0 %v259
        %v419 = vpop.f32.mrf.mxu0
        %v420 = vadd.f32 0.0, %v419
        %v421 = vpop.f32.mrf.mxu0
        %422 = vmatprep.mubr.f32.mxu0 %v262
        %423 = vmatmul.mubr.f32.gmra.mxu0 %v261
        %v424 = vpop.f32.mrf.mxu0
        %v425 = vadd.f32 0.0, %v424
        %v426 = vpop.f32.mrf.mxu0
        %427 = vmatprep.mubr.f32.mxu0 %v264
        %428 = vmatmul.mubr.f32.gmra.mxu0 %v263
        %v429 = vpop.f32.mrf.mxu0
        %v430 = vadd.f32 0.0, %v429
        %v431 = vpop.f32.mrf.mxu0
        %432 = vmatprep.mubr.f32.mxu0 %v266
        %433 = vmatmul.mubr.f32.gmra.mxu0 %v265
        %v434 = vpop.f32.mrf.mxu0
        %v435 = vadd.f32 0.0, %v434
        %v436 = vpop.f32.mrf.mxu0
        %437 = vmatprep.mubr.f32.mxu0 %v268
        %438 = vmatmul.mubr.f32.gmra.mxu0 %v267
        %v439 = vpop.f32.mrf.mxu0
        %v440 = vadd.f32 0.0, %v439
        %v441 = vpop.f32.mrf.mxu0
        %442 = vmatprep.mubr.f32.mxu0 %v270
        %443 = vmatmul.mubr.f32.gmra.mxu0 %v269
        %v444 = vpop.f32.mrf.mxu0
        %v445 = vadd.f32 0.0, %v444
        %v446 = vpop.f32.mrf.mxu0
        %447 = vdwg.mxu0
        %s448 = smul.u32 %s20, 128
        %s449 = scalar_lea.vmem [#allocation2], %s448
        %450 = vst [vmem:[%s449] sm:$0xff] %v370
        %451 = vst [vmem:[%s449 + $0x8] sm:$0xff] %v375
        %452 = vst [vmem:[%s449 + $0x10] sm:$0xff] %v380
        %453 = vst [vmem:[%s449 + $0x18] sm:$0xff] %v385
        %454 = vst [vmem:[%s449 + $0x20] sm:$0xff] %v390
        %455 = vst [vmem:[%s449 + $0x28] sm:$0xff] %v395
        %456 = vst [vmem:[%s449 + $0x30] sm:$0xff] %v400
        %457 = vst [vmem:[%s449 + $0x38] sm:$0xff] %v405
        %458 = vst [vmem:[%s449 + $0x40] sm:$0xff] %v410
        %459 = vst [vmem:[%s449 + $0x48] sm:$0xff] %v415
        %460 = vst [vmem:[%s449 + $0x50] sm:$0xff] %v420
        %461 = vst [vmem:[%s449 + $0x58] sm:$0xff] %v425
        %462 = vst [vmem:[%s449 + $0x60] sm:$0xff] %v430
        %463 = vst [vmem:[%s449 + $0x68] sm:$0xff] %v435
        %464 = vst [vmem:[%s449 + $0x70] sm:$0xff] %v440
        %465 = vst [vmem:[%s449 + $0x78] sm:$0xff] %v445
        %v466 = vadd.f32 %v370, %v375
        %v467 = vadd.f32 %v466, %v380
        %v468 = vadd.f32 %v467, %v385
        %v469 = vadd.f32 %v468, %v390
        %v470 = vadd.f32 %v469, %v395
        %v471 = vadd.f32 %v470, %v400
        %v472 = vadd.f32 %v471, %v405
        %v473 = vadd.f32 %v472, %v410
        %v474 = vadd.f32 %v473, %v415
        %v475 = vadd.f32 %v474, %v420
        %v476 = vadd.f32 %v475, %v425
        %v477 = vadd.f32 %v476, %v430
        %v478 = vadd.f32 %v477, %v435
        %v479 = vadd.f32 %v478, %v440
        %v480 = vadd.f32 %v479, %v445
        %v481 = vrot.slane %v480, 4
        %v482 = vadd.f32 %v480, %v481
        %v483 = vrot.slane %v482, 2
        %v484 = vadd.f32 %v482, %v483
        %v485 = vrot.slane %v484, 1
        %v486 = vadd.f32 %v484, %v485
        %v487 = vmul.f32 %v370, %v370
        %v488 = vmul.f32 %v375, %v375
        %v489 = vmul.f32 %v380, %v380
        %v490 = vmul.f32 %v385, %v385
        %v491 = vmul.f32 %v390, %v390
        %v492 = vmul.f32 %v395, %v395
        %v493 = vmul.f32 %v400, %v400
        %v494 = vmul.f32 %v405, %v405
        %v495 = vmul.f32 %v410, %v410
        %v496 = vmul.f32 %v415, %v415
        %v497 = vmul.f32 %v420, %v420
        %v498 = vmul.f32 %v425, %v425
        %v499 = vmul.f32 %v430, %v430
        %v500 = vmul.f32 %v435, %v435
        %v501 = vmul.f32 %v440, %v440
        %v502 = vmul.f32 %v445, %v445
        %v503 = vadd.f32 %v487, %v488
        %v504 = vadd.f32 %v503, %v489
        %v505 = vadd.f32 %v504, %v490
        %v506 = vadd.f32 %v505, %v491
        %v507 = vadd.f32 %v506, %v492
        %v508 = vadd.f32 %v507, %v493
        %v509 = vadd.f32 %v508, %v494
        %v510 = vadd.f32 %v509, %v495
        %v511 = vadd.f32 %v510, %v496
        %v512 = vadd.f32 %v511, %v497
        %v513 = vadd.f32 %v512, %v498
        %v514 = vadd.f32 %v513, %v499
        %v515 = vadd.f32 %v514, %v500
        %v516 = vadd.f32 %v515, %v501
        %v517 = vadd.f32 %v516, %v502
        %v518 = vrot.slane %v517, 4
        %v519 = vadd.f32 %v517, %v518
        %v520 = vrot.slane %v519, 2
        %v521 = vadd.f32 %v519, %v520
        %v522 = vrot.slane %v521, 1
        %v523 = vadd.f32 %v521, %v522
        %p524 = scmp.eq.s32.totalorder %s20, 0
        // Predicated region
        $region41: #{discriminator_forward.5} parent=39 // pred_check
          %p525 = pneg %p524
        $region42: #{discriminator_forward.5} parent=39 // pred_check_branch
          %527 = sbr.rel (%p525) target = $region44
        $region43: #{discriminator_forward.5} parent=39 // pred_region
          %528 = vst [vmem:[#allocation3] sm:$0x1] %v486
          %529 = vst [vmem:[#allocation4] sm:$0x1] %v523
        $region44: #{discriminator_forward.5} parent=39 // pred_fallthru
          _
        %p530 = scmp.ne.s32.totalorder %s20, 0
        // Predicated region
        $region45: #{discriminator_forward.5} parent=39 // pred_check
          %p531 = pneg %p530
        $region46: #{discriminator_forward.5} parent=39 // pred_check_branch
          %533 = sbr.rel (%p531) target = $region48
        $region47: #{discriminator_forward.5} parent=39 // pred_region
          %v534 = vld [vmem:[#allocation3] sm:$0x1]
          %v535 = vadd.f32 %v534, %v486
          %536 = vst [vmem:[#allocation3] sm:$0x1] %v535
          %v537 = vld [vmem:[#allocation4] sm:$0x1]
          %v538 = vadd.f32 %v537, %v523
          %539 = vst [vmem:[#allocation4] sm:$0x1] %v538
        $region48: #{discriminator_forward.5} parent=39 // pred_fallthru
          _
      $region40: #{discriminator_forward.5} parent=35 // pred_fallthru
        _
      %p540 = scmp.eq.s32.totalorder %s19, 1
      %p541 = scmp.eq.s32.totalorder %s20, 0
      %p542 = pnand %p540, %p541
      %p543 = pneg %p542
      // Predicated region
      $region49: #{discriminator_forward.5} parent=35 // pred_check
        _
      $region50: #{discriminator_forward.5} parent=35 // pred_check_branch
        %545 = sbr.rel (%p542) target = $region52
      $region51: #{discriminator_forward.5} parent=35 // pred_region
        %v546 = vld [vmem:[#allocation3] sm:$0x1]
        %v547 = vmul.f32 %v546, 0.0078125
        %v548 = vld [vmem:[#allocation4] sm:$0x1]
        %v549 = vmul.f32 %v548, 0.0078125
        %v550 = vmul.f32 %v547, %v547
        %v551 = vsub.f32 %v549, %v550
        %v552 = vmax.f32 %v551, 0.0
        %v553 = vadd.f32 %v552, 1e-05
        %v554 = vrsqrt.pop %v553
        %v555 = vld [vmem:[%s2] sm:$0x1]
        %v556 = vmul.f32 %v555, %v554
        %557 = vst [vmem:[#allocation5] sm:$0x1] %v556
        %v558 = vld [vmem:[%s3] sm:$0x1]
        %v559 = vmul.f32 %v547, %v556
        %v560 = vsub.f32 %v558, %v559
        %561 = vst [vmem:[#allocation6] sm:$0x1] %v560
      $region52: #{discriminator_forward.5} parent=35 // pred_fallthru
        _
      // Predicated region
      $region53: #{discriminator_forward.5} parent=35 // pred_check
        %p562 = pneg %p540
      $region54: #{discriminator_forward.5} parent=35 // pred_check_branch
        %564 = sbr.rel (%p562) target = $region56
      $region55: #{discriminator_forward.5} parent=35 // pred_region
        %s565 = smul.u32 %s20, 128
        %s566 = scalar_lea.vmem [#allocation2], %s565
        %v567 = vld [vmem:[%s566] sm:$0xff]
        %v568 = vld [vmem:[%s566 + $0x8] sm:$0xff]
        %v569 = vld [vmem:[%s566 + $0x10] sm:$0xff]
        %v570 = vld [vmem:[%s566 + $0x18] sm:$0xff]
        %v571 = vld [vmem:[%s566 + $0x20] sm:$0xff]
        %v572 = vld [vmem:[%s566 + $0x28] sm:$0xff]
        %v573 = vld [vmem:[%s566 + $0x30] sm:$0xff]
        %v574 = vld [vmem:[%s566 + $0x38] sm:$0xff]
        %v575 = vld [vmem:[%s566 + $0x40] sm:$0xff]
        %v576 = vld [vmem:[%s566 + $0x48] sm:$0xff]
        %v577 = vld [vmem:[%s566 + $0x50] sm:$0xff]
        %v578 = vld [vmem:[%s566 + $0x58] sm:$0xff]
        %v579 = vld [vmem:[%s566 + $0x60] sm:$0xff]
        %v580 = vld [vmem:[%s566 + $0x68] sm:$0xff]
        %v581 = vld [vmem:[%s566 + $0x70] sm:$0xff]
        %v582 = vld [vmem:[%s566 + $0x78] sm:$0xff]
        %v583 = vld [vmem:[#allocation5] sm:$0x1]
        %v585 = vlaneseq
        %v586 = vshrl.u32 %v585, 7
        %v587 = vsub.s32 0, %v586
        %v588 = vrot.slane %v583, %v587
        %v590 = vmul.f32 %v567, %v588
        %v591 = vmul.f32 %v568, %v588
        %v592 = vmul.f32 %v569, %v588
        %v593 = vmul.f32 %v570, %v588
        %v594 = vmul.f32 %v571, %v588
        %v595 = vmul.f32 %v572, %v588
        %v596 = vmul.f32 %v573, %v588
        %v597 = vmul.f32 %v574, %v588
        %v598 = vmul.f32 %v575, %v588
        %v599 = vmul.f32 %v576, %v588
        %v600 = vmul.f32 %v577, %v588
        %v601 = vmul.f32 %v578, %v588
        %v602 = vmul.f32 %v579, %v588
        %v603 = vmul.f32 %v580, %v588
        %v604 = vmul.f32 %v581, %v588
        %v605 = vmul.f32 %v582, %v588
        %v606 = vld [vmem:[#allocation6] sm:$0x1]
        %v608 = vlaneseq
        %v609 = vshrl.u32 %v608, 7
        %v610 = vsub.s32 0, %v609
        %v611 = vrot.slane %v606, %v610
        %v613 = vadd.f32 %v590, %v611
        %v614 = vadd.f32 %v591, %v611
        %v615 = vadd.f32 %v592, %v611
        %v616 = vadd.f32 %v593, %v611
        %v617 = vadd.f32 %v594, %v611
        %v618 = vadd.f32 %v595, %v611
        %v619 = vadd.f32 %v596, %v611
        %v620 = vadd.f32 %v597, %v611
        %v621 = vadd.f32 %v598, %v611
        %v622 = vadd.f32 %v599, %v611
        %v623 = vadd.f32 %v600, %v611
        %v624 = vadd.f32 %v601, %v611
        %v625 = vadd.f32 %v602, %v611
        %v626 = vadd.f32 %v603, %v611
        %v627 = vadd.f32 %v604, %v611
        %v628 = vadd.f32 %v605, %v611
        %v629 = vmax.f32 %v613, 0.0
        %v630 = vmax.f32 %v614, 0.0
        %v631 = vmax.f32 %v615, 0.0
        %v632 = vmax.f32 %v616, 0.0
        %v633 = vmax.f32 %v617, 0.0
        %v634 = vmax.f32 %v618, 0.0
        %v635 = vmax.f32 %v619, 0.0
        %v636 = vmax.f32 %v620, 0.0
        %v637 = vmax.f32 %v621, 0.0
        %v638 = vmax.f32 %v622, 0.0
        %v639 = vmax.f32 %v623, 0.0
        %v640 = vmax.f32 %v624, 0.0
        %v641 = vmax.f32 %v625, 0.0
        %v642 = vmax.f32 %v626, 0.0
        %v643 = vmax.f32 %v627, 0.0
        %v644 = vmax.f32 %v628, 0.0
        %645 = vst [vmem:[%s232] sm:$0xff] %v629
        %646 = vst [vmem:[%s232 + $0x8] sm:$0xff] %v630
        %647 = vst [vmem:[%s232 + $0x10] sm:$0xff] %v631
        %648 = vst [vmem:[%s232 + $0x18] sm:$0xff] %v632
        %649 = vst [vmem:[%s232 + $0x20] sm:$0xff] %v633
        %650 = vst [vmem:[%s232 + $0x28] sm:$0xff] %v634
        %651 = vst [vmem:[%s232 + $0x30] sm:$0xff] %v635
        %652 = vst [vmem:[%s232 + $0x38] sm:$0xff] %v636
        %653 = vst [vmem:[%s232 + $0x40] sm:$0xff] %v637
        %654 = vst [vmem:[%s232 + $0x48] sm:$0xff] %v638
        %655 = vst [vmem:[%s232 + $0x50] sm:$0xff] %v639
        %656 = vst [vmem:[%s232 + $0x58] sm:$0xff] %v640
        %657 = vst [vmem:[%s232 + $0x60] sm:$0xff] %v641
        %658 = vst [vmem:[%s232 + $0x68] sm:$0xff] %v642
        %659 = vst [vmem:[%s232 + $0x70] sm:$0xff] %v643
        %660 = vst [vmem:[%s232 + $0x78] sm:$0xff] %v644
      $region56: #{discriminator_forward.5} parent=35 // pred_fallthru
        _
      %s661 = smul.u32 %s20, %s19
      %s662 = smul.u32 16, %s661
      %p663 = scmp.lt.s32.totalorder %s662, 15
      %s664 = scalar_select %p663, %s662, 15
      %s665 = smul.addr %s664, 8
      %s666 = scalar_lea.vmem %s4, %s665
      // Predicated region
      $region57: #{discriminator_forward.5} parent=35 // pred_check
        %p667 = pneg %p140
      $region58: #{discriminator_forward.5} parent=35 // pred_check_branch
        %669 = sbr.rel (%p667) target = $region60
      $region59: #{discriminator_forward.5} parent=35 // pred_region
        %s670 = smul.u32 %s20, %s19
        %s671 = smul.u32 16, %s670
      $region60: #{discriminator_forward.5} parent=35 // pred_fallthru
        _
    $region36: #{discriminator_forward.5} parent=5 // pred_fallthru
      _
    %p672 = scmp.le.s32.totalorder 2, %s10
    // Predicated region
    $region61: #{discriminator_forward.5} parent=5 // pred_check
      %p673 = pneg %p672
    $region62: #{discriminator_forward.5} parent=5 // pred_check_branch
      %675 = sbr.rel (%p673) target = $region64
    $region63: #{discriminator_forward.5} parent=5 // pred_region
      %s676 = ssub.s32 %s10, 2
      // Predicated region
      $region65: #{discriminator_forward.5} parent=63 // pred_check
        %p677 = pneg %p146
      $region66: #{discriminator_forward.5} parent=63 // pred_check_branch
        %679 = sbr.rel (%p677) target = $region68
      $region67: #{discriminator_forward.5} parent=63 // pred_region
        %s680 = smul.u32 %s22, %s21
        %s681 = smul.u32 16, %s680
        %p682 = scmp.lt.s32.totalorder %s681, 15
        %s683 = scalar_select %p682, %s681, 15
        %s684 = smul.addr %s683, 8
        %s685 = scalar_lea.vmem %s4, %s684
      $region68: #{discriminator_forward.5} parent=63 // pred_fallthru
        _
    $region64: #{discriminator_forward.5} parent=5 // pred_fallthru
      _
  $region6: #{discriminator_forward.5} parent=0 // loop_footer
    %s14 = sadd.s32 1, %s10
  $region7: #{discriminator_forward.5} parent=0 // loop_footer_branch
    %9 = sbr.rel target = $region3
  $region8: #{discriminator_forward.5} parent=0 // loop_exit
    _

// kernel: discriminator_forward.6
$region0: #{discriminator_forward.6}
  #allocation0 [shape = 'u32[]', space=smem, size = 0x4, offset = 0x4, fixed_abs, tag = 'smem constant byte address 0x4 - core index']
  #allocation1 [shape = 'u32[144,128]{1,0:T(1,128)}', space=vmem, size = 0x12000, scoped, tag = 'internal scratch']
  #allocation2 [shape = 'f32[1,32,128]{2,1,0:T(8,128)}', space=vmem, size = 0x4000, scoped, tag = 'scratch operand']
  #allocation3 [shape = 'f32[1,128]{1,0:T(1,128)}', space=vmem, size = 0x200, scoped, tag = 'scratch operand']
  #allocation4 [shape = 'f32[1,128]{1,0:T(1,128)}', space=vmem, size = 0x200, scoped, tag = 'scratch operand']
  #allocation5 [shape = 'f32[1,128]{1,0:T(1,128)}', space=vmem, size = 0x200, scoped, tag = 'scratch operand']
  #allocation6 [shape = 'f32[1,128]{1,0:T(1,128)}', space=vmem, size = 0x200, scoped, tag = 'scratch operand']
  %s0 = inlined_call_operand.vmem [shape: f32[32,512], index: 0, kind: input, shape index: {}]
  %s1 = inlined_call_operand.vmem [shape: f32[512,128], index: 1, kind: input, shape index: {}]
  %s2 = inlined_call_operand.vmem [shape: f32[1,128], index: 2, kind: input, shape index: {}]
  %s3 = inlined_call_operand.vmem [shape: f32[1,128], index: 3, kind: input, shape index: {}]
  %s4 = inlined_call_operand.vmem [shape: f32[32,128], index: 4, kind: output, shape index: {}]
  %s5 = sld [smem:[#allocation0]]
  $region69: #{discriminator_forward.6} parent=0
    _
  %s7 = ssub.s32 1, %s5
  %s8 = scalar_select 0, %s7, %s5
  loop: start=0, step=1, limit=4
  $region2: #{discriminator_forward.6} parent=0 // loop_pre_header
    _
  $region3: #{discriminator_forward.6} parent=0 // loop_header
    %s10 = sphi 0, %s14
    %p11 = scmp.ge.s32.totalorder %s10, 4
    %s17 = sphi 0, %s29
    %s18 = sphi 0, %s25
    %s19 = sphi 0, %s17
    %s20 = sphi 0, %s18
    %s21 = sphi 0, %s19
    %s22 = sphi 0, %s20
    %s36 = sphi 0, %s38
    %s39 = sphi 0, %s36
    %s40 = sphi 0, %s39
    %s56 = sphi 0, %s40
    %s60 = sphi 0, %s60
    %s62 = sphi 0, %s60
    %s63 = sphi 0, %s62
    %s77 = sphi 0, %s63
    %s81 = sphi 0, %s81
    %s83 = sphi 0, %s81
    %s84 = sphi 0, %s83
    %s98 = sphi 0, %s84
    %s102 = sphi 0, %s102
    %s104 = sphi 0, %s102
    %s105 = sphi 0, %s104
    %s119 = sphi 0, %s105
    %s127 = sphi 0, %s129
    %s130 = sphi 0, %s127
    %s131 = sphi 0, %s130
    %s147 = sphi 0, %s131
  $region4: #{discriminator_forward.6} parent=0 // loop_header_branch
    %13 = sbr.rel (%p11) target = $region8
  $region5: #{discriminator_forward.6} parent=0 // loop_body
    %s15 = ssub.s32 %s10, 1
    %s16 = ssub.s32 %s10, 2
    %s23 = sadd.s32 1, %s18
    %p24 = scmp.ge.s32.totalorder %s23, 1
    %s25 = scalar_select %p24, 0, %s23
    %s26 = sadd.s32 1, %s17
    %s27 = scalar_select %p24, %s26, %s17
    %p28 = scmp.ge.s32.totalorder %s27, 2
    %s29 = scalar_select %p28, 0, %s27
    %s30 = ssub.s32 1, %s17
    %s31 = smul.u32 %s18, %s30
    %s32 = ssub.s32 1, %s29
    %s33 = smul.u32 %s25, %s32
    %s34 = ssub.s32 %s31, %s33
    %p35 = scmp.eq.s32.totalorder %s34, 0
    %s37 = sadd.s32 %s36, 1
    %s38 = scalar_select %p35, %s36, %s37
    %p41 = pneg %p35
    %p42 = scmp.eq.s32.totalorder %s10, 1
    %p43 = por %p41, %p42
    %p44 = scmp.ne.s32.totalorder %s36, %s39
    %p45 = scmp.eq.s32.totalorder %s10, 0
    %p46 = por %p44, %p45
    %p47 = scmp.ne.s32.totalorder %s36, %s39
    %p48 = scmp.eq.s32.totalorder %s15, 1
    %p49 = por %p47, %p48
    %p50 = scmp.ne.s32.totalorder %s39, %s40
    %p51 = scmp.eq.s32.totalorder %s15, 0
    %p52 = por %p50, %p51
    %p53 = scmp.ne.s32.totalorder %s39, %s40
    %p54 = scmp.eq.s32.totalorder %s16, 1
    %p55 = por %p53, %p54
    %p57 = scmp.ne.s32.totalorder %s40, %s56
    %p58 = scmp.eq.s32.totalorder %s16, 0
    %p59 = por %p57, %p58
    %s61 = sadd.s32 %s60, 1
    %p64 = scmp.eq.s32.totalorder %s10, 1
    %p65 = scmp.ne.s32.totalorder %s60, %s62
    %p66 = scmp.eq.s32.totalorder %s10, 0
    %p67 = por %p65, %p66
    %p68 = scmp.ne.s32.totalorder %s60, %s62
    %p69 = scmp.eq.s32.totalorder %s15, 1
    %p70 = por %p68, %p69
    %p71 = scmp.ne.s32.totalorder %s62, %s63
    %p72 = scmp.eq.s32.totalorder %s15, 0
    %p73 = por %p71, %p72
    %p74 = scmp.ne.s32.totalorder %s62, %s63
    %p75 = scmp.eq.s32.totalorder %s16, 1
    %p76 = por %p74, %p75
    %p78 = scmp.ne.s32.totalorder %s63, %s77
    %p79 = scmp.eq.s32.totalorder %s16, 0
    %p80 = por %p78, %p79
    %s82 = sadd.s32 %s81, 1
    %p85 = scmp.eq.s32.totalorder %s10, 1
    %p86 = scmp.ne.s32.totalorder %s81, %s83
    %p87 = scmp.eq.s32.totalorder %s10, 0
    %p88 = por %p86, %p87
    %p89 = scmp.ne.s32.totalorder %s81, %s83
    %p90 = scmp.eq.s32.totalorder %s15, 1
    %p91 = por %p89, %p90
    %p92 = scmp.ne.s32.totalorder %s83, %s84
    %p93 = scmp.eq.s32.totalorder %s15, 0
    %p94 = por %p92, %p93
    %p95 = scmp.ne.s32.totalorder %s83, %s84
    %p96 = scmp.eq.s32.totalorder %s16, 1
    %p97 = por %p95, %p96
    %p99 = scmp.ne.s32.totalorder %s84, %s98
    %p100 = scmp.eq.s32.totalorder %s16, 0
    %p101 = por %p99, %p100
    %s103 = sadd.s32 %s102, 1
    %p106 = scmp.eq.s32.totalorder %s10, 1
    %p107 = scmp.ne.s32.totalorder %s102, %s104
    %p108 = scmp.eq.s32.totalorder %s10, 0
    %p109 = por %p107, %p108
    %p110 = scmp.ne.s32.totalorder %s102, %s104
    %p111 = scmp.eq.s32.totalorder %s15, 1
    %p112 = por %p110, %p111
    %p113 = scmp.ne.s32.totalorder %s104, %s105
    %p114 = scmp.eq.s32.totalorder %s15, 0
    %p115 = por %p113, %p114
    %p116 = scmp.ne.s32.totalorder %s104, %s105
    %p117 = scmp.eq.s32.totalorder %s16, 1
    %p118 = por %p116, %p117
    %p120 = scmp.ne.s32.totalorder %s105, %s119
    %p121 = scmp.eq.s32.totalorder %s16, 0
    %p122 = por %p120, %p121
    %s123 = smul.u32 %s18, %s17
    %s124 = smul.u32 %s25, %s29
    %s125 = ssub.s32 %s123, %s124
    %p126 = scmp.eq.s32.totalorder %s125, 0
    %s128 = sadd.s32 %s127, 1
    %s129 = scalar_select %p126, %s127, %s128
    %p132 = pneg %p126
    %p133 = scmp.eq.s32.totalorder %s10, 1
    %p134 = por %p132, %p133
    %p135 = scmp.ne.s32.totalorder %s127, %s130
    %p136 = scmp.eq.s32.totalorder %s10, 0
    %p137 = por %p135, %p136
    %p138 = scmp.ne.s32.totalorder %s127, %s130
    %p139 = scmp.eq.s32.totalorder %s15, 1
    %p140 = por %p138, %p139
    %p141 = scmp.ne.s32.totalorder %s130, %s131
    %p142 = scmp.eq.s32.totalorder %s15, 0
    %p143 = por %p141, %p142
    %p144 = scmp.ne.s32.totalorder %s130, %s131
    %p145 = scmp.eq.s32.totalorder %s16, 1
    %p146 = por %p144, %p145
    %p148 = scmp.ne.s32.totalorder %s131, %s147
    %p149 = scmp.eq.s32.totalorder %s16, 0
    %p150 = por %p148, %p149
    %p151 = scmp.le.s32.totalorder 1, %s10
    %p152 = scmp.lt.s32.totalorder %s10, 3
    %p153 = pnand %p151, %p152
    %p154 = pneg %p153
    // Predicated region
    $region9: #{discriminator_forward.6} parent=5 // pred_check
      _
    $region10: #{discriminator_forward.6} parent=5 // pred_check_branch
      %156 = sbr.rel (%p153) target = $region12
    $region11: #{discriminator_forward.6} parent=5 // pred_region
      %s157 = ssub.s32 %s10, 1
      // Predicated region
      $region13: #{discriminator_forward.6} parent=11 // pred_check
        %p158 = pneg %p73
      $region14: #{discriminator_forward.6} parent=11 // pred_check_branch
        %160 = sbr.rel (%p158) target = $region16
      $region15: #{discriminator_forward.6} parent=11 // pred_region
        _
      $region16: #{discriminator_forward.6} parent=11 // pred_fallthru
        _
      // Predicated region
      $region17: #{discriminator_forward.6} parent=11 // pred_check
        %p161 = pneg %p94
      $region18: #{discriminator_forward.6} parent=11 // pred_check_branch
        %163 = sbr.rel (%p161) target = $region20
      $region19: #{discriminator_forward.6} parent=11 // pred_region
        _
      $region20: #{discriminator_forward.6} parent=11 // pred_fallthru
        _
      // Predicated region
      $region21: #{discriminator_forward.6} parent=11 // pred_check
        %p164 = pneg %p115
      $region22: #{discriminator_forward.6} parent=11 // pred_check_branch
        %166 = sbr.rel (%p164) target = $region24
      $region23: #{discriminator_forward.6} parent=11 // pred_region
        _
      $region24: #{discriminator_forward.6} parent=11 // pred_fallthru
        _
    $region12: #{discriminator_forward.6} parent=5 // pred_fallthru
      _
    %p167 = scmp.lt.s32.totalorder %s10, 2
    // Predicated region
    $region25: #{discriminator_forward.6} parent=5 // pred_check
      %p168 = pneg %p167
    $region26: #{discriminator_forward.6} parent=5 // pred_check_branch
      %170 = sbr.rel (%p168) target = $region28
    $region27: #{discriminator_forward.6} parent=5 // pred_region
      // Predicated region
      $region29: #{discriminator_forward.6} parent=27 // pred_check
        %p171 = pneg %p46
      $region30: #{discriminator_forward.6} parent=27 // pred_check_branch
        %173 = sbr.rel (%p171) target = $region32
      $region31: #{discriminator_forward.6} parent=27 // pred_region
        %s174 = ssub.s32 1, %s17
        %s175 = smul.u32 %s18, %s174
        %s176 = smul.u32 4, %s175
        %p177 = scmp.lt.s32.totalorder %s176, 3
        %s178 = scalar_select %p177, %s176, 3
        %s179 = smul.addr %s178, 4
        %s180 = smul.addr %s179, 8
        %s181 = scalar_lea.vmem %s0, %s180
        %s182 = ssub.s32 1, %s17
        %s183 = smul.u32 %s18, %s182
        %s184 = smul.u32 4, %s183
      $region32: #{discriminator_forward.6} parent=27 // pred_fallthru
        _
    $region28: #{discriminator_forward.6} parent=5 // pred_fallthru
      _
    %p185 = scmp.le.s32.totalorder 1, %s10
    %p186 = scmp.lt.s32.totalorder %s10, 3
    %p187 = pnand %p185, %p186
    %p188 = pneg %p187
    // Predicated region
    $region33: #{discriminator_forward.6} parent=5 // pred_check
      _
    $region34: #{discriminator_forward.6} parent=5 // pred_check_branch
      %190 = sbr.rel (%p187) target = $region36
    $region35: #{discriminator_forward.6} parent=5 // pred_region
      %s191 = ssub.s32 %s10, 1
      %s192 = ssub.s32 1, %s19
      %s193 = smul.u32 %s20, %s192
      %s194 = smul.u32 4, %s193
      %p195 = scmp.lt.s32.totalorder %s194, 3
      %s196 = scalar_select %p195, %s194, 3
      %s197 = smul.addr %s196, 4
      %s198 = smul.addr %s197, 8
      %s199 = scalar_lea.vmem %s0, %s198
      %p200 = pneg %p52
      %p201 = pneg %p49
      %p202 = pneg %p73
      %p203 = pneg %p70
      %p204 = pneg %p94
      %p205 = pneg %p91
      %p206 = pneg %p115
      %p207 = pneg %p112
      %p208 = pneg %p143
      %p209 = pneg %p140
      %s210 = smul.u32 %s20, %s19
      %s211 = smul.u32 4, %s210
      %p212 = scmp.lt.s32.totalorder %s211, 3
      %s213 = scalar_select %p212, %s211, 3
      %s214 = smul.addr %s213, 8
      %s215 = scalar_lea.vmem %s4, %s214
      %s216 = ssub.s32 1, %s19
      %s217 = smul.u32 %s20, %s216
      %s218 = smul.u32 4, %s217
      %p219 = scmp.lt.s32.totalorder %s218, 3
      %s220 = scalar_select %p219, %s218, 3
      %s221 = smul.addr %s220, 4
      %s222 = smul.addr %s221, 8
      %s223 = scalar_lea.vmem %s0, %s222
      %s224 = ssub.s32 1, %s19
      %s225 = smul.u32 %s20, %s224
      %s226 = smul.u32 4, %s225
      %s227 = smul.u32 %s20, %s19
      %s228 = smul.u32 4, %s227
      %p229 = scmp.lt.s32.totalorder %s228, 3
      %s230 = scalar_select %p229, %s228, 3
      %s231 = smul.addr %s230, 8
      %s232 = scalar_lea.vmem %s4, %s231
      %s233 = smul.u32 %s20, %s19
      %s234 = smul.u32 4, %s233
      %p235 = scmp.eq.s32.totalorder %s19, 0
      // Predicated region
      $region37: #{discriminator_forward.6} parent=35 // pred_check
        %p236 = pneg %p235
      $region38: #{discriminator_forward.6} parent=35 // pred_check_branch
        %238 = sbr.rel (%p236) target = $region40
      $region39: #{discriminator_forward.6} parent=35 // pred_region
        %v239 = vld [vmem:[%s223] sm:$0xff]
        %v240 = vld [vmem:[%s223 + $0x8] sm:$0xff]
        %v241 = vld [vmem:[%s223 + $0x10] sm:$0xff]
        %v242 = vld [vmem:[%s223 + $0x18] sm:$0xff]
        %v243 = vld [vmem:[%s223 + $0x20] sm:$0xff]
        %v244 = vld [vmem:[%s223 + $0x28] sm:$0xff]
        %v245 = vld [vmem:[%s223 + $0x30] sm:$0xff]
        %v246 = vld [vmem:[%s223 + $0x38] sm:$0xff]
        %v247 = vld [vmem:[%s223 + $0x40] sm:$0xff]
        %v248 = vld [vmem:[%s223 + $0x48] sm:$0xff]
        %v249 = vld [vmem:[%s223 + $0x50] sm:$0xff]
        %v250 = vld [vmem:[%s223 + $0x58] sm:$0xff]
        %v251 = vld [vmem:[%s223 + $0x60] sm:$0xff]
        %v252 = vld [vmem:[%s223 + $0x68] sm:$0xff]
        %v253 = vld [vmem:[%s223 + $0x70] sm:$0xff]
        %v254 = vld [vmem:[%s223 + $0x78] sm:$0xff]
        %v255 = vld [vmem:[%s1] sm:$0xff]
        %v256 = vld [vmem:[%s1 + $0x8] sm:$0xff]
        %v257 = vld [vmem:[%s1 + $0x10] sm:$0xff]
        %v258 = vld [vmem:[%s1 + $0x18] sm:$0xff]
        %v259 = vld [vmem:[%s1 + $0x20] sm:$0xff]
        %v260 = vld [vmem:[%s1 + $0x28] sm:$0xff]
        %v261 = vld [vmem:[%s1 + $0x30] sm:$0xff]
        %v262 = vld [vmem:[%s1 + $0x38] sm:$0xff]
        %v263 = vld [vmem:[%s1 + $0x40] sm:$0xff]
        %v264 = vld [vmem:[%s1 + $0x48] sm:$0xff]
        %v265 = vld [vmem:[%s1 + $0x50] sm:$0xff]
        %v266 = vld [vmem:[%s1 + $0x58] sm:$0xff]
        %v267 = vld [vmem:[%s1 + $0x60] sm:$0xff]
        %v268 = vld [vmem:[%s1 + $0x68] sm:$0xff]
        %v269 = vld [vmem:[%s1 + $0x70] sm:$0xff]
        %v270 = vld [vmem:[%s1 + $0x78] sm:$0xff]
        %v271 = vld [vmem:[%s1 + $0x80] sm:$0xff]
        %v272 = vld [vmem:[%s1 + $0x88] sm:$0xff]
        %v273 = vld [vmem:[%s1 + $0x90] sm:$0xff]
        %v274 = vld [vmem:[%s1 + $0x98] sm:$0xff]
        %v275 = vld [vmem:[%s1 + $0xa0] sm:$0xff]
        %v276 = vld [vmem:[%s1 + $0xa8] sm:$0xff]
        %v277 = vld [vmem:[%s1 + $0xb0] sm:$0xff]
        %v278 = vld [vmem:[%s1 + $0xb8] sm:$0xff]
        %v279 = vld [vmem:[%s1 + $0xc0] sm:$0xff]
        %v280 = vld [vmem:[%s1 + $0xc8] sm:$0xff]
        %v281 = vld [vmem:[%s1 + $0xd0] sm:$0xff]
        %v282 = vld [vmem:[%s1 + $0xd8] sm:$0xff]
        %v283 = vld [vmem:[%s1 + $0xe0] sm:$0xff]
        %v284 = vld [vmem:[%s1 + $0xe8] sm:$0xff]
        %v285 = vld [vmem:[%s1 + $0xf0] sm:$0xff]
        %v286 = vld [vmem:[%s1 + $0xf8] sm:$0xff]
        %v287 = vld [vmem:[%s1 + $0x100] sm:$0xff]
        %v288 = vld [vmem:[%s1 + $0x108] sm:$0xff]
        %v289 = vld [vmem:[%s1 + $0x110] sm:$0xff]
        %v290 = vld [vmem:[%s1 + $0x118] sm:$0xff]
        %v291 = vld [vmem:[%s1 + $0x120] sm:$0xff]
        %v292 = vld [vmem:[%s1 + $0x128] sm:$0xff]
        %v293 = vld [vmem:[%s1 + $0x130] sm:$0xff]
        %v294 = vld [vmem:[%s1 + $0x138] sm:$0xff]
        %v295 = vld [vmem:[%s1 + $0x140] sm:$0xff]
        %v296 = vld [vmem:[%s1 + $0x148] sm:$0xff]
        %v297 = vld [vmem:[%s1 + $0x150] sm:$0xff]
        %v298 = vld [vmem:[%s1 + $0x158] sm:$0xff]
        %v299 = vld [vmem:[%s1 + $0x160] sm:$0xff]
        %v300 = vld [vmem:[%s1 + $0x168] sm:$0xff]
        %v301 = vld [vmem:[%s1 + $0x170] sm:$0xff]
        %v302 = vld [vmem:[%s1 + $0x178] sm:$0xff]
        %v303 = vld [vmem:[%s1 + $0x180] sm:$0xff]
        %v304 = vld [vmem:[%s1 + $0x188] sm:$0xff]
        %v305 = vld [vmem:[%s1 + $0x190] sm:$0xff]
        %v306 = vld [vmem:[%s1 + $0x198] sm:$0xff]
        %v307 = vld [vmem:[%s1 + $0x1a0] sm:$0xff]
        %v308 = vld [vmem:[%s1 + $0x1a8] sm:$0xff]
        %v309 = vld [vmem:[%s1 + $0x1b0] sm:$0xff]
        %v310 = vld [vmem:[%s1 + $0x1b8] sm:$0xff]
        %v311 = vld [vmem:[%s1 + $0x1c0] sm:$0xff]
        %v312 = vld [vmem:[%s1 + $0x1c8] sm:$0xff]
        %v313 = vld [vmem:[%s1 + $0x1d0] sm:$0xff]
        %v314 = vld [vmem:[%s1 + $0x1d8] sm:$0xff]
        %v315 = vld [vmem:[%s1 + $0x1e0] sm:$0xff]
        %v316 = vld [vmem:[%s1 + $0x1e8] sm:$0xff]
        %v317 = vld [vmem:[%s1 + $0x1f0] sm:$0xff]
        %v318 = vld [vmem:[%s1 + $0x1f8] sm:$0xff]
        %319 = vmatprep.subr.mxu0 0.0
        %320 = vmatpush1.msra.mxu0 %v270
        %321 = vmatprep.subr.mxu0 0.0
        %322 = vmatpush1.msra.mxu0 %v269
        %323 = vmatprep.subr.mxu0 0.0
        %324 = vmatpush1.msra.mxu0 %v268
        %325 = vmatprep.subr.mxu0 0.0
        %326 = vmatpush1.msra.mxu0 %v267
        %327 = vmatprep.subr.mxu0 0.0
        %328 = vmatpush1.msra.mxu0 %v266
        %329 = vmatprep.subr.mxu0 0.0
        %330 = vmatpush1.msra.mxu0 %v265
        %331 = vmatprep.subr.mxu0 0.0
        %332 = vmatpush1.msra.mxu0 %v264
        %333 = vmatprep.subr.mxu0 0.0
        %334 = vmatpush1.msra.mxu0 %v263
        %335 = vmatprep.subr.mxu0 0.0
        %336 = vmatpush1.msra.mxu0 %v262
        %337 = vmatprep.subr.mxu0 0.0
        %338 = vmatpush1.msra.mxu0 %v261
        %339 = vmatprep.subr.mxu0 0.0
        %340 = vmatpush1.msra.mxu0 %v260
        %341 = vmatprep.subr.mxu0 0.0
        %342 = vmatpush1.msra.mxu0 %v259
        %343 = vmatprep.subr.mxu0 0.0
        %344 = vmatpush1.msra.mxu0 %v258
        %345 = vmatprep.subr.mxu0 0.0
        %346 = vmatpush1.msra.mxu0 %v257
        %347 = vmatprep.subr.mxu0 0.0
        %348 = vmatpush1.msra.mxu0 %v256
        %349 = vmatprep.subr.mxu0 0.0
        %350 = vmatpush1.msra.mxu0 %v255
        %351 = vmatprep.subr.mxu0 0.0
        %352 = vmatpush2.msra.mxu0 %v286
        %353 = vmatprep.subr.mxu0 0.0
        %354 = vmatpush2.msra.mxu0 %v285
        %355 = vmatprep.subr.mxu0 0.0
        %356 = vmatpush2.msra.mxu0 %v284
        %357 = vmatprep.subr.mxu0 0.0
        %358 = vmatpush2.msra.mxu0 %v283
        %359 = vmatprep.subr.mxu0 0.0
        %360 = vmatpush2.msra.mxu0 %v282
        %361 = vmatprep.subr.mxu0 0.0
        %362 = vmatpush2.msra.mxu0 %v281
        %363 = vmatprep.subr.mxu0 0.0
        %364 = vmatpush2.msra.mxu0 %v280
        %365 = vmatprep.subr.mxu0 0.0
        %366 = vmatpush2.msra.mxu0 %v279
        %367 = vmatprep.subr.mxu0 0.0
        %368 = vmatpush2.msra.mxu0 %v278
        %369 = vmatprep.subr.mxu0 0.0
        %370 = vmatpush2.msra.mxu0 %v277
        %371 = vmatprep.subr.mxu0 0.0
        %372 = vmatpush2.msra.mxu0 %v276
        %373 = vmatprep.subr.mxu0 0.0
        %374 = vmatpush2.msra.mxu0 %v275
        %375 = vmatprep.subr.mxu0 0.0
        %376 = vmatpush2.msra.mxu0 %v274
        %377 = vmatprep.subr.mxu0 0.0
        %378 = vmatpush2.msra.mxu0 %v273
        %379 = vmatprep.subr.mxu0 0.0
        %380 = vmatpush2.msra.mxu0 %v272
        %381 = vmatprep.subr.mxu0 0.0
        %382 = vmatpush2.msra.mxu0 %v271
        %383 = vmatprep.mubr.f32.mxu0 %v240
        %384 = vmatmul.mubr.f32.gmra.mxu0 %v239
        %v385 = vpop.f32.mrf.mxu0
        %v386 = vadd.f32 0.0, %v385
        %v387 = vpop.f32.mrf.mxu0
        %388 = vmatprep.mubr.f32.mxu0 %v244
        %389 = vmatmul.mubr.f32.gmra.mxu0 %v243
        %v390 = vpop.f32.mrf.mxu0
        %v391 = vadd.f32 0.0, %v390
        %v392 = vpop.f32.mrf.mxu0
        %393 = vmatprep.mubr.f32.mxu0 %v248
        %394 = vmatmul.mubr.f32.gmra.mxu0 %v247
        %v395 = vpop.f32.mrf.mxu0
        %v396 = vadd.f32 0.0, %v395
        %v397 = vpop.f32.mrf.mxu0
        %398 = vmatprep.mubr.f32.mxu0 %v252
        %399 = vmatmul.mubr.f32.gmra.mxu0 %v251
        %v400 = vpop.f32.mrf.mxu0
        %v401 = vadd.f32 0.0, %v400
        %v402 = vpop.f32.mrf.mxu0
        %403 = vdwg.mxu0
        %404 = vmatprep.subr.mxu0 0.0
        %405 = vmatpush1.msra.mxu0 %v302
        %406 = vmatprep.subr.mxu0 0.0
        %407 = vmatpush1.msra.mxu0 %v301
        %408 = vmatprep.subr.mxu0 0.0
        %409 = vmatpush1.msra.mxu0 %v300
        %410 = vmatprep.subr.mxu0 0.0
        %411 = vmatpush1.msra.mxu0 %v299
        %412 = vmatprep.subr.mxu0 0.0
        %413 = vmatpush1.msra.mxu0 %v298
        %414 = vmatprep.subr.mxu0 0.0
        %415 = vmatpush1.msra.mxu0 %v297
        %416 = vmatprep.subr.mxu0 0.0
        %417 = vmatpush1.msra.mxu0 %v296
        %418 = vmatprep.subr.mxu0 0.0
        %419 = vmatpush1.msra.mxu0 %v295
        %420 = vmatprep.subr.mxu0 0.0
        %421 = vmatpush1.msra.mxu0 %v294
        %422 = vmatprep.subr.mxu0 0.0
        %423 = vmatpush1.msra.mxu0 %v293
        %424 = vmatprep.subr.mxu0 0.0
        %425 = vmatpush1.msra.mxu0 %v292
        %426 = vmatprep.subr.mxu0 0.0
        %427 = vmatpush1.msra.mxu0 %v291
        %428 = vmatprep.subr.mxu0 0.0
        %429 = vmatpush1.msra.mxu0 %v290
        %430 = vmatprep.subr.mxu0 0.0
        %431 = vmatpush1.msra.mxu0 %v289
        %432 = vmatprep.subr.mxu0 0.0
        %433 = vmatpush1.msra.mxu0 %v288
        %434 = vmatprep.subr.mxu0 0.0
        %435 = vmatpush1.msra.mxu0 %v287
        %436 = vmatprep.subr.mxu0 0.0
        %437 = vmatpush2.msra.mxu0 %v318
        %438 = vmatprep.subr.mxu0 0.0
        %439 = vmatpush2.msra.mxu0 %v317
        %440 = vmatprep.subr.mxu0 0.0
        %441 = vmatpush2.msra.mxu0 %v316
        %442 = vmatprep.subr.mxu0 0.0
        %443 = vmatpush2.msra.mxu0 %v315
        %444 = vmatprep.subr.mxu0 0.0
        %445 = vmatpush2.msra.mxu0 %v314
        %446 = vmatprep.subr.mxu0 0.0
        %447 = vmatpush2.msra.mxu0 %v313
        %448 = vmatprep.subr.mxu0 0.0
        %449 = vmatpush2.msra.mxu0 %v312
        %450 = vmatprep.subr.mxu0 0.0
        %451 = vmatpush2.msra.mxu0 %v311
        %452 = vmatprep.subr.mxu0 0.0
        %453 = vmatpush2.msra.mxu0 %v310
        %454 = vmatprep.subr.mxu0 0.0
        %455 = vmatpush2.msra.mxu0 %v309
        %456 = vmatprep.subr.mxu0 0.0
        %457 = vmatpush2.msra.mxu0 %v308
        %458 = vmatprep.subr.mxu0 0.0
        %459 = vmatpush2.msra.mxu0 %v307
        %460 = vmatprep.subr.mxu0 0.0
        %461 = vmatpush2.msra.mxu0 %v306
        %462 = vmatprep.subr.mxu0 0.0
        %463 = vmatpush2.msra.mxu0 %v305
        %464 = vmatprep.subr.mxu0 0.0
        %465 = vmatpush2.msra.mxu0 %v304
        %466 = vmatprep.subr.mxu0 0.0
        %467 = vmatpush2.msra.mxu0 %v303
        %468 = vmatprep.mubr.f32.mxu0 %v242
        %469 = vmatmul.mubr.f32.gmra.mxu0 %v241
        %v470 = vpop.f32.mrf.mxu0
        %v471 = vadd.f32 %v386, %v470
        %v472 = vpop.f32.mrf.mxu0
        %473 = vmatprep.mubr.f32.mxu0 %v246
        %474 = vmatmul.mubr.f32.gmra.mxu0 %v245
        %v475 = vpop.f32.mrf.mxu0
        %v476 = vadd.f32 %v391, %v475
        %v477 = vpop.f32.mrf.mxu0
        %478 = vmatprep.mubr.f32.mxu0 %v250
        %479 = vmatmul.mubr.f32.gmra.mxu0 %v249
        %v480 = vpop.f32.mrf.mxu0
        %v481 = vadd.f32 %v396, %v480
        %v482 = vpop.f32.mrf.mxu0
        %483 = vmatprep.mubr.f32.mxu0 %v254
        %484 = vmatmul.mubr.f32.gmra.mxu0 %v253
        %v485 = vpop.f32.mrf.mxu0
        %v486 = vadd.f32 %v401, %v485
        %v487 = vpop.f32.mrf.mxu0
        %488 = vdwg.mxu0
        %s489 = smul.u32 %s20, 32
        %s490 = scalar_lea.vmem [#allocation2], %s489
        %491 = vst [vmem:[%s490] sm:$0xff] %v471
        %492 = vst [vmem:[%s490 + $0x8] sm:$0xff] %v476
        %493 = vst [vmem:[%s490 + $0x10] sm:$0xff] %v481
        %494 = vst [vmem:[%s490 + $0x18] sm:$0xff] %v486
        %v495 = vadd.f32 %v471, %v476
        %v496 = vadd.f32 %v495, %v481
        %v497 = vadd.f32 %v496, %v486
        %v498 = vrot.slane %v497, 4
        %v499 = vadd.f32 %v497, %v498
        %v500 = vrot.slane %v499, 2
        %v501 = vadd.f32 %v499, %v500
        %v502 = vrot.slane %v501, 1
        %v503 = vadd.f32 %v501, %v502
        %v504 = vmul.f32 %v471, %v471
        %v505 = vmul.f32 %v476, %v476
        %v506 = vmul.f32 %v481, %v481
        %v507 = vmul.f32 %v486, %v486
        %v508 = vadd.f32 %v504, %v505
        %v509 = vadd.f32 %v508, %v506
        %v510 = vadd.f32 %v509, %v507
        %v511 = vrot.slane %v510, 4
        %v512 = vadd.f32 %v510, %v511
        %v513 = vrot.slane %v512, 2
        %v514 = vadd.f32 %v512, %v513
        %v515 = vrot.slane %v514, 1
        %v516 = vadd.f32 %v514, %v515
        %p517 = scmp.eq.s32.totalorder %s20, 0
        // Predicated region
        $region41: #{discriminator_forward.6} parent=39 // pred_check
          %p518 = pneg %p517
        $region42: #{discriminator_forward.6} parent=39 // pred_check_branch
          %520 = sbr.rel (%p518) target = $region44
        $region43: #{discriminator_forward.6} parent=39 // pred_region
          %521 = vst [vmem:[#allocation3] sm:$0x1] %v503
          %522 = vst [vmem:[#allocation4] sm:$0x1] %v516
        $region44: #{discriminator_forward.6} parent=39 // pred_fallthru
          _
        %p523 = scmp.ne.s32.totalorder %s20, 0
        // Predicated region
        $region45: #{discriminator_forward.6} parent=39 // pred_check
          %p524 = pneg %p523
        $region46: #{discriminator_forward.6} parent=39 // pred_check_branch
          %526 = sbr.rel (%p524) target = $region48
        $region47: #{discriminator_forward.6} parent=39 // pred_region
          %v527 = vld [vmem:[#allocation3] sm:$0x1]
          %v528 = vadd.f32 %v527, %v503
          %529 = vst [vmem:[#allocation3] sm:$0x1] %v528
          %v530 = vld [vmem:[#allocation4] sm:$0x1]
          %v531 = vadd.f32 %v530, %v516
          %532 = vst [vmem:[#allocation4] sm:$0x1] %v531
        $region48: #{discriminator_forward.6} parent=39 // pred_fallthru
          _
      $region40: #{discriminator_forward.6} parent=35 // pred_fallthru
        _
      %p533 = scmp.eq.s32.totalorder %s19, 1
      %p534 = scmp.eq.s32.totalorder %s20, 0
      %p535 = pnand %p533, %p534
      %p536 = pneg %p535
      // Predicated region
      $region49: #{discriminator_forward.6} parent=35 // pred_check
        _
      $region50: #{discriminator_forward.6} parent=35 // pred_check_branch
        %538 = sbr.rel (%p535) target = $region52
      $region51: #{discriminator_forward.6} parent=35 // pred_region
        %v539 = vld [vmem:[#allocation3] sm:$0x1]
        %v540 = vmul.f32 %v539, 0.03125
        %v541 = vld [vmem:[#allocation4] sm:$0x1]
        %v542 = vmul.f32 %v541, 0.03125
        %v543 = vmul.f32 %v540, %v540
        %v544 = vsub.f32 %v542, %v543
        %v545 = vmax.f32 %v544, 0.0
        %v546 = vadd.f32 %v545, 1e-05
        %v547 = vrsqrt.pop %v546
        %v548 = vld [vmem:[%s2] sm:$0x1]
        %v549 = vmul.f32 %v548, %v547
        %550 = vst [vmem:[#allocation5] sm:$0x1] %v549
        %v551 = vld [vmem:[%s3] sm:$0x1]
        %v552 = vmul.f32 %v540, %v549
        %v553 = vsub.f32 %v551, %v552
        %554 = vst [vmem:[#allocation6] sm:$0x1] %v553
      $region52: #{discriminator_forward.6} parent=35 // pred_fallthru
        _
      // Predicated region
      $region53: #{discriminator_forward.6} parent=35 // pred_check
        %p555 = pneg %p533
      $region54: #{discriminator_forward.6} parent=35 // pred_check_branch
        %557 = sbr.rel (%p555) target = $region56
      $region55: #{discriminator_forward.6} parent=35 // pred_region
        %s558 = smul.u32 %s20, 32
        %s559 = scalar_lea.vmem [#allocation2], %s558
        %v560 = vld [vmem:[%s559] sm:$0xff]
        %v561 = vld [vmem:[%s559 + $0x8] sm:$0xff]
        %v562 = vld [vmem:[%s559 + $0x10] sm:$0xff]
        %v563 = vld [vmem:[%s559 + $0x18] sm:$0xff]
        %v564 = vld [vmem:[#allocation5] sm:$0x1]
        %v566 = vlaneseq
        %v567 = vshrl.u32 %v566, 7
        %v568 = vsub.s32 0, %v567
        %v569 = vrot.slane %v564, %v568
        %v571 = vmul.f32 %v560, %v569
        %v572 = vmul.f32 %v561, %v569
        %v573 = vmul.f32 %v562, %v569
        %v574 = vmul.f32 %v563, %v569
        %v575 = vld [vmem:[#allocation6] sm:$0x1]
        %v577 = vlaneseq
        %v578 = vshrl.u32 %v577, 7
        %v579 = vsub.s32 0, %v578
        %v580 = vrot.slane %v575, %v579
        %v582 = vadd.f32 %v571, %v580
        %v583 = vadd.f32 %v572, %v580
        %v584 = vadd.f32 %v573, %v580
        %v585 = vadd.f32 %v574, %v580
        %v586 = vmax.f32 %v582, 0.0
        %v587 = vmax.f32 %v583, 0.0
        %v588 = vmax.f32 %v584, 0.0
        %v589 = vmax.f32 %v585, 0.0
        %590 = vst [vmem:[%s232] sm:$0xff] %v586
        %591 = vst [vmem:[%s232 + $0x8] sm:$0xff] %v587
        %592 = vst [vmem:[%s232 + $0x10] sm:$0xff] %v588
        %593 = vst [vmem:[%s232 + $0x18] sm:$0xff] %v589
      $region56: #{discriminator_forward.6} parent=35 // pred_fallthru
        _
      %s594 = smul.u32 %s20, %s19
      %s595 = smul.u32 4, %s594
      %p596 = scmp.lt.s32.totalorder %s595, 3
      %s597 = scalar_select %p596, %s595, 3
      %s598 = smul.addr %s597, 8
      %s599 = scalar_lea.vmem %s4, %s598
      // Predicated region
      $region57: #{discriminator_forward.6} parent=35 // pred_check
        %p600 = pneg %p140
      $region58: #{discriminator_forward.6} parent=35 // pred_check_branch
        %602 = sbr.rel (%p600) target = $region60
      $region59: #{discriminator_forward.6} parent=35 // pred_region
        %s603 = smul.u32 %s20, %s19
        %s604 = smul.u32 4, %s603
      $region60: #{discriminator_forward.6} parent=35 // pred_fallthru
        _
    $region36: #{discriminator_forward.6} parent=5 // pred_fallthru
      _
    %p605 = scmp.le.s32.totalorder 2, %s10
    // Predicated region
    $region61: #{discriminator_forward.6} parent=5 // pred_check
      %p606 = pneg %p605
    $region62: #{discriminator_forward.6} parent=5 // pred_check_branch
      %608 = sbr.rel (%p606) target = $region64
    $region63: #{discriminator_forward.6} parent=5 // pred_region
      %s609 = ssub.s32 %s10, 2
      // Predicated region
      $region65: #{discriminator_forward.6} parent=63 // pred_check
        %p610 = pneg %p146
      $region66: #{discriminator_forward.6} parent=63 // pred_check_branch
        %612 = sbr.rel (%p610) target = $region68
      $region67: #{discriminator_forward.6} parent=63 // pred_region
        %s613 = smul.u32 %s22, %s21
        %s614 = smul.u32 4, %s613
        %p615 = scmp.lt.s32.totalorder %s614, 3
        %s616 = scalar_select %p615, %s614, 3
        %s617 = smul.addr %s616, 8
        %s618 = scalar_lea.vmem %s4, %s617
      $region68: #{discriminator_forward.6} parent=63 // pred_fallthru
        _
    $region64: #{discriminator_forward.6} parent=5 // pred_fallthru
      _
  $region6: #{discriminator_forward.6} parent=0 // loop_footer
    %s14 = sadd.s32 1, %s10
  $region7: #{discriminator_forward.6} parent=0 // loop_footer_branch
    %9 = sbr.rel target = $region3
  $region8: #{discriminator_forward.6} parent=0 // loop_exit
    _

// kernel: discriminator_forward.7
$region0: #{discriminator_forward.7}
  #allocation0 [shape = 'u32[]', space=smem, size = 0x4, offset = 0x4, fixed_abs, tag = 'smem constant byte address 0x4 - core index']
  #allocation1 [shape = 'u32[144,128]{1,0:T(1,128)}', space=vmem, size = 0x12000, scoped, tag = 'internal scratch']
  #allocation2 [shape = 'f32[1,1]{1,0:T(1,128)S(1)}', space=vmem, size = 0x200, scoped, tag = 'scoped memory for discriminator_forward.7']
  %s0 = inlined_call_operand.vmem [shape: f32[2,2048], index: 0, kind: input, shape index: {}]
  %s1 = inlined_call_operand.vmem [shape: f32[2048,128], index: 1, kind: input, shape index: {}]
  %s2 = inlined_call_operand.vmem [shape: f32[1,128], index: 2, kind: input, shape index: {}]
  %s3 = inlined_call_operand.vmem [shape: f32[1,128], index: 3, kind: input, shape index: {}]
  %s4 = inlined_call_operand.<no memory space> [shape: f32[1,1], index: 4, kind: input, shape index: {}]
  %s5 = inlined_call_operand.vmem [shape: f32[2,1], index: 5, kind: output, shape index: {}]
  %s6 = sld [smem:[#allocation0]]
  $region30: #{discriminator_forward.7} parent=0
    _
  %s8 = ssub.s32 1, %s6
  %s9 = scalar_select 0, %s8, %s6
  %v10 = vstv %s4
  %11 = vst [vmem:[#allocation2] sm:$0x1] %v10
  // Predicated region
  $region2: #{discriminator_forward.7} parent=0 // pred_check
    _
  $region3: #{discriminator_forward.7} parent=0 // pred_check_branch
    %13 = sbr.rel (0) target = $region5
  $region4: #{discriminator_forward.7} parent=0 // pred_region
    _
  $region5: #{discriminator_forward.7} parent=0 // pred_fallthru
    _
  // Predicated region
  $region6: #{discriminator_forward.7} parent=0 // pred_check
    _
  $region7: #{discriminator_forward.7} parent=0 // pred_check_branch
    %15 = sbr.rel (0) target = $region9
  $region8: #{discriminator_forward.7} parent=0 // pred_region
    _
  $region9: #{discriminator_forward.7} parent=0 // pred_fallthru
    _
  // Predicated region
  $region10: #{discriminator_forward.7} parent=0 // pred_check
    _
  $region11: #{discriminator_forward.7} parent=0 // pred_check_branch
    %17 = sbr.rel (0) target = $region13
  $region12: #{discriminator_forward.7} parent=0 // pred_region
    _
  $region13: #{discriminator_forward.7} parent=0 // pred_fallthru
    _
  // Predicated region
  $region14: #{discriminator_forward.7} parent=0 // pred_check
    _
  $region15: #{discriminator_forward.7} parent=0 // pred_check_branch
    %19 = sbr.rel (0) target = $region17
  $region16: #{discriminator_forward.7} parent=0 // pred_region
    _
  $region17: #{discriminator_forward.7} parent=0 // pred_fallthru
    _
  // Predicated region
  $region18: #{discriminator_forward.7} parent=0 // pred_check
    _
  $region19: #{discriminator_forward.7} parent=0 // pred_check_branch
    %21 = sbr.rel (0) target = $region21
  $region20: #{discriminator_forward.7} parent=0 // pred_region
    _
  $region21: #{discriminator_forward.7} parent=0 // pred_fallthru
    _
  %v22 = vld [vmem:[%s0] sm:$0xff]
  %v23 = vld [vmem:[%s0 + $0x8] sm:$0xff]
  %v24 = vld [vmem:[%s0 + $0x10] sm:$0xff]
  %v25 = vld [vmem:[%s0 + $0x18] sm:$0xff]
  %v26 = vld [vmem:[%s1] sm:$0xff]
  %v27 = vld [vmem:[%s1 + $0x8] sm:$0xff]
  %v28 = vld [vmem:[%s1 + $0x10] sm:$0xff]
  %v29 = vld [vmem:[%s1 + $0x18] sm:$0xff]
  %v30 = vld [vmem:[%s1 + $0x20] sm:$0xff]
  %v31 = vld [vmem:[%s1 + $0x28] sm:$0xff]
  %v32 = vld [vmem:[%s1 + $0x30] sm:$0xff]
  %v33 = vld [vmem:[%s1 + $0x38] sm:$0xff]
  %v34 = vld [vmem:[%s1 + $0x40] sm:$0xff]
  %v35 = vld [vmem:[%s1 + $0x48] sm:$0xff]
  %v36 = vld [vmem:[%s1 + $0x50] sm:$0xff]
  %v37 = vld [vmem:[%s1 + $0x58] sm:$0xff]
  %v38 = vld [vmem:[%s1 + $0x60] sm:$0xff]
  %v39 = vld [vmem:[%s1 + $0x68] sm:$0xff]
  %v40 = vld [vmem:[%s1 + $0x70] sm:$0xff]
  %v41 = vld [vmem:[%s1 + $0x78] sm:$0xff]
  %v42 = vld [vmem:[%s1 + $0x80] sm:$0xff]
  %v43 = vld [vmem:[%s1 + $0x88] sm:$0xff]
  %v44 = vld [vmem:[%s1 + $0x90] sm:$0xff]
  %v45 = vld [vmem:[%s1 + $0x98] sm:$0xff]
  %v46 = vld [vmem:[%s1 + $0xa0] sm:$0xff]
  %v47 = vld [vmem:[%s1 + $0xa8] sm:$0xff]
  %v48 = vld [vmem:[%s1 + $0xb0] sm:$0xff]
  %v49 = vld [vmem:[%s1 + $0xb8] sm:$0xff]
  %v50 = vld [vmem:[%s1 + $0xc0] sm:$0xff]
  %v51 = vld [vmem:[%s1 + $0xc8] sm:$0xff]
  %v52 = vld [vmem:[%s1 + $0xd0] sm:$0xff]
  %v53 = vld [vmem:[%s1 + $0xd8] sm:$0xff]
  %v54 = vld [vmem:[%s1 + $0xe0] sm:$0xff]
  %v55 = vld [vmem:[%s1 + $0xe8] sm:$0xff]
  %v56 = vld [vmem:[%s1 + $0xf0] sm:$0xff]
  %v57 = vld [vmem:[%s1 + $0xf8] sm:$0xff]
  %v58 = vld [vmem:[%s1 + $0x100] sm:$0xff]
  %v59 = vld [vmem:[%s1 + $0x108] sm:$0xff]
  %v60 = vld [vmem:[%s1 + $0x110] sm:$0xff]
  %v61 = vld [vmem:[%s1 + $0x118] sm:$0xff]
  %v62 = vld [vmem:[%s1 + $0x120] sm:$0xff]
  %v63 = vld [vmem:[%s1 + $0x128] sm:$0xff]
  %v64 = vld [vmem:[%s1 + $0x130] sm:$0xff]
  %v65 = vld [vmem:[%s1 + $0x138] sm:$0xff]
  %v66 = vld [vmem:[%s1 + $0x140] sm:$0xff]
  %v67 = vld [vmem:[%s1 + $0x148] sm:$0xff]
  %v68 = vld [vmem:[%s1 + $0x150] sm:$0xff]
  %v69 = vld [vmem:[%s1 + $0x158] sm:$0xff]
  %v70 = vld [vmem:[%s1 + $0x160] sm:$0xff]
  %v71 = vld [vmem:[%s1 + $0x168] sm:$0xff]
  %v72 = vld [vmem:[%s1 + $0x170] sm:$0xff]
  %v73 = vld [vmem:[%s1 + $0x178] sm:$0xff]
  %v74 = vld [vmem:[%s1 + $0x180] sm:$0xff]
  %v75 = vld [vmem:[%s1 + $0x188] sm:$0xff]
  %v76 = vld [vmem:[%s1 + $0x190] sm:$0xff]
  %v77 = vld [vmem:[%s1 + $0x198] sm:$0xff]
  %v78 = vld [vmem:[%s1 + $0x1a0] sm:$0xff]
  %v79 = vld [vmem:[%s1 + $0x1a8] sm:$0xff]
  %v80 = vld [vmem:[%s1 + $0x1b0] sm:$0xff]
  %v81 = vld [vmem:[%s1 + $0x1b8] sm:$0xff]
  %v82 = vld [vmem:[%s1 + $0x1c0] sm:$0xff]
  %v83 = vld [vmem:[%s1 + $0x1c8] sm:$0xff]
  %v84 = vld [vmem:[%s1 + $0x1d0] sm:$0xff]
  %v85 = vld [vmem:[%s1 + $0x1d8] sm:$0xff]
  %v86 = vld [vmem:[%s1 + $0x1e0] sm:$0xff]
  %v87 = vld [vmem:[%s1 + $0x1e8] sm:$0xff]
  %v88 = vld [vmem:[%s1 + $0x1f0] sm:$0xff]
  %v89 = vld [vmem:[%s1 + $0x1f8] sm:$0xff]
  %v90 = vld [vmem:[%s1 + $0x200] sm:$0xff]
  %v91 = vld [vmem:[%s1 + $0x208] sm:$0xff]
  %v92 = vld [vmem:[%s1 + $0x210] sm:$0xff]
  %v93 = vld [vmem:[%s1 + $0x218] sm:$0xff]
  %v94 = vld [vmem:[%s1 + $0x220] sm:$0xff]
  %v95 = vld [vmem:[%s1 + $0x228] sm:$0xff]
  %v96 = vld [vmem:[%s1 + $0x230] sm:$0xff]
  %v97 = vld [vmem:[%s1 + $0x238] sm:$0xff]
  %v98 = vld [vmem:[%s1 + $0x240] sm:$0xff]
  %v99 = vld [vmem:[%s1 + $0x248] sm:$0xff]
  %v100 = vld [vmem:[%s1 + $0x250] sm:$0xff]
  %v101 = vld [vmem:[%s1 + $0x258] sm:$0xff]
  %v102 = vld [vmem:[%s1 + $0x260] sm:$0xff]
  %v103 = vld [vmem:[%s1 + $0x268] sm:$0xff]
  %v104 = vld [vmem:[%s1 + $0x270] sm:$0xff]
  %v105 = vld [vmem:[%s1 + $0x278] sm:$0xff]
  %v106 = vld [vmem:[%s1 + $0x280] sm:$0xff]
  %v107 = vld [vmem:[%s1 + $0x288] sm:$0xff]
  %v108 = vld [vmem:[%s1 + $0x290] sm:$0xff]
  %v109 = vld [vmem:[%s1 + $0x298] sm:$0xff]
  %v110 = vld [vmem:[%s1 + $0x2a0] sm:$0xff]
  %v111 = vld [vmem:[%s1 + $0x2a8] sm:$0xff]
  %v112 = vld [vmem:[%s1 + $0x2b0] sm:$0xff]
  %v113 = vld [vmem:[%s1 + $0x2b8] sm:$0xff]
  %v114 = vld [vmem:[%s1 + $0x2c0] sm:$0xff]
  %v115 = vld [vmem:[%s1 + $0x2c8] sm:$0xff]
  %v116 = vld [vmem:[%s1 + $0x2d0] sm:$0xff]
  %v117 = vld [vmem:[%s1 + $0x2d8] sm:$0xff]
  %v118 = vld [vmem:[%s1 + $0x2e0] sm:$0xff]
  %v119 = vld [vmem:[%s1 + $0x2e8] sm:$0xff]
  %v120 = vld [vmem:[%s1 + $0x2f0] sm:$0xff]
  %v121 = vld [vmem:[%s1 + $0x2f8] sm:$0xff]
  %v122 = vld [vmem:[%s1 + $0x300] sm:$0xff]
  %v123 = vld [vmem:[%s1 + $0x308] sm:$0xff]
  %v124 = vld [vmem:[%s1 + $0x310] sm:$0xff]
  %v125 = vld [vmem:[%s1 + $0x318] sm:$0xff]
  %v126 = vld [vmem:[%s1 + $0x320] sm:$0xff]
  %v127 = vld [vmem:[%s1 + $0x328] sm:$0xff]
  %v128 = vld [vmem:[%s1 + $0x330] sm:$0xff]
  %v129 = vld [vmem:[%s1 + $0x338] sm:$0xff]
  %v130 = vld [vmem:[%s1 + $0x340] sm:$0xff]
  %v131 = vld [vmem:[%s1 + $0x348] sm:$0xff]
  %v132 = vld [vmem:[%s1 + $0x350] sm:$0xff]
  %v133 = vld [vmem:[%s1 + $0x358] sm:$0xff]
  %v134 = vld [vmem:[%s1 + $0x360] sm:$0xff]
  %v135 = vld [vmem:[%s1 + $0x368] sm:$0xff]
  %v136 = vld [vmem:[%s1 + $0x370] sm:$0xff]
  %v137 = vld [vmem:[%s1 + $0x378] sm:$0xff]
  %v138 = vld [vmem:[%s1 + $0x380] sm:$0xff]
  %v139 = vld [vmem:[%s1 + $0x388] sm:$0xff]
  %v140 = vld [vmem:[%s1 + $0x390] sm:$0xff]
  %v141 = vld [vmem:[%s1 + $0x398] sm:$0xff]
  %v142 = vld [vmem:[%s1 + $0x3a0] sm:$0xff]
  %v143 = vld [vmem:[%s1 + $0x3a8] sm:$0xff]
  %v144 = vld [vmem:[%s1 + $0x3b0] sm:$0xff]
  %v145 = vld [vmem:[%s1 + $0x3b8] sm:$0xff]
  %v146 = vld [vmem:[%s1 + $0x3c0] sm:$0xff]
  %v147 = vld [vmem:[%s1 + $0x3c8] sm:$0xff]
  %v148 = vld [vmem:[%s1 + $0x3d0] sm:$0xff]
  %v149 = vld [vmem:[%s1 + $0x3d8] sm:$0xff]
  %v150 = vld [vmem:[%s1 + $0x3e0] sm:$0xff]
  %v151 = vld [vmem:[%s1 + $0x3e8] sm:$0xff]
  %v152 = vld [vmem:[%s1 + $0x3f0] sm:$0xff]
  %v153 = vld [vmem:[%s1 + $0x3f8] sm:$0xff]
  %v154 = vld [vmem:[%s1 + $0x400] sm:$0xff]
  %v155 = vld [vmem:[%s1 + $0x408] sm:$0xff]
  %v156 = vld [vmem:[%s1 + $0x410] sm:$0xff]
  %v157 = vld [vmem:[%s1 + $0x418] sm:$0xff]
  %v158 = vld [vmem:[%s1 + $0x420] sm:$0xff]
  %v159 = vld [vmem:[%s1 + $0x428] sm:$0xff]
  %v160 = vld [vmem:[%s1 + $0x430] sm:$0xff]
  %v161 = vld [vmem:[%s1 + $0x438] sm:$0xff]
  %v162 = vld [vmem:[%s1 + $0x440] sm:$0xff]
  %v163 = vld [vmem:[%s1 + $0x448] sm:$0xff]
  %v164 = vld [vmem:[%s1 + $0x450] sm:$0xff]
  %v165 = vld [vmem:[%s1 + $0x458] sm:$0xff]
  %v166 = vld [vmem:[%s1 + $0x460] sm:$0xff]
  %v167 = vld [vmem:[%s1 + $0x468] sm:$0xff]
  %v168 = vld [vmem:[%s1 + $0x470] sm:$0xff]
  %v169 = vld [vmem:[%s1 + $0x478] sm:$0xff]
  %v170 = vld [vmem:[%s1 + $0x480] sm:$0xff]
  %v171 = vld [vmem:[%s1 + $0x488] sm:$0xff]
  %v172 = vld [vmem:[%s1 + $0x490] sm:$0xff]
  %v173 = vld [vmem:[%s1 + $0x498] sm:$0xff]
  %v174 = vld [vmem:[%s1 + $0x4a0] sm:$0xff]
  %v175 = vld [vmem:[%s1 + $0x4a8] sm:$0xff]
  %v176 = vld [vmem:[%s1 + $0x4b0] sm:$0xff]
  %v177 = vld [vmem:[%s1 + $0x4b8] sm:$0xff]
  %v178 = vld [vmem:[%s1 + $0x4c0] sm:$0xff]
  %v179 = vld [vmem:[%s1 + $0x4c8] sm:$0xff]
  %v180 = vld [vmem:[%s1 + $0x4d0] sm:$0xff]
  %v181 = vld [vmem:[%s1 + $0x4d8] sm:$0xff]
  %v182 = vld [vmem:[%s1 + $0x4e0] sm:$0xff]
  %v183 = vld [vmem:[%s1 + $0x4e8] sm:$0xff]
  %v184 = vld [vmem:[%s1 + $0x4f0] sm:$0xff]
  %v185 = vld [vmem:[%s1 + $0x4f8] sm:$0xff]
  %v186 = vld [vmem:[%s1 + $0x500] sm:$0xff]
  %v187 = vld [vmem:[%s1 + $0x508] sm:$0xff]
  %v188 = vld [vmem:[%s1 + $0x510] sm:$0xff]
  %v189 = vld [vmem:[%s1 + $0x518] sm:$0xff]
  %v190 = vld [vmem:[%s1 + $0x520] sm:$0xff]
  %v191 = vld [vmem:[%s1 + $0x528] sm:$0xff]
  %v192 = vld [vmem:[%s1 + $0x530] sm:$0xff]
  %v193 = vld [vmem:[%s1 + $0x538] sm:$0xff]
  %v194 = vld [vmem:[%s1 + $0x540] sm:$0xff]
  %v195 = vld [vmem:[%s1 + $0x548] sm:$0xff]
  %v196 = vld [vmem:[%s1 + $0x550] sm:$0xff]
  %v197 = vld [vmem:[%s1 + $0x558] sm:$0xff]
  %v198 = vld [vmem:[%s1 + $0x560] sm:$0xff]
  %v199 = vld [vmem:[%s1 + $0x568] sm:$0xff]
  %v200 = vld [vmem:[%s1 + $0x570] sm:$0xff]
  %v201 = vld [vmem:[%s1 + $0x578] sm:$0xff]
  %v202 = vld [vmem:[%s1 + $0x580] sm:$0xff]
  %v203 = vld [vmem:[%s1 + $0x588] sm:$0xff]
  %v204 = vld [vmem:[%s1 + $0x590] sm:$0xff]
  %v205 = vld [vmem:[%s1 + $0x598] sm:$0xff]
  %v206 = vld [vmem:[%s1 + $0x5a0] sm:$0xff]
  %v207 = vld [vmem:[%s1 + $0x5a8] sm:$0xff]
  %v208 = vld [vmem:[%s1 + $0x5b0] sm:$0xff]
  %v209 = vld [vmem:[%s1 + $0x5b8] sm:$0xff]
  %v210 = vld [vmem:[%s1 + $0x5c0] sm:$0xff]
  %v211 = vld [vmem:[%s1 + $0x5c8] sm:$0xff]
  %v212 = vld [vmem:[%s1 + $0x5d0] sm:$0xff]
  %v213 = vld [vmem:[%s1 + $0x5d8] sm:$0xff]
  %v214 = vld [vmem:[%s1 + $0x5e0] sm:$0xff]
  %v215 = vld [vmem:[%s1 + $0x5e8] sm:$0xff]
  %v216 = vld [vmem:[%s1 + $0x5f0] sm:$0xff]
  %v217 = vld [vmem:[%s1 + $0x5f8] sm:$0xff]
  %v218 = vld [vmem:[%s1 + $0x600] sm:$0xff]
  %v219 = vld [vmem:[%s1 + $0x608] sm:$0xff]
  %v220 = vld [vmem:[%s1 + $0x610] sm:$0xff]
  %v221 = vld [vmem:[%s1 + $0x618] sm:$0xff]
  %v222 = vld [vmem:[%s1 + $0x620] sm:$0xff]
  %v223 = vld [vmem:[%s1 + $0x628] sm:$0xff]
  %v224 = vld [vmem:[%s1 + $0x630] sm:$0xff]
  %v225 = vld [vmem:[%s1 + $0x638] sm:$0xff]
  %v226 = vld [vmem:[%s1 + $0x640] sm:$0xff]
  %v227 = vld [vmem:[%s1 + $0x648] sm:$0xff]
  %v228 = vld [vmem:[%s1 + $0x650] sm:$0xff]
  %v229 = vld [vmem:[%s1 + $0x658] sm:$0xff]
  %v230 = vld [vmem:[%s1 + $0x660] sm:$0xff]
  %v231 = vld [vmem:[%s1 + $0x668] sm:$0xff]
  %v232 = vld [vmem:[%s1 + $0x670] sm:$0xff]
  %v233 = vld [vmem:[%s1 + $0x678] sm:$0xff]
  %v234 = vld [vmem:[%s1 + $0x680] sm:$0xff]
  %v235 = vld [vmem:[%s1 + $0x688] sm:$0xff]
  %v236 = vld [vmem:[%s1 + $0x690] sm:$0xff]
  %v237 = vld [vmem:[%s1 + $0x698] sm:$0xff]
  %v238 = vld [vmem:[%s1 + $0x6a0] sm:$0xff]
  %v239 = vld [vmem:[%s1 + $0x6a8] sm:$0xff]
  %v240 = vld [vmem:[%s1 + $0x6b0] sm:$0xff]
  %v241 = vld [vmem:[%s1 + $0x6b8] sm:$0xff]
  %v242 = vld [vmem:[%s1 + $0x6c0] sm:$0xff]
  %v243 = vld [vmem:[%s1 + $0x6c8] sm:$0xff]
  %v244 = vld [vmem:[%s1 + $0x6d0] sm:$0xff]
  %v245 = vld [vmem:[%s1 + $0x6d8] sm:$0xff]
  %v246 = vld [vmem:[%s1 + $0x6e0] sm:$0xff]
  %v247 = vld [vmem:[%s1 + $0x6e8] sm:$0xff]
  %v248 = vld [vmem:[%s1 + $0x6f0] sm:$0xff]
  %v249 = vld [vmem:[%s1 + $0x6f8] sm:$0xff]
  %v250 = vld [vmem:[%s1 + $0x700] sm:$0xff]
  %v251 = vld [vmem:[%s1 + $0x708] sm:$0xff]
  %v252 = vld [vmem:[%s1 + $0x710] sm:$0xff]
  %v253 = vld [vmem:[%s1 + $0x718] sm:$0xff]
  %v254 = vld [vmem:[%s1 + $0x720] sm:$0xff]
  %v255 = vld [vmem:[%s1 + $0x728] sm:$0xff]
  %v256 = vld [vmem:[%s1 + $0x730] sm:$0xff]
  %v257 = vld [vmem:[%s1 + $0x738] sm:$0xff]
  %v258 = vld [vmem:[%s1 + $0x740] sm:$0xff]
  %v259 = vld [vmem:[%s1 + $0x748] sm:$0xff]
  %v260 = vld [vmem:[%s1 + $0x750] sm:$0xff]
  %v261 = vld [vmem:[%s1 + $0x758] sm:$0xff]
  %v262 = vld [vmem:[%s1 + $0x760] sm:$0xff]
  %v263 = vld [vmem:[%s1 + $0x768] sm:$0xff]
  %v264 = vld [vmem:[%s1 + $0x770] sm:$0xff]
  %v265 = vld [vmem:[%s1 + $0x778] sm:$0xff]
  %v266 = vld [vmem:[%s1 + $0x780] sm:$0xff]
  %v267 = vld [vmem:[%s1 + $0x788] sm:$0xff]
  %v268 = vld [vmem:[%s1 + $0x790] sm:$0xff]
  %v269 = vld [vmem:[%s1 + $0x798] sm:$0xff]
  %v270 = vld [vmem:[%s1 + $0x7a0] sm:$0xff]
  %v271 = vld [vmem:[%s1 + $0x7a8] sm:$0xff]
  %v272 = vld [vmem:[%s1 + $0x7b0] sm:$0xff]
  %v273 = vld [vmem:[%s1 + $0x7b8] sm:$0xff]
  %v274 = vld [vmem:[%s1 + $0x7c0] sm:$0xff]
  %v275 = vld [vmem:[%s1 + $0x7c8] sm:$0xff]
  %v276 = vld [vmem:[%s1 + $0x7d0] sm:$0xff]
  %v277 = vld [vmem:[%s1 + $0x7d8] sm:$0xff]
  %v278 = vld [vmem:[%s1 + $0x7e0] sm:$0xff]
  %v279 = vld [vmem:[%s1 + $0x7e8] sm:$0xff]
  %v280 = vld [vmem:[%s1 + $0x7f0] sm:$0xff]
  %v281 = vld [vmem:[%s1 + $0x7f8] sm:$0xff]
  %v282 = vld [vmem:[%s2] sm:$0x1]
  %v284 = vlaneseq
  %v285 = vshrl.u32 %v284, 7
  %v286 = vsub.s32 0, %v285
  %v287 = vrot.slane %v282, %v286
  %v293 = vcombine.high %v22, %v22
  %v295 = vunpack.c.l.s4 1983009808
  %v296 = vunpack.c.0.s8 %v295
  %v297 = vlaneseq
  %v298 = vshrl.u32 %v297, 7
  %v299 = vsub.s32 %v296, %v298
  %v300 = vrot.slane %v22, %v299
  %v302 = vunpack.c.l.s4 1983009808
  %v303 = vunpack.c.0.s8 %v302
  %v304 = vlaneseq
  %v305 = vshrl.u32 %v304, 7
  %v306 = vsub.s32 %v303, %v305
  %v307 = vrot.slane %v293, %v306
  %v308 = vcombine.high %v300, %v300
  %v309 = vcombine.high %v307, %v307
  %v310 = vcombine.high %v23, %v23
  %v312 = vunpack.c.l.s4 1983009808
  %v313 = vunpack.c.0.s8 %v312
  %v314 = vlaneseq
  %v315 = vshrl.u32 %v314, 7
  %v316 = vsub.s32 %v313, %v315
  %v317 = vrot.slane %v23, %v316
  %v319 = vunpack.c.l.s4 1983009808
  %v320 = vunpack.c.0.s8 %v319
  %v321 = vlaneseq
  %v322 = vshrl.u32 %v321, 7
  %v323 = vsub.s32 %v320, %v322
  %v324 = vrot.slane %v310, %v323
  %v325 = vcombine.high %v317, %v317
  %v326 = vcombine.high %v324, %v324
  %v327 = vcombine.high %v24, %v24
  %v329 = vunpack.c.l.s4 1983009808
  %v330 = vunpack.c.0.s8 %v329
  %v331 = vlaneseq
  %v332 = vshrl.u32 %v331, 7
  %v333 = vsub.s32 %v330, %v332
  %v334 = vrot.slane %v24, %v333
  %v336 = vunpack.c.l.s4 1983009808
  %v337 = vunpack.c.0.s8 %v336
  %v338 = vlaneseq
  %v339 = vshrl.u32 %v338, 7
  %v340 = vsub.s32 %v337, %v339
  %v341 = vrot.slane %v327, %v340
  %v342 = vcombine.high %v334, %v334
  %v343 = vcombine.high %v341, %v341
  %v344 = vcombine.high %v25, %v25
  %v346 = vunpack.c.l.s4 1983009808
  %v347 = vunpack.c.0.s8 %v346
  %v348 = vlaneseq
  %v349 = vshrl.u32 %v348, 7
  %v350 = vsub.s32 %v347, %v349
  %v351 = vrot.slane %v25, %v350
  %v353 = vunpack.c.l.s4 1983009808
  %v354 = vunpack.c.0.s8 %v353
  %v355 = vlaneseq
  %v356 = vshrl.u32 %v355, 7
  %v357 = vsub.s32 %v354, %v356
  %v358 = vrot.slane %v344, %v357
  %v359 = vcombine.high %v351, %v351
  %v360 = vcombine.high %v358, %v358
  %377 = vmatprep.subr.mxu0 0.0
  %378 = vmatpush1.msra.mxu0 %v41
  %379 = vmatprep.subr.mxu0 0.0
  %380 = vmatpush1.msra.mxu0 %v40
  %381 = vmatprep.subr.mxu0 0.0
  %382 = vmatpush1.msra.mxu0 %v39
  %383 = vmatprep.subr.mxu0 0.0
  %384 = vmatpush1.msra.mxu0 %v38
  %385 = vmatprep.subr.mxu0 0.0
  %386 = vmatpush1.msra.mxu0 %v37
  %387 = vmatprep.subr.mxu0 0.0
  %388 = vmatpush1.msra.mxu0 %v36
  %389 = vmatprep.subr.mxu0 0.0
  %390 = vmatpush1.msra.mxu0 %v35
  %391 = vmatprep.subr.mxu0 0.0
  %392 = vmatpush1.msra.mxu0 %v34
  %393 = vmatprep.subr.mxu0 0.0
  %394 = vmatpush1.msra.mxu0 %v33
  %395 = vmatprep.subr.mxu0 0.0
  %396 = vmatpush1.msra.mxu0 %v32
  %397 = vmatprep.subr.mxu0 0.0
  %398 = vmatpush1.msra.mxu0 %v31
  %399 = vmatprep.subr.mxu0 0.0
  %400 = vmatpush1.msra.mxu0 %v30
  %401 = vmatprep.subr.mxu0 0.0
  %402 = vmatpush1.msra.mxu0 %v29
  %403 = vmatprep.subr.mxu0 0.0
  %404 = vmatpush1.msra.mxu0 %v28
  %405 = vmatprep.subr.mxu0 0.0
  %406 = vmatpush1.msra.mxu0 %v27
  %407 = vmatprep.subr.mxu0 0.0
  %408 = vmatpush1.msra.mxu0 %v26
  %409 = vmatprep.subr.mxu0 0.0
  %410 = vmatpush2.msra.mxu0 %v57
  %411 = vmatprep.subr.mxu0 0.0
  %412 = vmatpush2.msra.mxu0 %v56
  %413 = vmatprep.subr.mxu0 0.0
  %414 = vmatpush2.msra.mxu0 %v55
  %415 = vmatprep.subr.mxu0 0.0
  %416 = vmatpush2.msra.mxu0 %v54
  %417 = vmatprep.subr.mxu0 0.0
  %418 = vmatpush2.msra.mxu0 %v53
  %419 = vmatprep.subr.mxu0 0.0
  %420 = vmatpush2.msra.mxu0 %v52
  %421 = vmatprep.subr.mxu0 0.0
  %422 = vmatpush2.msra.mxu0 %v51
  %423 = vmatprep.subr.mxu0 0.0
  %424 = vmatpush2.msra.mxu0 %v50
  %425 = vmatprep.subr.mxu0 0.0
  %426 = vmatpush2.msra.mxu0 %v49
  %427 = vmatprep.subr.mxu0 0.0
  %428 = vmatpush2.msra.mxu0 %v48
  %429 = vmatprep.subr.mxu0 0.0
  %430 = vmatpush2.msra.mxu0 %v47
  %431 = vmatprep.subr.mxu0 0.0
  %432 = vmatpush2.msra.mxu0 %v46
  %433 = vmatprep.subr.mxu0 0.0
  %434 = vmatpush2.msra.mxu0 %v45
  %435 = vmatprep.subr.mxu0 0.0
  %436 = vmatpush2.msra.mxu0 %v44
  %437 = vmatprep.subr.mxu0 0.0
  %438 = vmatpush2.msra.mxu0 %v43
  %439 = vmatprep.subr.mxu0 0.0
  %440 = vmatpush2.msra.mxu0 %v42
  %441 = vmatprep.mubr.f32.mxu0 %v308
  %442 = vmatmul.mubr.f32.gmra.mxu0 %v300
  %v443 = vpop.f32.mrf.mxu0
  %v444 = vadd.f32 %v287, %v443
  %v445 = vpop.f32.mrf.mxu0
  %446 = vdwg.mxu0
  %447 = vmatprep.subr.mxu0 0.0
  %448 = vmatpush1.msra.mxu0 %v73
  %449 = vmatprep.subr.mxu0 0.0
  %450 = vmatpush1.msra.mxu0 %v72
  %451 = vmatprep.subr.mxu0 0.0
  %452 = vmatpush1.msra.mxu0 %v71
  %453 = vmatprep.subr.mxu0 0.0
  %454 = vmatpush1.msra.mxu0 %v70
  %455 = vmatprep.subr.mxu0 0.0
  %456 = vmatpush1.msra.mxu0 %v69
  %457 = vmatprep.subr.mxu0 0.0
  %458 = vmatpush1.msra.mxu0 %v68
  %459 = vmatprep.subr.mxu0 0.0
  %460 = vmatpush1.msra.mxu0 %v67
  %461 = vmatprep.subr.mxu0 0.0
  %462 = vmatpush1.msra.mxu0 %v66
  %463 = vmatprep.subr.mxu0 0.0
  %464 = vmatpush1.msra.mxu0 %v65
  %465 = vmatprep.subr.mxu0 0.0
  %466 = vmatpush1.msra.mxu0 %v64
  %467 = vmatprep.subr.mxu0 0.0
  %468 = vmatpush1.msra.mxu0 %v63
  %469 = vmatprep.subr.mxu0 0.0
  %470 = vmatpush1.msra.mxu0 %v62
  %471 = vmatprep.subr.mxu0 0.0
  %472 = vmatpush1.msra.mxu0 %v61
  %473 = vmatprep.subr.mxu0 0.0
  %474 = vmatpush1.msra.mxu0 %v60
  %475 = vmatprep.subr.mxu0 0.0
  %476 = vmatpush1.msra.mxu0 %v59
  %477 = vmatprep.subr.mxu0 0.0
  %478 = vmatpush1.msra.mxu0 %v58
  %479 = vmatprep.subr.mxu0 0.0
  %480 = vmatpush2.msra.mxu0 %v89
  %481 = vmatprep.subr.mxu0 0.0
  %482 = vmatpush2.msra.mxu0 %v88
  %483 = vmatprep.subr.mxu0 0.0
  %484 = vmatpush2.msra.mxu0 %v87
  %485 = vmatprep.subr.mxu0 0.0
  %486 = vmatpush2.msra.mxu0 %v86
  %487 = vmatprep.subr.mxu0 0.0
  %488 = vmatpush2.msra.mxu0 %v85
  %489 = vmatprep.subr.mxu0 0.0
  %490 = vmatpush2.msra.mxu0 %v84
  %491 = vmatprep.subr.mxu0 0.0
  %492 = vmatpush2.msra.mxu0 %v83
  %493 = vmatprep.subr.mxu0 0.0
  %494 = vmatpush2.msra.mxu0 %v82
  %495 = vmatprep.subr.mxu0 0.0
  %496 = vmatpush2.msra.mxu0 %v81
  %497 = vmatprep.subr.mxu0 0.0
  %498 = vmatpush2.msra.mxu0 %v80
  %499 = vmatprep.subr.mxu0 0.0
  %500 = vmatpush2.msra.mxu0 %v79
  %501 = vmatprep.subr.mxu0 0.0
  %502 = vmatpush2.msra.mxu0 %v78
  %503 = vmatprep.subr.mxu0 0.0
  %504 = vmatpush2.msra.mxu0 %v77
  %505 = vmatprep.subr.mxu0 0.0
  %506 = vmatpush2.msra.mxu0 %v76
  %507 = vmatprep.subr.mxu0 0.0
  %508 = vmatpush2.msra.mxu0 %v75
  %509 = vmatprep.subr.mxu0 0.0
  %510 = vmatpush2.msra.mxu0 %v74
  %511 = vmatprep.mubr.f32.mxu0 %v309
  %512 = vmatmul.mubr.f32.gmra.mxu0 %v307
  %v513 = vpop.f32.mrf.mxu0
  %v514 = vadd.f32 %v444, %v513
  %v515 = vpop.f32.mrf.mxu0
  %516 = vdwg.mxu0
  %517 = vmatprep.subr.mxu0 0.0
  %518 = vmatpush1.msra.mxu0 %v105
  %519 = vmatprep.subr.mxu0 0.0
  %520 = vmatpush1.msra.mxu0 %v104
  %521 = vmatprep.subr.mxu0 0.0
  %522 = vmatpush1.msra.mxu0 %v103
  %523 = vmatprep.subr.mxu0 0.0
  %524 = vmatpush1.msra.mxu0 %v102
  %525 = vmatprep.subr.mxu0 0.0
  %526 = vmatpush1.msra.mxu0 %v101
  %527 = vmatprep.subr.mxu0 0.0
  %528 = vmatpush1.msra.mxu0 %v100
  %529 = vmatprep.subr.mxu0 0.0
  %530 = vmatpush1.msra.mxu0 %v99
  %531 = vmatprep.subr.mxu0 0.0
  %532 = vmatpush1.msra.mxu0 %v98
  %533 = vmatprep.subr.mxu0 0.0
  %534 = vmatpush1.msra.mxu0 %v97
  %535 = vmatprep.subr.mxu0 0.0
  %536 = vmatpush1.msra.mxu0 %v96
  %537 = vmatprep.subr.mxu0 0.0
  %538 = vmatpush1.msra.mxu0 %v95
  %539 = vmatprep.subr.mxu0 0.0
  %540 = vmatpush1.msra.mxu0 %v94
  %541 = vmatprep.subr.mxu0 0.0
  %542 = vmatpush1.msra.mxu0 %v93
  %543 = vmatprep.subr.mxu0 0.0
  %544 = vmatpush1.msra.mxu0 %v92
  %545 = vmatprep.subr.mxu0 0.0
  %546 = vmatpush1.msra.mxu0 %v91
  %547 = vmatprep.subr.mxu0 0.0
  %548 = vmatpush1.msra.mxu0 %v90
  %549 = vmatprep.subr.mxu0 0.0
  %550 = vmatpush2.msra.mxu0 %v121
  %551 = vmatprep.subr.mxu0 0.0
  %552 = vmatpush2.msra.mxu0 %v120
  %553 = vmatprep.subr.mxu0 0.0
  %554 = vmatpush2.msra.mxu0 %v119
  %555 = vmatprep.subr.mxu0 0.0
  %556 = vmatpush2.msra.mxu0 %v118
  %557 = vmatprep.subr.mxu0 0.0
  %558 = vmatpush2.msra.mxu0 %v117
  %559 = vmatprep.subr.mxu0 0.0
  %560 = vmatpush2.msra.mxu0 %v116
  %561 = vmatprep.subr.mxu0 0.0
  %562 = vmatpush2.msra.mxu0 %v115
  %563 = vmatprep.subr.mxu0 0.0
  %564 = vmatpush2.msra.mxu0 %v114
  %565 = vmatprep.subr.mxu0 0.0
  %566 = vmatpush2.msra.mxu0 %v113
  %567 = vmatprep.subr.mxu0 0.0
  %568 = vmatpush2.msra.mxu0 %v112
  %569 = vmatprep.subr.mxu0 0.0
  %570 = vmatpush2.msra.mxu0 %v111
  %571 = vmatprep.subr.mxu0 0.0
  %572 = vmatpush2.msra.mxu0 %v110
  %573 = vmatprep.subr.mxu0 0.0
  %574 = vmatpush2.msra.mxu0 %v109
  %575 = vmatprep.subr.mxu0 0.0
  %576 = vmatpush2.msra.mxu0 %v108
  %577 = vmatprep.subr.mxu0 0.0
  %578 = vmatpush2.msra.mxu0 %v107
  %579 = vmatprep.subr.mxu0 0.0
  %580 = vmatpush2.msra.mxu0 %v106
  %581 = vmatprep.mubr.f32.mxu0 %v325
  %582 = vmatmul.mubr.f32.gmra.mxu0 %v317
  %v583 = vpop.f32.mrf.mxu0
  %v584 = vadd.f32 %v514, %v583
  %v585 = vpop.f32.mrf.mxu0
  %586 = vdwg.mxu0
  %587 = vmatprep.subr.mxu0 0.0
  %588 = vmatpush1.msra.mxu0 %v137
  %589 = vmatprep.subr.mxu0 0.0
  %590 = vmatpush1.msra.mxu0 %v136
  %591 = vmatprep.subr.mxu0 0.0
  %592 = vmatpush1.msra.mxu0 %v135
  %593 = vmatprep.subr.mxu0 0.0
  %594 = vmatpush1.msra.mxu0 %v134
  %595 = vmatprep.subr.mxu0 0.0
  %596 = vmatpush1.msra.mxu0 %v133
  %597 = vmatprep.subr.mxu0 0.0
  %598 = vmatpush1.msra.mxu0 %v132
  %599 = vmatprep.subr.mxu0 0.0
  %600 = vmatpush1.msra.mxu0 %v131
  %601 = vmatprep.subr.mxu0 0.0
  %602 = vmatpush1.msra.mxu0 %v130
  %603 = vmatprep.subr.mxu0 0.0
  %604 = vmatpush1.msra.mxu0 %v129
  %605 = vmatprep.subr.mxu0 0.0
  %606 = vmatpush1.msra.mxu0 %v128
  %607 = vmatprep.subr.mxu0 0.0
  %608 = vmatpush1.msra.mxu0 %v127
  %609 = vmatprep.subr.mxu0 0.0
  %610 = vmatpush1.msra.mxu0 %v126
  %611 = vmatprep.subr.mxu0 0.0
  %612 = vmatpush1.msra.mxu0 %v125
  %613 = vmatprep.subr.mxu0 0.0
  %614 = vmatpush1.msra.mxu0 %v124
  %615 = vmatprep.subr.mxu0 0.0
  %616 = vmatpush1.msra.mxu0 %v123
  %617 = vmatprep.subr.mxu0 0.0
  %618 = vmatpush1.msra.mxu0 %v122
  %619 = vmatprep.subr.mxu0 0.0
  %620 = vmatpush2.msra.mxu0 %v153
  %621 = vmatprep.subr.mxu0 0.0
  %622 = vmatpush2.msra.mxu0 %v152
  %623 = vmatprep.subr.mxu0 0.0
  %624 = vmatpush2.msra.mxu0 %v151
  %625 = vmatprep.subr.mxu0 0.0
  %626 = vmatpush2.msra.mxu0 %v150
  %627 = vmatprep.subr.mxu0 0.0
  %628 = vmatpush2.msra.mxu0 %v149
  %629 = vmatprep.subr.mxu0 0.0
  %630 = vmatpush2.msra.mxu0 %v148
  %631 = vmatprep.subr.mxu0 0.0
  %632 = vmatpush2.msra.mxu0 %v147
  %633 = vmatprep.subr.mxu0 0.0
  %634 = vmatpush2.msra.mxu0 %v146
  %635 = vmatprep.subr.mxu0 0.0
  %636 = vmatpush2.msra.mxu0 %v145
  %637 = vmatprep.subr.mxu0 0.0
  %638 = vmatpush2.msra.mxu0 %v144
  %639 = vmatprep.subr.mxu0 0.0
  %640 = vmatpush2.msra.mxu0 %v143
  %641 = vmatprep.subr.mxu0 0.0
  %642 = vmatpush2.msra.mxu0 %v142
  %643 = vmatprep.subr.mxu0 0.0
  %644 = vmatpush2.msra.mxu0 %v141
  %645 = vmatprep.subr.mxu0 0.0
  %646 = vmatpush2.msra.mxu0 %v140
  %647 = vmatprep.subr.mxu0 0.0
  %648 = vmatpush2.msra.mxu0 %v139
  %649 = vmatprep.subr.mxu0 0.0
  %650 = vmatpush2.msra.mxu0 %v138
  %651 = vmatprep.mubr.f32.mxu0 %v326
  %652 = vmatmul.mubr.f32.gmra.mxu0 %v324
  %v653 = vpop.f32.mrf.mxu0
  %v654 = vadd.f32 %v584, %v653
  %v655 = vpop.f32.mrf.mxu0
  %656 = vdwg.mxu0
  %657 = vmatprep.subr.mxu0 0.0
  %658 = vmatpush1.msra.mxu0 %v169
  %659 = vmatprep.subr.mxu0 0.0
  %660 = vmatpush1.msra.mxu0 %v168
  %661 = vmatprep.subr.mxu0 0.0
  %662 = vmatpush1.msra.mxu0 %v167
  %663 = vmatprep.subr.mxu0 0.0
  %664 = vmatpush1.msra.mxu0 %v166
  %665 = vmatprep.subr.mxu0 0.0
  %666 = vmatpush1.msra.mxu0 %v165
  %667 = vmatprep.subr.mxu0 0.0
  %668 = vmatpush1.msra.mxu0 %v164
  %669 = vmatprep.subr.mxu0 0.0
  %670 = vmatpush1.msra.mxu0 %v163
  %671 = vmatprep.subr.mxu0 0.0
  %672 = vmatpush1.msra.mxu0 %v162
  %673 = vmatprep.subr.mxu0 0.0
  %674 = vmatpush1.msra.mxu0 %v161
  %675 = vmatprep.subr.mxu0 0.0
  %676 = vmatpush1.msra.mxu0 %v160
  %677 = vmatprep.subr.mxu0 0.0
  %678 = vmatpush1.msra.mxu0 %v159
  %679 = vmatprep.subr.mxu0 0.0
  %680 = vmatpush1.msra.mxu0 %v158
  %681 = vmatprep.subr.mxu0 0.0
  %682 = vmatpush1.msra.mxu0 %v157
  %683 = vmatprep.subr.mxu0 0.0
  %684 = vmatpush1.msra.mxu0 %v156
  %685 = vmatprep.subr.mxu0 0.0
  %686 = vmatpush1.msra.mxu0 %v155
  %687 = vmatprep.subr.mxu0 0.0
  %688 = vmatpush1.msra.mxu0 %v154
  %689 = vmatprep.subr.mxu0 0.0
  %690 = vmatpush2.msra.mxu0 %v185
  %691 = vmatprep.subr.mxu0 0.0
  %692 = vmatpush2.msra.mxu0 %v184
  %693 = vmatprep.subr.mxu0 0.0
  %694 = vmatpush2.msra.mxu0 %v183
  %695 = vmatprep.subr.mxu0 0.0
  %696 = vmatpush2.msra.mxu0 %v182
  %697 = vmatprep.subr.mxu0 0.0
  %698 = vmatpush2.msra.mxu0 %v181
  %699 = vmatprep.subr.mxu0 0.0
  %700 = vmatpush2.msra.mxu0 %v180
  %701 = vmatprep.subr.mxu0 0.0
  %702 = vmatpush2.msra.mxu0 %v179
  %703 = vmatprep.subr.mxu0 0.0
  %704 = vmatpush2.msra.mxu0 %v178
  %705 = vmatprep.subr.mxu0 0.0
  %706 = vmatpush2.msra.mxu0 %v177
  %707 = vmatprep.subr.mxu0 0.0
  %708 = vmatpush2.msra.mxu0 %v176
  %709 = vmatprep.subr.mxu0 0.0
  %710 = vmatpush2.msra.mxu0 %v175
  %711 = vmatprep.subr.mxu0 0.0
  %712 = vmatpush2.msra.mxu0 %v174
  %713 = vmatprep.subr.mxu0 0.0
  %714 = vmatpush2.msra.mxu0 %v173
  %715 = vmatprep.subr.mxu0 0.0
  %716 = vmatpush2.msra.mxu0 %v172
  %717 = vmatprep.subr.mxu0 0.0
  %718 = vmatpush2.msra.mxu0 %v171
  %719 = vmatprep.subr.mxu0 0.0
  %720 = vmatpush2.msra.mxu0 %v170
  %721 = vmatprep.mubr.f32.mxu0 %v342
  %722 = vmatmul.mubr.f32.gmra.mxu0 %v334
  %v723 = vpop.f32.mrf.mxu0
  %v724 = vadd.f32 %v654, %v723
  %v725 = vpop.f32.mrf.mxu0
  %726 = vdwg.mxu0
  %727 = vmatprep.subr.mxu0 0.0
  %728 = vmatpush1.msra.mxu0 %v201
  %729 = vmatprep.subr.mxu0 0.0
  %730 = vmatpush1.msra.mxu0 %v200
  %731 = vmatprep.subr.mxu0 0.0
  %732 = vmatpush1.msra.mxu0 %v199
  %733 = vmatprep.subr.mxu0 0.0
  %734 = vmatpush1.msra.mxu0 %v198
  %735 = vmatprep.subr.mxu0 0.0
  %736 = vmatpush1.msra.mxu0 %v197
  %737 = vmatprep.subr.mxu0 0.0
  %738 = vmatpush1.msra.mxu0 %v196
  %739 = vmatprep.subr.mxu0 0.0
  %740 = vmatpush1.msra.mxu0 %v195
  %741 = vmatprep.subr.mxu0 0.0
  %742 = vmatpush1.msra.mxu0 %v194
  %743 = vmatprep.subr.mxu0 0.0
  %744 = vmatpush1.msra.mxu0 %v193
  %745 = vmatprep.subr.mxu0 0.0
  %746 = vmatpush1.msra.mxu0 %v192
  %747 = vmatprep.subr.mxu0 0.0
  %748 = vmatpush1.msra.mxu0 %v191
  %749 = vmatprep.subr.mxu0 0.0
  %750 = vmatpush1.msra.mxu0 %v190
  %751 = vmatprep.subr.mxu0 0.0
  %752 = vmatpush1.msra.mxu0 %v189
  %753 = vmatprep.subr.mxu0 0.0
  %754 = vmatpush1.msra.mxu0 %v188
  %755 = vmatprep.subr.mxu0 0.0
  %756 = vmatpush1.msra.mxu0 %v187
  %757 = vmatprep.subr.mxu0 0.0
  %758 = vmatpush1.msra.mxu0 %v186
  %759 = vmatprep.subr.mxu0 0.0
  %760 = vmatpush2.msra.mxu0 %v217
  %761 = vmatprep.subr.mxu0 0.0
  %762 = vmatpush2.msra.mxu0 %v216
  %763 = vmatprep.subr.mxu0 0.0
  %764 = vmatpush2.msra.mxu0 %v215
  %765 = vmatprep.subr.mxu0 0.0
  %766 = vmatpush2.msra.mxu0 %v214
  %767 = vmatprep.subr.mxu0 0.0
  %768 = vmatpush2.msra.mxu0 %v213
  %769 = vmatprep.subr.mxu0 0.0
  %770 = vmatpush2.msra.mxu0 %v212
  %771 = vmatprep.subr.mxu0 0.0
  %772 = vmatpush2.msra.mxu0 %v211
  %773 = vmatprep.subr.mxu0 0.0
  %774 = vmatpush2.msra.mxu0 %v210
  %775 = vmatprep.subr.mxu0 0.0
  %776 = vmatpush2.msra.mxu0 %v209
  %777 = vmatprep.subr.mxu0 0.0
  %778 = vmatpush2.msra.mxu0 %v208
  %779 = vmatprep.subr.mxu0 0.0
  %780 = vmatpush2.msra.mxu0 %v207
  %781 = vmatprep.subr.mxu0 0.0
  %782 = vmatpush2.msra.mxu0 %v206
  %783 = vmatprep.subr.mxu0 0.0
  %784 = vmatpush2.msra.mxu0 %v205
  %785 = vmatprep.subr.mxu0 0.0
  %786 = vmatpush2.msra.mxu0 %v204
  %787 = vmatprep.subr.mxu0 0.0
  %788 = vmatpush2.msra.mxu0 %v203
  %789 = vmatprep.subr.mxu0 0.0
  %790 = vmatpush2.msra.mxu0 %v202
  %791 = vmatprep.mubr.f32.mxu0 %v343
  %792 = vmatmul.mubr.f32.gmra.mxu0 %v341
  %v793 = vpop.f32.mrf.mxu0
  %v794 = vadd.f32 %v724, %v793
  %v795 = vpop.f32.mrf.mxu0
  %796 = vdwg.mxu0
  %797 = vmatprep.subr.mxu0 0.0
  %798 = vmatpush1.msra.mxu0 %v233
  %799 = vmatprep.subr.mxu0 0.0
  %800 = vmatpush1.msra.mxu0 %v232
  %801 = vmatprep.subr.mxu0 0.0
  %802 = vmatpush1.msra.mxu0 %v231
  %803 = vmatprep.subr.mxu0 0.0
  %804 = vmatpush1.msra.mxu0 %v230
  %805 = vmatprep.subr.mxu0 0.0
  %806 = vmatpush1.msra.mxu0 %v229
  %807 = vmatprep.subr.mxu0 0.0
  %808 = vmatpush1.msra.mxu0 %v228
  %809 = vmatprep.subr.mxu0 0.0
  %810 = vmatpush1.msra.mxu0 %v227
  %811 = vmatprep.subr.mxu0 0.0
  %812 = vmatpush1.msra.mxu0 %v226
  %813 = vmatprep.subr.mxu0 0.0
  %814 = vmatpush1.msra.mxu0 %v225
  %815 = vmatprep.subr.mxu0 0.0
  %816 = vmatpush1.msra.mxu0 %v224
  %817 = vmatprep.subr.mxu0 0.0
  %818 = vmatpush1.msra.mxu0 %v223
  %819 = vmatprep.subr.mxu0 0.0
  %820 = vmatpush1.msra.mxu0 %v222
  %821 = vmatprep.subr.mxu0 0.0
  %822 = vmatpush1.msra.mxu0 %v221
  %823 = vmatprep.subr.mxu0 0.0
  %824 = vmatpush1.msra.mxu0 %v220
  %825 = vmatprep.subr.mxu0 0.0
  %826 = vmatpush1.msra.mxu0 %v219
  %827 = vmatprep.subr.mxu0 0.0
  %828 = vmatpush1.msra.mxu0 %v218
  %829 = vmatprep.subr.mxu0 0.0
  %830 = vmatpush2.msra.mxu0 %v249
  %831 = vmatprep.subr.mxu0 0.0
  %832 = vmatpush2.msra.mxu0 %v248
  %833 = vmatprep.subr.mxu0 0.0
  %834 = vmatpush2.msra.mxu0 %v247
  %835 = vmatprep.subr.mxu0 0.0
  %836 = vmatpush2.msra.mxu0 %v246
  %837 = vmatprep.subr.mxu0 0.0
  %838 = vmatpush2.msra.mxu0 %v245
  %839 = vmatprep.subr.mxu0 0.0
  %840 = vmatpush2.msra.mxu0 %v244
  %841 = vmatprep.subr.mxu0 0.0
  %842 = vmatpush2.msra.mxu0 %v243
  %843 = vmatprep.subr.mxu0 0.0
  %844 = vmatpush2.msra.mxu0 %v242
  %845 = vmatprep.subr.mxu0 0.0
  %846 = vmatpush2.msra.mxu0 %v241
  %847 = vmatprep.subr.mxu0 0.0
  %848 = vmatpush2.msra.mxu0 %v240
  %849 = vmatprep.subr.mxu0 0.0
  %850 = vmatpush2.msra.mxu0 %v239
  %851 = vmatprep.subr.mxu0 0.0
  %852 = vmatpush2.msra.mxu0 %v238
  %853 = vmatprep.subr.mxu0 0.0
  %854 = vmatpush2.msra.mxu0 %v237
  %855 = vmatprep.subr.mxu0 0.0
  %856 = vmatpush2.msra.mxu0 %v236
  %857 = vmatprep.subr.mxu0 0.0
  %858 = vmatpush2.msra.mxu0 %v235
  %859 = vmatprep.subr.mxu0 0.0
  %860 = vmatpush2.msra.mxu0 %v234
  %861 = vmatprep.mubr.f32.mxu0 %v359
  %862 = vmatmul.mubr.f32.gmra.mxu0 %v351
  %v863 = vpop.f32.mrf.mxu0
  %v864 = vadd.f32 %v794, %v863
  %v865 = vpop.f32.mrf.mxu0
  %866 = vdwg.mxu0
  %867 = vmatprep.subr.mxu0 0.0
  %868 = vmatpush1.msra.mxu0 %v265
  %869 = vmatprep.subr.mxu0 0.0
  %870 = vmatpush1.msra.mxu0 %v264
  %871 = vmatprep.subr.mxu0 0.0
  %872 = vmatpush1.msra.mxu0 %v263
  %873 = vmatprep.subr.mxu0 0.0
  %874 = vmatpush1.msra.mxu0 %v262
  %875 = vmatprep.subr.mxu0 0.0
  %876 = vmatpush1.msra.mxu0 %v261
  %877 = vmatprep.subr.mxu0 0.0
  %878 = vmatpush1.msra.mxu0 %v260
  %879 = vmatprep.subr.mxu0 0.0
  %880 = vmatpush1.msra.mxu0 %v259
  %881 = vmatprep.subr.mxu0 0.0
  %882 = vmatpush1.msra.mxu0 %v258
  %883 = vmatprep.subr.mxu0 0.0
  %884 = vmatpush1.msra.mxu0 %v257
  %885 = vmatprep.subr.mxu0 0.0
  %886 = vmatpush1.msra.mxu0 %v256
  %887 = vmatprep.subr.mxu0 0.0
  %888 = vmatpush1.msra.mxu0 %v255
  %889 = vmatprep.subr.mxu0 0.0
  %890 = vmatpush1.msra.mxu0 %v254
  %891 = vmatprep.subr.mxu0 0.0
  %892 = vmatpush1.msra.mxu0 %v253
  %893 = vmatprep.subr.mxu0 0.0
  %894 = vmatpush1.msra.mxu0 %v252
  %895 = vmatprep.subr.mxu0 0.0
  %896 = vmatpush1.msra.mxu0 %v251
  %897 = vmatprep.subr.mxu0 0.0
  %898 = vmatpush1.msra.mxu0 %v250
  %899 = vmatprep.subr.mxu0 0.0
  %900 = vmatpush2.msra.mxu0 %v281
  %901 = vmatprep.subr.mxu0 0.0
  %902 = vmatpush2.msra.mxu0 %v280
  %903 = vmatprep.subr.mxu0 0.0
  %904 = vmatpush2.msra.mxu0 %v279
  %905 = vmatprep.subr.mxu0 0.0
  %906 = vmatpush2.msra.mxu0 %v278
  %907 = vmatprep.subr.mxu0 0.0
  %908 = vmatpush2.msra.mxu0 %v277
  %909 = vmatprep.subr.mxu0 0.0
  %910 = vmatpush2.msra.mxu0 %v276
  %911 = vmatprep.subr.mxu0 0.0
  %912 = vmatpush2.msra.mxu0 %v275
  %913 = vmatprep.subr.mxu0 0.0
  %914 = vmatpush2.msra.mxu0 %v274
  %915 = vmatprep.subr.mxu0 0.0
  %916 = vmatpush2.msra.mxu0 %v273
  %917 = vmatprep.subr.mxu0 0.0
  %918 = vmatpush2.msra.mxu0 %v272
  %919 = vmatprep.subr.mxu0 0.0
  %920 = vmatpush2.msra.mxu0 %v271
  %921 = vmatprep.subr.mxu0 0.0
  %922 = vmatpush2.msra.mxu0 %v270
  %923 = vmatprep.subr.mxu0 0.0
  %924 = vmatpush2.msra.mxu0 %v269
  %925 = vmatprep.subr.mxu0 0.0
  %926 = vmatpush2.msra.mxu0 %v268
  %927 = vmatprep.subr.mxu0 0.0
  %928 = vmatpush2.msra.mxu0 %v267
  %929 = vmatprep.subr.mxu0 0.0
  %930 = vmatpush2.msra.mxu0 %v266
  %931 = vmatprep.mubr.f32.mxu0 %v360
  %932 = vmatmul.mubr.f32.gmra.mxu0 %v358
  %v933 = vpop.f32.mrf.mxu0
  %v934 = vadd.f32 %v864, %v933
  %v935 = vpop.f32.mrf.mxu0
  %936 = vdwg.mxu0
  %v937 = vld [vmem:[%s3] sm:$0x1]
  %v939 = vlaneseq
  %v940 = vshrl.u32 %v939, 7
  %v941 = vsub.s32 0, %v940
  %v942 = vrot.slane %v937, %v941
  %v944 = vmul.f32 %v934, %v942
  %vm945 = vcmask 1041408
  %v946 = vsel %vm945, %v944, 0.0
  %947 = vadd.xlane.f32.xlu0 %v946
  %v948 = vpop.xlane.xlu0 %947
  %v949 = vld [vmem:[#allocation2] sm:$0x1]
  %v951 = vlaneseq
  %v952 = vshrl.u32 %v951, 7
  %v953 = vsub.s32 0, %v952
  %v954 = vrot.slane %v949, %v953
  %v956 = vadd.f32 %v948, %v954
  %v957 = vxor.u32 %v956, 2147483648
  %v958 = vmul.f32 %v957, 1.442695
  %v959 = vpow.pop %v958
  %v960 = vadd.f32 %v959, 1.0
  %v961 = vrcp.pop %v960
  %v962 = vmul.f32 1.0, %v961
  %vm963 = vcmask 1024
  %964 = vst.msk [vmem:[%s5] sm:$0x3] %vm963, %v962
  // Predicated region
  $region22: #{discriminator_forward.7} parent=0 // pred_check
    _
  $region23: #{discriminator_forward.7} parent=0 // pred_check_branch
    %966 = sbr.rel (0) target = $region25
  $region24: #{discriminator_forward.7} parent=0 // pred_region
    _
  $region25: #{discriminator_forward.7} parent=0 // pred_fallthru
    _
  // Predicated region
  $region26: #{discriminator_forward.7} parent=0 // pred_check
    _
  $region27: #{discriminator_forward.7} parent=0 // pred_check_branch
    %968 = sbr.rel (0) target = $region29
  $region28: #{discriminator_forward.7} parent=0 // pred_region
    _
  $region29: #{discriminator_forward.7} parent=0 // pred_fallthru
    _

</llo_original>
